<compile_context>
chip_gen: v7x
topology: tpu7x:2x2x1
jax: 0.10.0
libtpu: 0.0.40
codegen_flags: <defaults>
</compile_context>

<pallas_src>
import functools
import math

import jax
import jax.numpy as jnp
from jax.experimental import pallas as pl
from jax.experimental.pallas import tpu as pltpu


_P = 8  # interior row offset in the halo scratch (f32 sublane-tile aligned)


# ----------------------------- Pallas kernel ------------------------------

def _fused_rpn_kernel(x_ref, mean_ref, istd_ref,
                      t1_ref, b1_ref, t2_ref, b2_ref, hw_ref, hb_ref,
                      out_ref, img_buf, feat_buf, *, H, W, CIN):
    # Zero only the vertical 1-row halos actually read (rows _P-1 and _P+H,
    # covered by two 8-aligned row blocks); horizontal zero padding is baked
    # into the banded weights, so no full-scratch memset is needed.  Re-done
    # every grid step so the kernel stays correct when the parallel batch axis
    # is split across TensorCores (each core has its own scratch).
    img_buf[0:_P, :] = jnp.zeros((_P, img_buf.shape[1]), jnp.float32)
    img_buf[_P + H:_P + H + _P, :] = jnp.zeros((_P, img_buf.shape[1]),
                                               jnp.float32)
    feat_buf[0:_P, :] = jnp.zeros((_P, feat_buf.shape[1]), jnp.float32)
    feat_buf[_P + H:_P + H + _P, :] = jnp.zeros((_P, feat_buf.shape[1]),
                                                jnp.float32)

    # Stage the NCHW image directly: channel planes concatenated along lanes
    # -> (H, CIN*W), pixel normalization (x - mean) * (1/std) fused in f32.
    planes = [x_ref[0, ci] for ci in range(CIN)]
    xn = (jnp.concatenate(planes, axis=-1).astype(jnp.float32)
          - mean_ref[...]) * istd_ref[...]
    img_buf[_P:_P + H, :] = xn                      # aligned interior store

    def conv3x3_rows(src_buf, t_ref, b_ref):
        # 3x3 conv (stride 1, zero pad) as 3 row-banded matmuls, one per dy.
        # Accumulation stays in ~16 vregs (no VMEM spill round trips); the two
        # off-by-one row slices are the only (tiny) unaligned accesses left.
        acc = jnp.zeros((H, t_ref.shape[-1]), jnp.float32)
        for dy in range(3):
            lhs = src_buf[_P - 1 + dy:_P - 1 + dy + H, :].astype(jnp.bfloat16)
            acc = acc + jnp.dot(lhs, t_ref[dy],
                                preferred_element_type=jnp.float32)
        return jnp.maximum(acc + b_ref[...], 0.0)

    # Synthetic backbone 3x3 + ReLU, restaged (aligned) as the RPN conv input.
    feat_buf[_P:_P + H, :] = conv3x3_rows(img_buf, t1_ref, b1_ref)
    # RPN shared 3x3 conv + ReLU.
    t = conv3x3_rows(feat_buf, t2_ref, b2_ref)
    # Fused 1x1 heads [obj(A) | deltas(4A) | pad] as one block-diagonal matmul;
    # per-pixel width padded so the output row is a multiple of 128 lanes ->
    # full-width unmasked stores.
    head = jnp.dot(t.astype(jnp.bfloat16), hw_ref[...],
                   preferred_element_type=jnp.float32) + hb_ref[...]
    out_ref[0] = head


def fused_rpn(images_nchw, mean_flat, istd_flat, t1, b1t, t2, b2t, hbd, hbt):
    n, cin, h, w = images_nchw.shape
    wc = t2.shape[-1]      # W * C
    wcpp = hbd.shape[-1]   # W * Cpp (lane-dense head width)
    kern = functools.partial(_fused_rpn_kernel, H=h, W=w, CIN=cin)
    grid_spec = pltpu.PrefetchScalarGridSpec(
        num_scalar_prefetch=0,
        grid=(n,),
        in_specs=[
            pl.BlockSpec((1, cin, h, w), lambda i: (i, 0, 0, 0)),   # image NCHW
            pl.BlockSpec((1, w * cin), lambda i: (0, 0)),           # mean (per lane)
            pl.BlockSpec((1, w * cin), lambda i: (0, 0)),           # 1/std
            pl.BlockSpec((3, w * cin, wc), lambda i: (0, 0, 0)),    # backbone banded w
            pl.BlockSpec((1, wc), lambda i: (0, 0)),                # backbone bias
            pl.BlockSpec((3, wc, wc), lambda i: (0, 0, 0)),         # rpn conv banded w
            pl.BlockSpec((1, wc), lambda i: (0, 0)),                # rpn conv bias
            pl.BlockSpec((wc, wcpp), lambda i: (0, 0)),             # fused head (block-diag)
            pl.BlockSpec((1, wcpp), lambda i: (0, 0)),              # fused head bias
        ],
        out_specs=pl.BlockSpec((1, h, wcpp), lambda i: (i, 0, 0)),
        scratch_shapes=[
            pltpu.VMEM((h + 2 * _P, w * cin), jnp.float32),   # padded image rows
            pltpu.VMEM((h + 2 * _P, wc), jnp.float32),        # padded feature rows
        ],
    )
    return pl.pallas_call(
        kern,
        out_shape=jax.ShapeDtypeStruct((n, h, wcpp), jnp.float32),
        grid_spec=grid_spec,
        compiler_params=pltpu.CompilerParams(
            dimension_semantics=("parallel",),
            vmem_limit_bytes=32 * 1024 * 1024,
        ),
    )(images_nchw, mean_flat, istd_flat, t1, b1t, t2, b2t, hbd, hbt)


# ------------------------ weight prepacking (JAX) --------------------------

def _row_toeplitz(w_hwio, width, *, cin_major_rows):
    """HWIO 3x3 conv weight -> (3, width*Cin, width*Cout) banded matmul weights,
    one per vertical tap dy.  Out-of-range horizontal taps are absent, which
    reproduces zero padding along W exactly."""
    kh, kw, cin, cout = w_hwio.shape
    mats = []
    for dy in range(kh):
        blocks = jnp.zeros((width, width, cin, cout), w_hwio.dtype)
        for dx in range(kw):
            sel = jnp.eye(width, k=1 - dx, dtype=w_hwio.dtype)  # x_in = x_out+dx-1
            blocks = blocks + sel[:, :, None, None] * w_hwio[dy, dx][None, None]
        if cin_major_rows:   # rows ordered (ci, x_in): staged image plane layout
            m = blocks.transpose(2, 0, 1, 3)
        else:                # rows ordered (x_in, ci): feature (x, c) layout
            m = blocks.transpose(0, 2, 1, 3)
        mats.append(m.reshape(width * cin, width * cout))
    return jnp.stack(mats, axis=0)


def _block_diag_head(w_cio, width):
    """(Cin, Cpp) 1x1 head weight -> (width*Cin, width*Cpp) block-diagonal."""
    cin, cpp = w_cio.shape
    eye = jnp.eye(width, dtype=w_cio.dtype)
    bd = eye[:, :, None, None] * w_cio[None, None]
    return bd.transpose(0, 2, 1, 3).reshape(width * cin, width * cpp)


# ------------------------------ JAX glue -----------------------------------

def make_anchors(h, w, sizes, stride=1.0):
    ys = (jnp.arange(h, dtype=jnp.float32) + 0.5) * stride
    xs = (jnp.arange(w, dtype=jnp.float32) + 0.5) * stride
    cy, cx = jnp.meshgrid(ys, xs, indexing="ij")
    per_size = []
    for s in sizes:
        half = s / 2.0
        per_size.append(jnp.stack([cx - half, cy - half, cx + half, cy + half],
                                  axis=-1))
    a = jnp.stack(per_size, axis=2)        # (h, w, A, 4), anchor-major per loc
    return a.reshape(-1, 4)


def _decode_boxes(anchors, deltas, img_h, img_w):
    # Box2BoxTransform.apply_deltas (weights 1,1,1,1) + clip, plain jnp.
    wa = anchors[..., 2] - anchors[..., 0]
    ha = anchors[..., 3] - anchors[..., 1]
    cxa = anchors[..., 0] + 0.5 * wa
    cya = anchors[..., 1] + 0.5 * ha
    dx, dy = deltas[..., 0], deltas[..., 1]
    dw, dh = deltas[..., 2], deltas[..., 3]
    scale_clamp = 4.135166556742356  # log(1000 / 16)
    dw = jnp.minimum(dw, scale_clamp)
    dh = jnp.minimum(dh, scale_clamp)
    pcx = dx * wa + cxa
    pcy = dy * ha + cya
    pw = jnp.exp(dw) * wa
    ph = jnp.exp(dh) * ha
    x1 = jnp.clip(pcx - 0.5 * pw, 0.0, float(img_w))
    y1 = jnp.clip(pcy - 0.5 * ph, 0.0, float(img_h))
    x2 = jnp.clip(pcx + 0.5 * pw, 0.0, float(img_w))
    y2 = jnp.clip(pcy + 0.5 * ph, 0.0, float(img_h))
    return jnp.stack([x1, y1, x2, y2], axis=-1)


@functools.partial(jax.jit, static_argnames=("topk",))
def proposal_network_forward(images_nchw, params, topk=64):
    """images_nchw: (N, 3, H, W) float32 (PyTorch convention)."""
    n, cin, h, w = images_nchw.shape
    a = params["rpn_obj_w"].shape[-1]                 # anchors per location
    c = params["backbone_w"].shape[-1]
    a5 = 5 * a
    # per-pixel head width padded so W*cpp is a multiple of 128 lanes
    g = 128 // math.gcd(w, 128)
    cpp = ((a5 + g - 1) // g) * g

    # fused 1x1 heads -> one (C, cpp) weight: [obj(A) | deltas(4A) | zero pad]
    head_w = jnp.concatenate([params["rpn_obj_w"], params["rpn_anchor_w"]],
                             axis=-1)
    head_w = jnp.pad(head_w, ((0, 0), (0, cpp - a5)))
    head_b = jnp.concatenate([params["rpn_obj_b"], params["rpn_anchor_b"]],
                             axis=-1)
    head_b = jnp.pad(head_b, (0, cpp - a5))

    # prepack weights: row-banded 3x3 convs + block-diagonal 1x1 head (bf16)
    t1 = _row_toeplitz(params["backbone_w"], w, cin_major_rows=True
                       ).astype(jnp.bfloat16)
    t2 = _row_toeplitz(params["rpn_conv_w"], w, cin_major_rows=False
                       ).astype(jnp.bfloat16)
    hbd = _block_diag_head(head_w, w).astype(jnp.bfloat16)
    b1t = jnp.tile(params["backbone_b"], w).reshape(1, w * c)
    b2t = jnp.tile(params["rpn_conv_b"], w).reshape(1, w * c)
    hbt = jnp.tile(head_b, w).reshape(1, w * cpp)
    mean_flat = jnp.repeat(params["pixel_mean"], w).reshape(1, w * cin)
    istd_flat = jnp.repeat(1.0 / params["pixel_std"], w).reshape(1, w * cin)

    # one fused kernel: normalize + backbone 3x3 + RPN 3x3 + fused 1x1 heads
    head = fused_rpn(images_nchw, mean_flat, istd_flat,
                     t1, b1t, t2, b2t, hbd, hbt)       # (N, H, W*cpp)
    head = head.reshape(n, h, w, cpp)                  # free contiguous reshape

    r = h * w * a
    logits = head[..., :a].reshape(n, r)               # (y, x, a) anchor order
    deltas = head[..., a:a5].reshape(n, r, 4)          # (A, 4) channel split

    # proposal selection: top-k by objectness, decode only those boxes
    # (detectron2 pre-NMS select-then-decode ordering), all plain jnp.
    top_scores, top_idx = jax.lax.top_k(logits, topk)
    top_deltas = jnp.take_along_axis(deltas, top_idx[..., None], axis=1)
    top_anchors = jnp.take(params["anchors"], top_idx, axis=0)
    top_boxes = _decode_boxes(top_anchors, top_deltas, h, w)

    # detector_postprocess: output (height, width) == image size -> identity.
    return [
        {"proposals": {"proposal_boxes": top_boxes[i],
                       "objectness_logits": top_scores[i]}}
        for i in range(n)
    ]


def init_params(key, h, w, cin=3, c=16, num_anchors=3):
    ks = jax.random.split(key, 4)
    return dict(
        pixel_mean=jnp.array([103.53, 116.28, 123.675], jnp.float32),
        pixel_std=jnp.array([57.375, 57.12, 58.395], jnp.float32),
        backbone_w=0.05 * jax.random.normal(ks[0], (3, 3, cin, c), jnp.float32),
        backbone_b=jnp.zeros((c,), jnp.float32),
        rpn_conv_w=0.05 * jax.random.normal(ks[1], (3, 3, c, c), jnp.float32),
        rpn_conv_b=jnp.zeros((c,), jnp.float32),
        rpn_obj_w=0.05 * jax.random.normal(ks[2], (c, num_anchors), jnp.float32),
        rpn_obj_b=jnp.zeros((num_anchors,), jnp.float32),
        rpn_anchor_w=0.05 * jax.random.normal(ks[3], (c, 4 * num_anchors),
                                              jnp.float32),
        rpn_anchor_b=jnp.zeros((4 * num_anchors,), jnp.float32),
        anchors=make_anchors(h, w, sizes=(8.0, 16.0, 32.0)),
    )


if __name__ == "__main__":
    N, C, H, W = 2, 3, 32, 32
    key = jax.random.PRNGKey(0)
    k_img, k_par = jax.random.split(key)
    images = jax.random.uniform(k_img, (N, C, H, W), jnp.float32) * 255.0
    params = init_params(k_par, H, W)

    results = proposal_network_forward(images, params, topk=64)
    jax.block_until_ready(results)

    boxes = results[0]["proposals"]["proposal_boxes"]
    scores = results[0]["proposals"]["objectness_logits"]
    assert boxes.shape == (64, 4)
    assert scores.shape == (64,)
    assert bool(jnp.all(jnp.isfinite(boxes))) and bool(jnp.all(jnp.isfinite(scores)))
    print("KERNEL_OK")
</pallas_src>

<mosaic_0001>
module attributes {stable_mosaic.version = 11 : i64} {
  func.func @_fused_rpn_kernel(%arg0: i32, %arg1: memref<1x3x32x32xf32, #tpu.memory_space<vmem>>, %arg2: memref<1x96xf32, #tpu.memory_space<vmem>>, %arg3: memref<1x96xf32, #tpu.memory_space<vmem>>, %arg4: memref<3x96x512xbf16, #tpu.memory_space<vmem>>, %arg5: memref<1x512xf32, #tpu.memory_space<vmem>>, %arg6: memref<3x512x512xbf16, #tpu.memory_space<vmem>>, %arg7: memref<1x512xf32, #tpu.memory_space<vmem>>, %arg8: memref<512x512xbf16, #tpu.memory_space<vmem>>, %arg9: memref<1x512xf32, #tpu.memory_space<vmem>>, %arg10: memref<1x32x512xf32, #tpu.memory_space<vmem>>, %arg11: memref<48x96xf32, #tpu.memory_space<vmem>>, %arg12: memref<48x512xf32, #tpu.memory_space<vmem>>) attributes {dimension_semantics = [#tpu.dimension_semantics<parallel>], iteration_bounds = array<i64: 2>, scalar_prefetch = 0 : i64, scratch_operands = 2 : i64, tpu.core_type = #tpu.core_type<tc>, window_params = [{transform_indices = @transform_0, window_bounds = array<i64: 1, 3, 32, 32>}, {pipeline_mode = #tpu.pipeline_mode<synchronous>, transform_indices = @transform_1, window_bounds = array<i64: 1, 96>}, {pipeline_mode = #tpu.pipeline_mode<synchronous>, transform_indices = @transform_2, window_bounds = array<i64: 1, 96>}, {pipeline_mode = #tpu.pipeline_mode<synchronous>, transform_indices = @transform_3, window_bounds = array<i64: 3, 96, 512>}, {pipeline_mode = #tpu.pipeline_mode<synchronous>, transform_indices = @transform_4, window_bounds = array<i64: 1, 512>}, {pipeline_mode = #tpu.pipeline_mode<synchronous>, transform_indices = @transform_5, window_bounds = array<i64: 3, 512, 512>}, {pipeline_mode = #tpu.pipeline_mode<synchronous>, transform_indices = @transform_6, window_bounds = array<i64: 1, 512>}, {pipeline_mode = #tpu.pipeline_mode<synchronous>, transform_indices = @transform_7, window_bounds = array<i64: 512, 512>}, {pipeline_mode = #tpu.pipeline_mode<synchronous>, transform_indices = @transform_8, window_bounds = array<i64: 1, 512>}, {transform_indices = @transform_9, window_bounds = array<i64: 1, 32, 512>}]} {
    %cst = arith.constant 0.000000e+00 : f32
    %0 = vector.broadcast %cst : f32 to vector<8x96xf32>
    %c0 = arith.constant 0 : index
    %c0_0 = arith.constant 0 : index
    %1 = vector.load %arg11[%c0, %c0_0] : memref<48x96xf32, #tpu.memory_space<vmem>>, vector<8x96xf32>
    tpu.vector_store %arg11[%c0, %c0_0], %0 {strides = array<i32>} : memref<48x96xf32, #tpu.memory_space<vmem>>, vector<8x96xf32>,
    %cst_1 = arith.constant 0.000000e+00 : f32
    %2 = vector.broadcast %cst_1 : f32 to vector<8x96xf32>
    %c40 = arith.constant 40 : index
    %c0_2 = arith.constant 0 : index
    %3 = vector.load %arg11[%c40, %c0_2] : memref<48x96xf32, #tpu.memory_space<vmem>>, vector<8x96xf32>
    tpu.vector_store %arg11[%c40, %c0_2], %2 {strides = array<i32>} : memref<48x96xf32, #tpu.memory_space<vmem>>, vector<8x96xf32>,
    %cst_3 = arith.constant 0.000000e+00 : f32
    %4 = vector.broadcast %cst_3 : f32 to vector<8x512xf32>
    %c0_4 = arith.constant 0 : index
    %c0_5 = arith.constant 0 : index
    %5 = vector.load %arg12[%c0_4, %c0_5] : memref<48x512xf32, #tpu.memory_space<vmem>>, vector<8x512xf32>
    tpu.vector_store %arg12[%c0_4, %c0_5], %4 {strides = array<i32>} : memref<48x512xf32, #tpu.memory_space<vmem>>, vector<8x512xf32>,
    %cst_6 = arith.constant 0.000000e+00 : f32
    %6 = vector.broadcast %cst_6 : f32 to vector<8x512xf32>
    %c40_7 = arith.constant 40 : index
    %c0_8 = arith.constant 0 : index
    %7 = vector.load %arg12[%c40_7, %c0_8] : memref<48x512xf32, #tpu.memory_space<vmem>>, vector<8x512xf32>
    tpu.vector_store %arg12[%c40_7, %c0_8], %6 {strides = array<i32>} : memref<48x512xf32, #tpu.memory_space<vmem>>, vector<8x512xf32>,
    %c0_9 = arith.constant 0 : index
    %c0_10 = arith.constant 0 : index
    %c0_11 = arith.constant 0 : index
    %c0_12 = arith.constant 0 : index
    %8 = vector.load %arg1[%c0_9, %c0_10, %c0_11, %c0_12] : memref<1x3x32x32xf32, #tpu.memory_space<vmem>>, vector<1x1x32x32xf32>
    %9 = vector.shape_cast %8 : vector<1x1x32x32xf32> to vector<32x32xf32>
    %c0_13 = arith.constant 0 : index
    %c1 = arith.constant 1 : index
    %c0_14 = arith.constant 0 : index
    %c0_15 = arith.constant 0 : index
    %10 = vector.load %arg1[%c0_13, %c1, %c0_14, %c0_15] : memref<1x3x32x32xf32, #tpu.memory_space<vmem>>, vector<1x1x32x32xf32>
    %11 = vector.shape_cast %10 : vector<1x1x32x32xf32> to vector<32x32xf32>
    %c0_16 = arith.constant 0 : index
    %c2 = arith.constant 2 : index
    %c0_17 = arith.constant 0 : index
    %c0_18 = arith.constant 0 : index
    %12 = vector.load %arg1[%c0_16, %c2, %c0_17, %c0_18] : memref<1x3x32x32xf32, #tpu.memory_space<vmem>>, vector<1x1x32x32xf32>
    %13 = vector.shape_cast %12 : vector<1x1x32x32xf32> to vector<32x32xf32>
    %14 = tpu.concatenate %9, %11, %13 in 1 : vector<32x32xf32>, vector<32x32xf32>, vector<32x32xf32> -> vector<32x96xf32>
    %c0_19 = arith.constant 0 : index
    %c0_20 = arith.constant 0 : index
    %15 = vector.load %arg2[%c0_19, %c0_20] : memref<1x96xf32, #tpu.memory_space<vmem>>, vector<1x96xf32>
    %16 = vector.broadcast %15 : vector<1x96xf32> to vector<32x96xf32>
    %17 = arith.subf %14, %16 : vector<32x96xf32>
    %c0_21 = arith.constant 0 : index
    %c0_22 = arith.constant 0 : index
    %18 = vector.load %arg3[%c0_21, %c0_22] : memref<1x96xf32, #tpu.memory_space<vmem>>, vector<1x96xf32>
    %19 = vector.broadcast %18 : vector<1x96xf32> to vector<32x96xf32>
    %20 = arith.mulf %17, %19 : vector<32x96xf32>
    %c8 = arith.constant 8 : index
    %c0_23 = arith.constant 0 : index
    %21 = vector.load %arg11[%c8, %c0_23] : memref<48x96xf32, #tpu.memory_space<vmem>>, vector<32x96xf32>
    tpu.vector_store %arg11[%c8, %c0_23], %20 {strides = array<i32>} : memref<48x96xf32, #tpu.memory_space<vmem>>, vector<32x96xf32>,
    %cst_24 = arith.constant 0.000000e+00 : f32
    %22 = vector.broadcast %cst_24 : f32 to vector<32x512xf32>
    %c7 = arith.constant 7 : index
    %c0_25 = arith.constant 0 : index
    %23 = vector.load %arg11[%c7, %c0_25] : memref<48x96xf32, #tpu.memory_space<vmem>>, vector<32x96xf32>
    %24 = arith.truncf %23 : vector<32x96xf32> to vector<32x96xbf16>
    %c0_26 = arith.constant 0 : index
    %c0_27 = arith.constant 0 : index
    %c0_28 = arith.constant 0 : index
    %25 = vector.load %arg4[%c0_26, %c0_27, %c0_28] : memref<3x96x512xbf16, #tpu.memory_space<vmem>>, vector<1x96x512xbf16>
    %26 = vector.shape_cast %25 : vector<1x96x512xbf16> to vector<96x512xbf16>
    %cst_29 = arith.constant dense<0.000000e+00> : vector<32x512xf32>
    %27 = tpu.matmul %24, %26, %cst_29 {dimension_numbers = #tpu.dot_dimension_numbers<[1], [0], [0], [1], [0, 0, 1, 1], [], []>} : vector<32x96xbf16>, vector<96x512xbf16>, vector<32x512xf32> -> vector<32x512xf32>
    %28 = arith.addf %22, %27 : vector<32x512xf32>
    %c8_30 = arith.constant 8 : index
    %c0_31 = arith.constant 0 : index
    %29 = vector.load %arg11[%c8_30, %c0_31] : memref<48x96xf32, #tpu.memory_space<vmem>>, vector<32x96xf32>
    %30 = arith.truncf %29 : vector<32x96xf32> to vector<32x96xbf16>
    %c1_32 = arith.constant 1 : index
    %c0_33 = arith.constant 0 : index
    %c0_34 = arith.constant 0 : index
    %31 = vector.load %arg4[%c1_32, %c0_33, %c0_34] : memref<3x96x512xbf16, #tpu.memory_space<vmem>>, vector<1x96x512xbf16>
    %32 = vector.shape_cast %31 : vector<1x96x512xbf16> to vector<96x512xbf16>
    %cst_35 = arith.constant dense<0.000000e+00> : vector<32x512xf32>
    %33 = tpu.matmul %30, %32, %cst_35 {dimension_numbers = #tpu.dot_dimension_numbers<[1], [0], [0], [1], [0, 0, 1, 1], [], []>} : vector<32x96xbf16>, vector<96x512xbf16>, vector<32x512xf32> -> vector<32x512xf32>
    %34 = arith.addf %28, %33 : vector<32x512xf32>
    %c9 = arith.constant 9 : index
    %c0_36 = arith.constant 0 : index
    %35 = vector.load %arg11[%c9, %c0_36] : memref<48x96xf32, #tpu.memory_space<vmem>>, vector<32x96xf32>
    %36 = arith.truncf %35 : vector<32x96xf32> to vector<32x96xbf16>
    %c2_37 = arith.constant 2 : index
    %c0_38 = arith.constant 0 : index
    %c0_39 = arith.constant 0 : index
    %37 = vector.load %arg4[%c2_37, %c0_38, %c0_39] : memref<3x96x512xbf16, #tpu.memory_space<vmem>>, vector<1x96x512xbf16>
    %38 = vector.shape_cast %37 : vector<1x96x512xbf16> to vector<96x512xbf16>
    %cst_40 = arith.constant dense<0.000000e+00> : vector<32x512xf32>
    %39 = tpu.matmul %36, %38, %cst_40 {dimension_numbers = #tpu.dot_dimension_numbers<[1], [0], [0], [1], [0, 0, 1, 1], [], []>} : vector<32x96xbf16>, vector<96x512xbf16>, vector<32x512xf32> -> vector<32x512xf32>
    %40 = arith.addf %34, %39 : vector<32x512xf32>
    %c0_41 = arith.constant 0 : index
    %c0_42 = arith.constant 0 : index
    %41 = vector.load %arg5[%c0_41, %c0_42] : memref<1x512xf32, #tpu.memory_space<vmem>>, vector<1x512xf32>
    %42 = vector.broadcast %41 : vector<1x512xf32> to vector<32x512xf32>
    %43 = arith.addf %40, %42 : vector<32x512xf32>
    %cst_43 = arith.constant 0.000000e+00 : f32
    %44 = vector.broadcast %cst_43 : f32 to vector<32x512xf32>
    %45 = arith.maximumf %43, %44 : vector<32x512xf32>
    %c8_44 = arith.constant 8 : index
    %c0_45 = arith.constant 0 : index
    %46 = vector.load %arg12[%c8_44, %c0_45] : memref<48x512xf32, #tpu.memory_space<vmem>>, vector<32x512xf32>
    tpu.vector_store %arg12[%c8_44, %c0_45], %45 {strides = array<i32>} : memref<48x512xf32, #tpu.memory_space<vmem>>, vector<32x512xf32>,
    %cst_46 = arith.constant 0.000000e+00 : f32
    %47 = vector.broadcast %cst_46 : f32 to vector<32x512xf32>
    %c7_47 = arith.constant 7 : index
    %c0_48 = arith.constant 0 : index
    %48 = vector.load %arg12[%c7_47, %c0_48] : memref<48x512xf32, #tpu.memory_space<vmem>>, vector<32x512xf32>
    %49 = arith.truncf %48 : vector<32x512xf32> to vector<32x512xbf16>
    %c0_49 = arith.constant 0 : index
    %c0_50 = arith.constant 0 : index
    %c0_51 = arith.constant 0 : index
    %50 = vector.load %arg6[%c0_49, %c0_50, %c0_51] : memref<3x512x512xbf16, #tpu.memory_space<vmem>>, vector<1x512x512xbf16>
    %51 = vector.shape_cast %50 : vector<1x512x512xbf16> to vector<512x512xbf16>
    %cst_52 = arith.constant dense<0.000000e+00> : vector<32x512xf32>
    %52 = tpu.matmul %49, %51, %cst_52 {dimension_numbers = #tpu.dot_dimension_numbers<[1], [0], [0], [1], [0, 0, 1, 1], [], []>} : vector<32x512xbf16>, vector<512x512xbf16>, vector<32x512xf32> -> vector<32x512xf32>
    %53 = arith.addf %47, %52 : vector<32x512xf32>
    %c8_53 = arith.constant 8 : index
    %c0_54 = arith.constant 0 : index
    %54 = vector.load %arg12[%c8_53, %c0_54] : memref<48x512xf32, #tpu.memory_space<vmem>>, vector<32x512xf32>
    %55 = arith.truncf %54 : vector<32x512xf32> to vector<32x512xbf16>
    %c1_55 = arith.constant 1 : index
    %c0_56 = arith.constant 0 : index
    %c0_57 = arith.constant 0 : index
    %56 = vector.load %arg6[%c1_55, %c0_56, %c0_57] : memref<3x512x512xbf16, #tpu.memory_space<vmem>>, vector<1x512x512xbf16>
    %57 = vector.shape_cast %56 : vector<1x512x512xbf16> to vector<512x512xbf16>
    %cst_58 = arith.constant dense<0.000000e+00> : vector<32x512xf32>
    %58 = tpu.matmul %55, %57, %cst_58 {dimension_numbers = #tpu.dot_dimension_numbers<[1], [0], [0], [1], [0, 0, 1, 1], [], []>} : vector<32x512xbf16>, vector<512x512xbf16>, vector<32x512xf32> -> vector<32x512xf32>
    %59 = arith.addf %53, %58 : vector<32x512xf32>
    %c9_59 = arith.constant 9 : index
    %c0_60 = arith.constant 0 : index
    %60 = vector.load %arg12[%c9_59, %c0_60] : memref<48x512xf32, #tpu.memory_space<vmem>>, vector<32x512xf32>
    %61 = arith.truncf %60 : vector<32x512xf32> to vector<32x512xbf16>
    %c2_61 = arith.constant 2 : index
    %c0_62 = arith.constant 0 : index
    %c0_63 = arith.constant 0 : index
    %62 = vector.load %arg6[%c2_61, %c0_62, %c0_63] : memref<3x512x512xbf16, #tpu.memory_space<vmem>>, vector<1x512x512xbf16>
    %63 = vector.shape_cast %62 : vector<1x512x512xbf16> to vector<512x512xbf16>
    %cst_64 = arith.constant dense<0.000000e+00> : vector<32x512xf32>
    %64 = tpu.matmul %61, %63, %cst_64 {dimension_numbers = #tpu.dot_dimension_numbers<[1], [0], [0], [1], [0, 0, 1, 1], [], []>} : vector<32x512xbf16>, vector<512x512xbf16>, vector<32x512xf32> -> vector<32x512xf32>
    %65 = arith.addf %59, %64 : vector<32x512xf32>
    %c0_65 = arith.constant 0 : index
    %c0_66 = arith.constant 0 : index
    %66 = vector.load %arg7[%c0_65, %c0_66] : memref<1x512xf32, #tpu.memory_space<vmem>>, vector<1x512xf32>
    %67 = vector.broadcast %66 : vector<1x512xf32> to vector<32x512xf32>
    %68 = arith.addf %65, %67 : vector<32x512xf32>
    %cst_67 = arith.constant 0.000000e+00 : f32
    %69 = vector.broadcast %cst_67 : f32 to vector<32x512xf32>
    %70 = arith.maximumf %68, %69 : vector<32x512xf32>
    %71 = arith.truncf %70 : vector<32x512xf32> to vector<32x512xbf16>
    %c0_68 = arith.constant 0 : index
    %c0_69 = arith.constant 0 : index
    %72 = vector.load %arg8[%c0_68, %c0_69] : memref<512x512xbf16, #tpu.memory_space<vmem>>, vector<512x512xbf16>
    %cst_70 = arith.constant dense<0.000000e+00> : vector<32x512xf32>
    %73 = tpu.matmul %71, %72, %cst_70 {dimension_numbers = #tpu.dot_dimension_numbers<[1], [0], [0], [1], [0, 0, 1, 1], [], []>} : vector<32x512xbf16>, vector<512x512xbf16>, vector<32x512xf32> -> vector<32x512xf32>
    %c0_71 = arith.constant 0 : index
    %c0_72 = arith.constant 0 : index
    %74 = vector.load %arg9[%c0_71, %c0_72] : memref<1x512xf32, #tpu.memory_space<vmem>>, vector<1x512xf32>
    %75 = vector.broadcast %74 : vector<1x512xf32> to vector<32x512xf32>
    %76 = arith.addf %73, %75 : vector<32x512xf32>
    %c0_73 = arith.constant 0 : index
    %c0_74 = arith.constant 0 : index
    %c0_75 = arith.constant 0 : index
    %77 = vector.load %arg10[%c0_73, %c0_74, %c0_75] : memref<1x32x512xf32, #tpu.memory_space<vmem>>, vector<1x32x512xf32>
    %78 = vector.shape_cast %77 : vector<1x32x512xf32> to vector<32x512xf32>
    %79 = vector.shape_cast %76 : vector<32x512xf32> to vector<1x32x512xf32>
    tpu.vector_store %arg10[%c0_73, %c0_74, %c0_75], %79 {strides = array<i32>} : memref<1x32x512xf32, #tpu.memory_space<vmem>>, vector<1x32x512xf32>,
    return
  }
  func.func @transform_0(%arg0: i32) -> (i32, i32, i32, i32) {
    %c0_i32 = arith.constant 0 : i32
    %c0_i32_0 = arith.constant 0 : i32
    %c0_i32_1 = arith.constant 0 : i32
    %c0_i32_2 = arith.constant 0 : i32
    return %arg0, %c0_i32, %c0_i32_0, %c0_i32_1 : i32, i32, i32, i32
  }
  func.func @transform_1(%arg0: i32) -> (i32, i32) {
    %c0_i32 = arith.constant 0 : i32
    %c0_i32_0 = arith.constant 0 : i32
    %c0_i32_1 = arith.constant 0 : i32
    return %c0_i32, %c0_i32_0 : i32, i32
  }
  func.func @transform_2(%arg0: i32) -> (i32, i32) {
    %c0_i32 = arith.constant 0 : i32
    %c0_i32_0 = arith.constant 0 : i32
    %c0_i32_1 = arith.constant 0 : i32
    return %c0_i32, %c0_i32_0 : i32, i32
  }
  func.func @transform_3(%arg0: i32) -> (i32, i32, i32) {
    %c0_i32 = arith.constant 0 : i32
    %c0_i32_0 = arith.constant 0 : i32
    %c0_i32_1 = arith.constant 0 : i32
    %c0_i32_2 = arith.constant 0 : i32
    return %c0_i32, %c0_i32_0, %c0_i32_1 : i32, i32, i32
  }
  func.func @transform_4(%arg0: i32) -> (i32, i32) {
    %c0_i32 = arith.constant 0 : i32
    %c0_i32_0 = arith.constant 0 : i32
    %c0_i32_1 = arith.constant 0 : i32
    return %c0_i32, %c0_i32_0 : i32, i32
  }
  func.func @transform_5(%arg0: i32) -> (i32, i32, i32) {
    %c0_i32 = arith.constant 0 : i32
    %c0_i32_0 = arith.constant 0 : i32
    %c0_i32_1 = arith.constant 0 : i32
    %c0_i32_2 = arith.constant 0 : i32
    return %c0_i32, %c0_i32_0, %c0_i32_1 : i32, i32, i32
  }
  func.func @transform_6(%arg0: i32) -> (i32, i32) {
    %c0_i32 = arith.constant 0 : i32
    %c0_i32_0 = arith.constant 0 : i32
    %c0_i32_1 = arith.constant 0 : i32
    return %c0_i32, %c0_i32_0 : i32, i32
  }
  func.func @transform_7(%arg0: i32) -> (i32, i32) {
    %c0_i32 = arith.constant 0 : i32
    %c0_i32_0 = arith.constant 0 : i32
    %c0_i32_1 = arith.constant 0 : i32
    return %c0_i32, %c0_i32_0 : i32, i32
  }
  func.func @transform_8(%arg0: i32) -> (i32, i32) {
    %c0_i32 = arith.constant 0 : i32
    %c0_i32_0 = arith.constant 0 : i32
    %c0_i32_1 = arith.constant 0 : i32
    return %c0_i32, %c0_i32_0 : i32, i32
  }
  func.func @transform_9(%arg0: i32) -> (i32, i32, i32) {
    %c0_i32 = arith.constant 0 : i32
    %c0_i32_0 = arith.constant 0 : i32
    %c0_i32_1 = arith.constant 0 : i32
    return %arg0, %c0_i32, %c0_i32_0 : i32, i32, i32
  }
}

</mosaic_0001>

<llo_original>
// kernel: tile.28
$region0: #{tile.28}
  #allocation0 [shape = 's32[1]{0}', space=sflag, size = 0x4, scoped, tag = 'scoped memory for tile.28']
  %s0 = inlined_call_operand.vmem [shape: f32[16], index: 0, kind: input, shape index: {}]
  %s1 = inlined_call_operand.vmem [shape: f32[32,16], index: 1, kind: output, shape index: {}]
  // Predicated region
  $region2: #{tile.28} parent=0 // pred_check
    _
  $region3: #{tile.28} parent=0 // pred_check_branch
    %3 = sbr.rel (0) target = $region5
  $region4: #{tile.28} parent=0 // pred_region
    _
  $region5: #{tile.28} parent=0 // pred_fallthru
    _
  %v4 = vld [vmem:[%s0] ss:$0 sm:$0xff]
  %5 = vst [vmem:[%s1] sm:$0xff] %v4
  %s6 = scalar_lea.vmem %s1, 8
  %7 = vst [vmem:[%s6] sm:$0xff] %v4
  %s8 = scalar_lea.vmem %s1, 16
  %9 = vst [vmem:[%s8] sm:$0xff] %v4
  %s10 = scalar_lea.vmem %s1, 24
  %11 = vst [vmem:[%s10] sm:$0xff] %v4

// kernel: tile.29
$region0: #{tile.29}
  %s0 = inlined_call_operand.vmem [shape: f32[32,16], index: 0, kind: input, shape index: {}]
  %s1 = inlined_call_operand.vmem [shape: f32[1,512], index: 1, kind: output, shape index: {}]
  $region1: #{tile.29} parent=0
    #allocation0 [shape = 'u8[16384]{0}', space=vmem, size = 0x4000, scoped, tag = 'scoped mem for output reshape']
    %v2 = vld [vmem:[%s0] ss:$8 sm:$0xf]
    %vm3 = vcmask 130048
    %4 = vst.msk [vmem:[#allocation0] ss:$8 sm:$0xf] %vm3, %v2
    %s5 = scalar_lea.vmem %s0, 7
    %v6 = vld [vmem:[%s5] ss:$8 sm:$0xf]
    %7 = vrot.lane.b32.xlu0 %v6, 112
    %v8 = vpop.permute.xlu0 %7
    %vm9 = vcmask 1048448
    %10 = vst.msk [vmem:[#allocation0] ss:$8 sm:$0xf] %vm9, %v8
    %s11 = scalar_lea.vmem %s0, 6
    %v12 = vld [vmem:[%s11] ss:$8 sm:$0xf]
    %13 = vrot.lane.b32.xlu0 %v12, 96
    %v14 = vpop.permute.xlu0 %13
    %vm15 = vcmask 917248
    %16 = vst.msk [vmem:[#allocation0] ss:$8 sm:$0xf] %vm15, %v14
    %s17 = scalar_lea.vmem %s0, 5
    %v18 = vld [vmem:[%s17] ss:$8 sm:$0xf]
    %19 = vrot.lane.b32.xlu0 %v18, 80
    %v20 = vpop.permute.xlu0 %19
    %vm21 = vcmask 786048
    %22 = vst.msk [vmem:[#allocation0] ss:$8 sm:$0xf] %vm21, %v20
    %s23 = scalar_lea.vmem %s0, 4
    %v24 = vld [vmem:[%s23] ss:$8 sm:$0xf]
    %25 = vrot.lane.b32.xlu0 %v24, 64
    %v26 = vpop.permute.xlu0 %25
    %vm27 = vcmask 654848
    %28 = vst.msk [vmem:[#allocation0] ss:$8 sm:$0xf] %vm27, %v26
    %s29 = scalar_lea.vmem %s0, 3
    %v30 = vld [vmem:[%s29] ss:$8 sm:$0xf]
    %31 = vrot.lane.b32.xlu0 %v30, 48
    %v32 = vpop.permute.xlu0 %31
    %vm33 = vcmask 523648
    %34 = vst.msk [vmem:[#allocation0] ss:$8 sm:$0xf] %vm33, %v32
    %s35 = scalar_lea.vmem %s0, 2
    %v36 = vld [vmem:[%s35] ss:$8 sm:$0xf]
    %37 = vrot.lane.b32.xlu0 %v36, 32
    %v38 = vpop.permute.xlu0 %37
    %vm39 = vcmask 392448
    %40 = vst.msk [vmem:[#allocation0] ss:$8 sm:$0xf] %vm39, %v38
    %s41 = scalar_lea.vmem %s0, 1
    %v42 = vld [vmem:[%s41] ss:$8 sm:$0xf]
    %43 = vrot.lane.b32.xlu0 %v42, 16
    %v44 = vpop.permute.xlu0 %43
    %vm45 = vcmask 261248
    %46 = vst.msk [vmem:[#allocation0] ss:$8 sm:$0xf] %vm45, %v44
    %s48 = sshllo.u32 0, 1
    %v50 = vld [vmem:[#allocation0] sm:%s48]
    %s51 = sshllo.u32 0, 1
    %52 = vst [vmem:[%s1] sm:%s51] %v50
    %s53 = scalar_lea.vmem [#allocation0], 8
    %v54 = vld [vmem:[%s53] sm:%s48]
    %s55 = sshllo.u32 0, 1
    %s56 = scalar_lea.vmem %s1, 1
    %57 = vst [vmem:[%s56] sm:%s55] %v54
    %s58 = scalar_lea.vmem [#allocation0], 16
    %v59 = vld [vmem:[%s58] sm:%s48]
    %s60 = sshllo.u32 0, 1
    %s61 = smul.addr 1, 2
    %s62 = scalar_lea.vmem %s1, %s61
    %63 = vst [vmem:[%s62] sm:%s60] %v59
    %s64 = scalar_lea.vmem [#allocation0], 24
    %v65 = vld [vmem:[%s64] sm:%s48]
    %s66 = sshllo.u32 0, 1
    %s67 = smul.addr 1, 3
    %s68 = scalar_lea.vmem %s1, %s67
    %69 = vst [vmem:[%s68] sm:%s66] %v65

// kernel: proposal_network_forward.1
$region0: #{proposal_network_forward.1}
  #allocation0 [shape = 'u32[]', space=smem, size = 0x4, offset = 0x4, fixed_abs, tag = 'smem constant byte address 0x4 - core index']
  #allocation1 [shape = 'u32[144,128]{1,0:T(1,128)}', space=vmem, size = 0x12000, scoped, tag = 'internal scratch']
  #allocation2 [shape = 'f32[48,96]{1,0:T(8,128)}', space=vmem, size = 0x6000, scoped, tag = 'scratch operand']
  #allocation3 [shape = 'f32[48,512]{1,0:T(8,128)}', space=vmem, size = 0x18000, scoped, tag = 'scratch operand']
  %s0 = inlined_call_operand.vmem [shape: f32[2,3,32,32], index: 0, kind: input, shape index: {}]
  %s1 = inlined_call_operand.vmem [shape: f32[1,96], index: 1, kind: input, shape index: {}]
  %s2 = inlined_call_operand.vmem [shape: f32[1,96], index: 2, kind: input, shape index: {}]
  %s3 = inlined_call_operand.vmem [shape: bf16[3,96,512], index: 3, kind: input, shape index: {}]
  %s4 = inlined_call_operand.vmem [shape: f32[1,512], index: 4, kind: input, shape index: {}]
  %s5 = inlined_call_operand.vmem [shape: bf16[3,512,512], index: 5, kind: input, shape index: {}]
  %s6 = inlined_call_operand.vmem [shape: f32[1,512], index: 6, kind: input, shape index: {}]
  %s7 = inlined_call_operand.vmem [shape: bf16[512,512], index: 7, kind: input, shape index: {}]
  %s8 = inlined_call_operand.vmem [shape: f32[1,512], index: 8, kind: input, shape index: {}]
  %s9 = inlined_call_operand.vmem [shape: f32[2,32,512], index: 9, kind: output, shape index: {}]
  %s10 = sld [smem:[#allocation0]]
  $region69: #{proposal_network_forward.1} parent=0
    _
  %s12 = ssub.s32 1, %s10
  %s13 = scalar_select 0, %s12, %s10
  loop: start=0, step=1, limit=4
  $region2: #{proposal_network_forward.1} parent=0 // loop_pre_header
    _
  $region3: #{proposal_network_forward.1} parent=0 // loop_header
    %s15 = sphi 0, %s19
    %p16 = scmp.ge.s32.totalorder %s15, 4
    %s25 = sphi 0, %s27
    %s28 = sphi 0, %s25
    %s29 = sphi 0, %s28
    %s45 = sphi 0, %s29
    %s49 = sphi 0, %s49
    %s51 = sphi 0, %s49
    %s52 = sphi 0, %s51
    %s66 = sphi 0, %s52
    %s70 = sphi 0, %s70
    %s72 = sphi 0, %s70
    %s73 = sphi 0, %s72
    %s87 = sphi 0, %s73
    %s91 = sphi 0, %s91
    %s93 = sphi 0, %s91
    %s94 = sphi 0, %s93
    %s108 = sphi 0, %s94
    %s112 = sphi 0, %s112
    %s114 = sphi 0, %s112
    %s115 = sphi 0, %s114
    %s129 = sphi 0, %s115
    %s133 = sphi 0, %s133
    %s135 = sphi 0, %s133
    %s136 = sphi 0, %s135
    %s150 = sphi 0, %s136
    %s154 = sphi 0, %s154
    %s156 = sphi 0, %s154
    %s157 = sphi 0, %s156
    %s171 = sphi 0, %s157
    %s175 = sphi 0, %s175
    %s177 = sphi 0, %s175
    %s178 = sphi 0, %s177
    %s192 = sphi 0, %s178
    %s196 = sphi 0, %s196
    %s198 = sphi 0, %s196
    %s199 = sphi 0, %s198
    %s213 = sphi 0, %s199
    %s219 = sphi 0, %s221
    %s222 = sphi 0, %s219
    %s223 = sphi 0, %s222
    %s239 = sphi 0, %s223
  $region4: #{proposal_network_forward.1} parent=0 // loop_header_branch
    %18 = sbr.rel (%p16) target = $region8
  $region5: #{proposal_network_forward.1} parent=0 // loop_body
    %s20 = ssub.s32 %s15, 1
    %s21 = ssub.s32 %s15, 2
    %s22 = sadd.s32 %s15, 1
    %s23 = ssub.s32 %s15, %s22
    %p24 = scmp.eq.s32.totalorder %s23, 0
    %s26 = sadd.s32 %s25, 1
    %s27 = scalar_select %p24, %s25, %s26
    %p30 = pneg %p24
    %p31 = scmp.eq.s32.totalorder %s15, 1
    %p32 = por %p30, %p31
    %p33 = scmp.ne.s32.totalorder %s25, %s28
    %p34 = scmp.eq.s32.totalorder %s15, 0
    %p35 = por %p33, %p34
    %p36 = scmp.ne.s32.totalorder %s25, %s28
    %p37 = scmp.eq.s32.totalorder %s20, 1
    %p38 = por %p36, %p37
    %p39 = scmp.ne.s32.totalorder %s28, %s29
    %p40 = scmp.eq.s32.totalorder %s20, 0
    %p41 = por %p39, %p40
    %p42 = scmp.ne.s32.totalorder %s28, %s29
    %p43 = scmp.eq.s32.totalorder %s21, 1
    %p44 = por %p42, %p43
    %p46 = scmp.ne.s32.totalorder %s29, %s45
    %p47 = scmp.eq.s32.totalorder %s21, 0
    %p48 = por %p46, %p47
    %s50 = sadd.s32 %s49, 1
    %p53 = scmp.eq.s32.totalorder %s15, 1
    %p54 = scmp.ne.s32.totalorder %s49, %s51
    %p55 = scmp.eq.s32.totalorder %s15, 0
    %p56 = por %p54, %p55
    %p57 = scmp.ne.s32.totalorder %s49, %s51
    %p58 = scmp.eq.s32.totalorder %s20, 1
    %p59 = por %p57, %p58
    %p60 = scmp.ne.s32.totalorder %s51, %s52
    %p61 = scmp.eq.s32.totalorder %s20, 0
    %p62 = por %p60, %p61
    %p63 = scmp.ne.s32.totalorder %s51, %s52
    %p64 = scmp.eq.s32.totalorder %s21, 1
    %p65 = por %p63, %p64
    %p67 = scmp.ne.s32.totalorder %s52, %s66
    %p68 = scmp.eq.s32.totalorder %s21, 0
    %p69 = por %p67, %p68
    %s71 = sadd.s32 %s70, 1
    %p74 = scmp.eq.s32.totalorder %s15, 1
    %p75 = scmp.ne.s32.totalorder %s70, %s72
    %p76 = scmp.eq.s32.totalorder %s15, 0
    %p77 = por %p75, %p76
    %p78 = scmp.ne.s32.totalorder %s70, %s72
    %p79 = scmp.eq.s32.totalorder %s20, 1
    %p80 = por %p78, %p79
    %p81 = scmp.ne.s32.totalorder %s72, %s73
    %p82 = scmp.eq.s32.totalorder %s20, 0
    %p83 = por %p81, %p82
    %p84 = scmp.ne.s32.totalorder %s72, %s73
    %p85 = scmp.eq.s32.totalorder %s21, 1
    %p86 = por %p84, %p85
    %p88 = scmp.ne.s32.totalorder %s73, %s87
    %p89 = scmp.eq.s32.totalorder %s21, 0
    %p90 = por %p88, %p89
    %s92 = sadd.s32 %s91, 1
    %p95 = scmp.eq.s32.totalorder %s15, 1
    %p96 = scmp.ne.s32.totalorder %s91, %s93
    %p97 = scmp.eq.s32.totalorder %s15, 0
    %p98 = por %p96, %p97
    %p99 = scmp.ne.s32.totalorder %s91, %s93
    %p100 = scmp.eq.s32.totalorder %s20, 1
    %p101 = por %p99, %p100
    %p102 = scmp.ne.s32.totalorder %s93, %s94
    %p103 = scmp.eq.s32.totalorder %s20, 0
    %p104 = por %p102, %p103
    %p105 = scmp.ne.s32.totalorder %s93, %s94
    %p106 = scmp.eq.s32.totalorder %s21, 1
    %p107 = por %p105, %p106
    %p109 = scmp.ne.s32.totalorder %s94, %s108
    %p110 = scmp.eq.s32.totalorder %s21, 0
    %p111 = por %p109, %p110
    %s113 = sadd.s32 %s112, 1
    %p116 = scmp.eq.s32.totalorder %s15, 1
    %p117 = scmp.ne.s32.totalorder %s112, %s114
    %p118 = scmp.eq.s32.totalorder %s15, 0
    %p119 = por %p117, %p118
    %p120 = scmp.ne.s32.totalorder %s112, %s114
    %p121 = scmp.eq.s32.totalorder %s20, 1
    %p122 = por %p120, %p121
    %p123 = scmp.ne.s32.totalorder %s114, %s115
    %p124 = scmp.eq.s32.totalorder %s20, 0
    %p125 = por %p123, %p124
    %p126 = scmp.ne.s32.totalorder %s114, %s115
    %p127 = scmp.eq.s32.totalorder %s21, 1
    %p128 = por %p126, %p127
    %p130 = scmp.ne.s32.totalorder %s115, %s129
    %p131 = scmp.eq.s32.totalorder %s21, 0
    %p132 = por %p130, %p131
    %s134 = sadd.s32 %s133, 1
    %p137 = scmp.eq.s32.totalorder %s15, 1
    %p138 = scmp.ne.s32.totalorder %s133, %s135
    %p139 = scmp.eq.s32.totalorder %s15, 0
    %p140 = por %p138, %p139
    %p141 = scmp.ne.s32.totalorder %s133, %s135
    %p142 = scmp.eq.s32.totalorder %s20, 1
    %p143 = por %p141, %p142
    %p144 = scmp.ne.s32.totalorder %s135, %s136
    %p145 = scmp.eq.s32.totalorder %s20, 0
    %p146 = por %p144, %p145
    %p147 = scmp.ne.s32.totalorder %s135, %s136
    %p148 = scmp.eq.s32.totalorder %s21, 1
    %p149 = por %p147, %p148
    %p151 = scmp.ne.s32.totalorder %s136, %s150
    %p152 = scmp.eq.s32.totalorder %s21, 0
    %p153 = por %p151, %p152
    %s155 = sadd.s32 %s154, 1
    %p158 = scmp.eq.s32.totalorder %s15, 1
    %p159 = scmp.ne.s32.totalorder %s154, %s156
    %p160 = scmp.eq.s32.totalorder %s15, 0
    %p161 = por %p159, %p160
    %p162 = scmp.ne.s32.totalorder %s154, %s156
    %p163 = scmp.eq.s32.totalorder %s20, 1
    %p164 = por %p162, %p163
    %p165 = scmp.ne.s32.totalorder %s156, %s157
    %p166 = scmp.eq.s32.totalorder %s20, 0
    %p167 = por %p165, %p166
    %p168 = scmp.ne.s32.totalorder %s156, %s157
    %p169 = scmp.eq.s32.totalorder %s21, 1
    %p170 = por %p168, %p169
    %p172 = scmp.ne.s32.totalorder %s157, %s171
    %p173 = scmp.eq.s32.totalorder %s21, 0
    %p174 = por %p172, %p173
    %s176 = sadd.s32 %s175, 1
    %p179 = scmp.eq.s32.totalorder %s15, 1
    %p180 = scmp.ne.s32.totalorder %s175, %s177
    %p181 = scmp.eq.s32.totalorder %s15, 0
    %p182 = por %p180, %p181
    %p183 = scmp.ne.s32.totalorder %s175, %s177
    %p184 = scmp.eq.s32.totalorder %s20, 1
    %p185 = por %p183, %p184
    %p186 = scmp.ne.s32.totalorder %s177, %s178
    %p187 = scmp.eq.s32.totalorder %s20, 0
    %p188 = por %p186, %p187
    %p189 = scmp.ne.s32.totalorder %s177, %s178
    %p190 = scmp.eq.s32.totalorder %s21, 1
    %p191 = por %p189, %p190
    %p193 = scmp.ne.s32.totalorder %s178, %s192
    %p194 = scmp.eq.s32.totalorder %s21, 0
    %p195 = por %p193, %p194
    %s197 = sadd.s32 %s196, 1
    %p200 = scmp.eq.s32.totalorder %s15, 1
    %p201 = scmp.ne.s32.totalorder %s196, %s198
    %p202 = scmp.eq.s32.totalorder %s15, 0
    %p203 = por %p201, %p202
    %p204 = scmp.ne.s32.totalorder %s196, %s198
    %p205 = scmp.eq.s32.totalorder %s20, 1
    %p206 = por %p204, %p205
    %p207 = scmp.ne.s32.totalorder %s198, %s199
    %p208 = scmp.eq.s32.totalorder %s20, 0
    %p209 = por %p207, %p208
    %p210 = scmp.ne.s32.totalorder %s198, %s199
    %p211 = scmp.eq.s32.totalorder %s21, 1
    %p212 = por %p210, %p211
    %p214 = scmp.ne.s32.totalorder %s199, %s213
    %p215 = scmp.eq.s32.totalorder %s21, 0
    %p216 = por %p214, %p215
    %s217 = ssub.s32 %s15, %s22
    %p218 = scmp.eq.s32.totalorder %s217, 0
    %s220 = sadd.s32 %s219, 1
    %s221 = scalar_select %p218, %s219, %s220
    %p224 = pneg %p218
    %p225 = scmp.eq.s32.totalorder %s15, 1
    %p226 = por %p224, %p225
    %p227 = scmp.ne.s32.totalorder %s219, %s222
    %p228 = scmp.eq.s32.totalorder %s15, 0
    %p229 = por %p227, %p228
    %p230 = scmp.ne.s32.totalorder %s219, %s222
    %p231 = scmp.eq.s32.totalorder %s20, 1
    %p232 = por %p230, %p231
    %p233 = scmp.ne.s32.totalorder %s222, %s223
    %p234 = scmp.eq.s32.totalorder %s20, 0
    %p235 = por %p233, %p234
    %p236 = scmp.ne.s32.totalorder %s222, %s223
    %p237 = scmp.eq.s32.totalorder %s21, 1
    %p238 = por %p236, %p237
    %p240 = scmp.ne.s32.totalorder %s223, %s239
    %p241 = scmp.eq.s32.totalorder %s21, 0
    %p242 = por %p240, %p241
    %p243 = scmp.le.s32.totalorder 1, %s15
    %p244 = scmp.lt.s32.totalorder %s15, 3
    %p245 = pnand %p243, %p244
    %p246 = pneg %p245
    // Predicated region
    $region9: #{proposal_network_forward.1} parent=5 // pred_check
      _
    $region10: #{proposal_network_forward.1} parent=5 // pred_check_branch
      %248 = sbr.rel (%p245) target = $region12
    $region11: #{proposal_network_forward.1} parent=5 // pred_region
      %s249 = ssub.s32 %s15, 1
      // Predicated region
      $region13: #{proposal_network_forward.1} parent=11 // pred_check
        %p250 = pneg %p62
      $region14: #{proposal_network_forward.1} parent=11 // pred_check_branch
        %252 = sbr.rel (%p250) target = $region16
      $region15: #{proposal_network_forward.1} parent=11 // pred_region
        _
      $region16: #{proposal_network_forward.1} parent=11 // pred_fallthru
        _
      // Predicated region
      $region17: #{proposal_network_forward.1} parent=11 // pred_check
        %p253 = pneg %p83
      $region18: #{proposal_network_forward.1} parent=11 // pred_check_branch
        %255 = sbr.rel (%p253) target = $region20
      $region19: #{proposal_network_forward.1} parent=11 // pred_region
        _
      $region20: #{proposal_network_forward.1} parent=11 // pred_fallthru
        _
      // Predicated region
      $region21: #{proposal_network_forward.1} parent=11 // pred_check
        %p256 = pneg %p104
      $region22: #{proposal_network_forward.1} parent=11 // pred_check_branch
        %258 = sbr.rel (%p256) target = $region24
      $region23: #{proposal_network_forward.1} parent=11 // pred_region
        _
      $region24: #{proposal_network_forward.1} parent=11 // pred_fallthru
        _
      // Predicated region
      $region25: #{proposal_network_forward.1} parent=11 // pred_check
        %p259 = pneg %p125
      $region26: #{proposal_network_forward.1} parent=11 // pred_check_branch
        %261 = sbr.rel (%p259) target = $region28
      $region27: #{proposal_network_forward.1} parent=11 // pred_region
        _
      $region28: #{proposal_network_forward.1} parent=11 // pred_fallthru
        _
      // Predicated region
      $region29: #{proposal_network_forward.1} parent=11 // pred_check
        %p262 = pneg %p146
      $region30: #{proposal_network_forward.1} parent=11 // pred_check_branch
        %264 = sbr.rel (%p262) target = $region32
      $region31: #{proposal_network_forward.1} parent=11 // pred_region
        _
      $region32: #{proposal_network_forward.1} parent=11 // pred_fallthru
        _
      // Predicated region
      $region33: #{proposal_network_forward.1} parent=11 // pred_check
        %p265 = pneg %p167
      $region34: #{proposal_network_forward.1} parent=11 // pred_check_branch
        %267 = sbr.rel (%p265) target = $region36
      $region35: #{proposal_network_forward.1} parent=11 // pred_region
        _
      $region36: #{proposal_network_forward.1} parent=11 // pred_fallthru
        _
      // Predicated region
      $region37: #{proposal_network_forward.1} parent=11 // pred_check
        %p268 = pneg %p188
      $region38: #{proposal_network_forward.1} parent=11 // pred_check_branch
        %270 = sbr.rel (%p268) target = $region40
      $region39: #{proposal_network_forward.1} parent=11 // pred_region
        _
      $region40: #{proposal_network_forward.1} parent=11 // pred_fallthru
        _
      // Predicated region
      $region41: #{proposal_network_forward.1} parent=11 // pred_check
        %p271 = pneg %p209
      $region42: #{proposal_network_forward.1} parent=11 // pred_check_branch
        %273 = sbr.rel (%p271) target = $region44
      $region43: #{proposal_network_forward.1} parent=11 // pred_region
        _
      $region44: #{proposal_network_forward.1} parent=11 // pred_fallthru
        _
    $region12: #{proposal_network_forward.1} parent=5 // pred_fallthru
      _
    %p274 = scmp.lt.s32.totalorder %s15, 2
    // Predicated region
    $region45: #{proposal_network_forward.1} parent=5 // pred_check
      %p275 = pneg %p274
    $region46: #{proposal_network_forward.1} parent=5 // pred_check_branch
      %277 = sbr.rel (%p275) target = $region48
    $region47: #{proposal_network_forward.1} parent=5 // pred_region
      // Predicated region
      $region49: #{proposal_network_forward.1} parent=47 // pred_check
        %p278 = pneg %p35
      $region50: #{proposal_network_forward.1} parent=47 // pred_check_branch
        %280 = sbr.rel (%p278) target = $region52
      $region51: #{proposal_network_forward.1} parent=47 // pred_region
        %p281 = scmp.lt.s32.totalorder %s15, 1
        %s282 = scalar_select %p281, %s15, 1
        %s283 = smul.addr %s282, 12
        %s284 = smul.addr %s283, 8
        %s285 = scalar_lea.vmem %s0, %s284
      $region52: #{proposal_network_forward.1} parent=47 // pred_fallthru
        _
    $region48: #{proposal_network_forward.1} parent=5 // pred_fallthru
      _
    %p286 = scmp.le.s32.totalorder 1, %s15
    %p287 = scmp.lt.s32.totalorder %s15, 3
    %p288 = pnand %p286, %p287
    %p289 = pneg %p288
    // Predicated region
    $region53: #{proposal_network_forward.1} parent=5 // pred_check
      _
    $region54: #{proposal_network_forward.1} parent=5 // pred_check_branch
      %291 = sbr.rel (%p288) target = $region56
    $region55: #{proposal_network_forward.1} parent=5 // pred_region
      %s292 = ssub.s32 %s15, 1
      %p293 = scmp.lt.s32.totalorder %s20, 1
      %s294 = scalar_select %p293, %s20, 1
      %s295 = smul.addr %s294, 12
      %s296 = smul.addr %s295, 8
      %s297 = scalar_lea.vmem %s0, %s296
      %p298 = pneg %p41
      %p299 = pneg %p38
      %p300 = pneg %p62
      %p301 = pneg %p59
      %p302 = pneg %p83
      %p303 = pneg %p80
      %p304 = pneg %p104
      %p305 = pneg %p101
      %p306 = pneg %p125
      %p307 = pneg %p122
      %p308 = pneg %p146
      %p309 = pneg %p143
      %p310 = pneg %p167
      %p311 = pneg %p164
      %p312 = pneg %p188
      %p313 = pneg %p185
      %p314 = pneg %p209
      %p315 = pneg %p206
      %p316 = pneg %p235
      %p317 = pneg %p232
      %p318 = scmp.lt.s32.totalorder %s20, 1
      %s319 = scalar_select %p318, %s20, 1
      %s320 = smul.addr %s319, 16
      %s321 = smul.addr %s320, 8
      %s322 = scalar_lea.vmem %s9, %s321
      %p323 = scmp.lt.s32.totalorder %s20, 1
      %s324 = scalar_select %p323, %s20, 1
      %s325 = smul.addr %s324, 12
      %s326 = smul.addr %s325, 8
      %s327 = scalar_lea.vmem %s0, %s326
      %p328 = scmp.lt.s32.totalorder %s20, 1
      %s329 = scalar_select %p328, %s20, 1
      %s330 = smul.addr %s329, 16
      %s331 = smul.addr %s330, 8
      %s332 = scalar_lea.vmem %s9, %s331
      %vm334 = vcmask 785408
      %335 = vst.msk [vmem:[#allocation2] sm:$0xff] %vm334, 0.0
      %336 = vst.msk [vmem:[#allocation2 + $0x28] sm:$0xff] %vm334, 0.0
      %337 = vst [vmem:[#allocation3] sm:$0xff] 0.0
      %338 = vst [vmem:[#allocation3 + $0x8] sm:$0xff] 0.0
      %339 = vst [vmem:[#allocation3 + $0x10] sm:$0xff] 0.0
      %340 = vst [vmem:[#allocation3 + $0x18] sm:$0xff] 0.0
      %341 = vst [vmem:[#allocation3 + $0xa0] sm:$0xff] 0.0
      %342 = vst [vmem:[#allocation3 + $0xa8] sm:$0xff] 0.0
      %343 = vst [vmem:[#allocation3 + $0xb0] sm:$0xff] 0.0
      %344 = vst [vmem:[#allocation3 + $0xb8] sm:$0xff] 0.0
      %v345 = vld [vmem:[%s327] sm:$0xff]
      %v346 = vld [vmem:[%s327 + $0x8] sm:$0xff]
      %v347 = vld [vmem:[%s327 + $0x10] sm:$0xff]
      %v348 = vld [vmem:[%s327 + $0x18] sm:$0xff]
      %s349 = scalar_lea.vmem %s327, 32
      %v350 = vld [vmem:[%s349] sm:$0xff]
      %v351 = vld [vmem:[%s349 + $0x8] sm:$0xff]
      %v352 = vld [vmem:[%s349 + $0x10] sm:$0xff]
      %v353 = vld [vmem:[%s349 + $0x18] sm:$0xff]
      %s354 = scalar_lea.vmem %s327, 64
      %v355 = vld [vmem:[%s354] sm:$0xff]
      %v356 = vld [vmem:[%s354 + $0x8] sm:$0xff]
      %v357 = vld [vmem:[%s354 + $0x10] sm:$0xff]
      %v358 = vld [vmem:[%s354 + $0x18] sm:$0xff]
      %363 = vrot.lane.b32.xlu0 %v350, 32
      %v364 = vpop.permute.xlu0 %363
      %365 = vrot.lane.b32.xlu0 %v351, 32
      %v366 = vpop.permute.xlu0 %365
      %367 = vrot.lane.b32.xlu0 %v352, 32
      %v368 = vpop.permute.xlu0 %367
      %369 = vrot.lane.b32.xlu0 %v353, 32
      %v370 = vpop.permute.xlu0 %369
      %379 = vrot.lane.b32.xlu0 %v355, 64
      %v380 = vpop.permute.xlu0 %379
      %381 = vrot.lane.b32.xlu0 %v356, 64
      %v382 = vpop.permute.xlu0 %381
      %383 = vrot.lane.b32.xlu0 %v357, 64
      %v384 = vpop.permute.xlu0 %383
      %385 = vrot.lane.b32.xlu0 %v358, 64
      %v386 = vpop.permute.xlu0 %385
      %vm391 = vcmask 261120
      %v392 = vsel %vm391, %v345, %v364
      %v393 = vsel %vm391, %v346, %v366
      %v394 = vsel %vm391, %v347, %v368
      %v395 = vsel %vm391, %v348, %v370
      %vm396 = vcmask 523264
      %v397 = vsel %vm396, %v392, %v380
      %v398 = vsel %vm396, %v393, %v382
      %v399 = vsel %vm396, %v394, %v384
      %v400 = vsel %vm396, %v395, %v386
      %v401 = vld [vmem:[%s1] sm:$0x1]
      %v403 = vlaneseq
      %v404 = vshrl.u32 %v403, 7
      %v405 = vsub.s32 0, %v404
      %v406 = vrot.slane %v401, %v405
      %v408 = vsub.f32 %v397, %v406
      %v409 = vsub.f32 %v398, %v406
      %v410 = vsub.f32 %v399, %v406
      %v411 = vsub.f32 %v400, %v406
      %v412 = vld [vmem:[%s2] sm:$0x1]
      %v414 = vlaneseq
      %v415 = vshrl.u32 %v414, 7
      %v416 = vsub.s32 0, %v415
      %v417 = vrot.slane %v412, %v416
      %v419 = vmul.f32 %v408, %v417
      %v420 = vmul.f32 %v409, %v417
      %v421 = vmul.f32 %v410, %v417
      %v422 = vmul.f32 %v411, %v417
      %423 = vst.msk [vmem:[#allocation2 + $0x8] sm:$0xff] %vm334, %v419
      %424 = vst.msk [vmem:[#allocation2 + $0x10] sm:$0xff] %vm334, %v420
      %425 = vst.msk [vmem:[#allocation2 + $0x18] sm:$0xff] %vm334, %v421
      %426 = vst.msk [vmem:[#allocation2 + $0x20] sm:$0xff] %vm334, %v422
      %v427 = vld [vmem:[#allocation2 + $0x7] sm:$0xff]
      %v428 = vld [vmem:[#allocation2 + $0xf] sm:$0xff]
      %v429 = vld [vmem:[#allocation2 + $0x17] sm:$0xff]
      %v430 = vld [vmem:[#allocation2 + $0x1f] sm:$0xff]
      %v431 = vpack.c.bf16 %v428, %v427
      %v432 = vpack.c.bf16 %v430, %v429
      %v433 = vld [vmem:[%s3] sm:$0xff]
      %v434 = vld [vmem:[%s3 + $0x8] sm:$0xff]
      %v435 = vld [vmem:[%s3 + $0x10] sm:$0xff]
      %v436 = vld [vmem:[%s3 + $0x18] sm:$0xff]
      %v437 = vld [vmem:[%s3 + $0x20] sm:$0xff]
      %v438 = vld [vmem:[%s3 + $0x28] sm:$0xff]
      %v439 = vld [vmem:[%s3 + $0x30] sm:$0xff]
      %v440 = vld [vmem:[%s3 + $0x38] sm:$0xff]
      %v441 = vld [vmem:[%s3 + $0x40] sm:$0xff]
      %v442 = vld [vmem:[%s3 + $0x48] sm:$0xff]
      %v443 = vld [vmem:[%s3 + $0x50] sm:$0xff]
      %v444 = vld [vmem:[%s3 + $0x58] sm:$0xff]
      %v445 = vld [vmem:[%s3 + $0x60] sm:$0xff]
      %v446 = vld [vmem:[%s3 + $0x68] sm:$0xff]
      %v447 = vld [vmem:[%s3 + $0x70] sm:$0xff]
      %v448 = vld [vmem:[%s3 + $0x78] sm:$0xff]
      %v449 = vld [vmem:[%s3 + $0x80] sm:$0xff]
      %v450 = vld [vmem:[%s3 + $0x88] sm:$0xff]
      %v451 = vld [vmem:[%s3 + $0x90] sm:$0xff]
      %v452 = vld [vmem:[%s3 + $0x98] sm:$0xff]
      %v453 = vld [vmem:[%s3 + $0xa0] sm:$0xff]
      %v454 = vld [vmem:[%s3 + $0xa8] sm:$0xff]
      %v455 = vld [vmem:[%s3 + $0xb0] sm:$0xff]
      %v456 = vld [vmem:[%s3 + $0xb8] sm:$0xff]
      %v457 = vld [vmem:[#allocation2 + $0x8] sm:$0xff]
      %v458 = vld [vmem:[#allocation2 + $0x10] sm:$0xff]
      %v459 = vld [vmem:[#allocation2 + $0x18] sm:$0xff]
      %v460 = vld [vmem:[#allocation2 + $0x20] sm:$0xff]
      %v461 = vpack.c.bf16 %v458, %v457
      %v462 = vpack.c.bf16 %v460, %v459
      %s463 = scalar_lea.vmem %s3, 192
      %v464 = vld [vmem:[%s463] sm:$0xff]
      %v465 = vld [vmem:[%s463 + $0x8] sm:$0xff]
      %v466 = vld [vmem:[%s463 + $0x10] sm:$0xff]
      %v467 = vld [vmem:[%s463 + $0x18] sm:$0xff]
      %v468 = vld [vmem:[%s463 + $0x20] sm:$0xff]
      %v469 = vld [vmem:[%s463 + $0x28] sm:$0xff]
      %v470 = vld [vmem:[%s463 + $0x30] sm:$0xff]
      %v471 = vld [vmem:[%s463 + $0x38] sm:$0xff]
      %v472 = vld [vmem:[%s463 + $0x40] sm:$0xff]
      %v473 = vld [vmem:[%s463 + $0x48] sm:$0xff]
      %v474 = vld [vmem:[%s463 + $0x50] sm:$0xff]
      %v475 = vld [vmem:[%s463 + $0x58] sm:$0xff]
      %v476 = vld [vmem:[%s463 + $0x60] sm:$0xff]
      %v477 = vld [vmem:[%s463 + $0x68] sm:$0xff]
      %v478 = vld [vmem:[%s463 + $0x70] sm:$0xff]
      %v479 = vld [vmem:[%s463 + $0x78] sm:$0xff]
      %v480 = vld [vmem:[%s463 + $0x80] sm:$0xff]
      %v481 = vld [vmem:[%s463 + $0x88] sm:$0xff]
      %v482 = vld [vmem:[%s463 + $0x90] sm:$0xff]
      %v483 = vld [vmem:[%s463 + $0x98] sm:$0xff]
      %v484 = vld [vmem:[%s463 + $0xa0] sm:$0xff]
      %v485 = vld [vmem:[%s463 + $0xa8] sm:$0xff]
      %v486 = vld [vmem:[%s463 + $0xb0] sm:$0xff]
      %v487 = vld [vmem:[%s463 + $0xb8] sm:$0xff]
      %v512 = vunpack.c.l.b16 %v464
      %v513 = vunpack.c.h.b16 %v464
      %v514 = vunpack.c.l.b16 %v465
      %v515 = vunpack.c.h.b16 %v465
      %v516 = vunpack.c.l.b16 %v466
      %v517 = vunpack.c.h.b16 %v466
      %v518 = vunpack.c.l.b16 %v467
      %v519 = vunpack.c.h.b16 %v467
      %v520 = vunpack.c.l.b16 %v468
      %v521 = vunpack.c.h.b16 %v468
      %v522 = vunpack.c.l.b16 %v469
      %v523 = vunpack.c.h.b16 %v469
      %v524 = vunpack.c.l.b16 %v470
      %v525 = vunpack.c.h.b16 %v470
      %v526 = vunpack.c.l.b16 %v471
      %v527 = vunpack.c.h.b16 %v471
      %v528 = vunpack.c.l.b16 %v472
      %v529 = vunpack.c.h.b16 %v472
      %v530 = vunpack.c.l.b16 %v473
      %v531 = vunpack.c.h.b16 %v473
      %v532 = vunpack.c.l.b16 %v474
      %v533 = vunpack.c.h.b16 %v474
      %v534 = vunpack.c.l.b16 %v475
      %v535 = vunpack.c.h.b16 %v475
      %v536 = vunpack.c.l.b16 %v476
      %v537 = vunpack.c.h.b16 %v476
      %v538 = vunpack.c.l.b16 %v477
      %v539 = vunpack.c.h.b16 %v477
      %v540 = vunpack.c.l.b16 %v478
      %v541 = vunpack.c.h.b16 %v478
      %v542 = vunpack.c.l.b16 %v479
      %v543 = vunpack.c.h.b16 %v479
      %v544 = vunpack.c.l.b16 %v480
      %v545 = vunpack.c.h.b16 %v480
      %v546 = vunpack.c.l.b16 %v481
      %v547 = vunpack.c.h.b16 %v481
      %v548 = vunpack.c.l.b16 %v482
      %v549 = vunpack.c.h.b16 %v482
      %v550 = vunpack.c.l.b16 %v483
      %v551 = vunpack.c.h.b16 %v483
      %v552 = vunpack.c.l.b16 %v484
      %v553 = vunpack.c.h.b16 %v484
      %v554 = vunpack.c.l.b16 %v485
      %v555 = vunpack.c.h.b16 %v485
      %v556 = vunpack.c.l.b16 %v486
      %v557 = vunpack.c.h.b16 %v486
      %v558 = vunpack.c.l.b16 %v487
      %v559 = vunpack.c.h.b16 %v487
      %v560 = vpack.c.b16 %v516, %v512
      %v561 = vpack.c.b16 %v517, %v513
      %v562 = vpack.c.b16 %v518, %v514
      %v563 = vpack.c.b16 %v519, %v515
      %v564 = vpack.c.b16 %v524, %v520
      %v565 = vpack.c.b16 %v525, %v521
      %v566 = vpack.c.b16 %v526, %v522
      %v567 = vpack.c.b16 %v527, %v523
      %v568 = vpack.c.b16 %v532, %v528
      %v569 = vpack.c.b16 %v533, %v529
      %v570 = vpack.c.b16 %v534, %v530
      %v571 = vpack.c.b16 %v535, %v531
      %v572 = vpack.c.b16 %v540, %v536
      %v573 = vpack.c.b16 %v541, %v537
      %v574 = vpack.c.b16 %v542, %v538
      %v575 = vpack.c.b16 %v543, %v539
      %v576 = vpack.c.b16 %v548, %v544
      %v577 = vpack.c.b16 %v549, %v545
      %v578 = vpack.c.b16 %v550, %v546
      %v579 = vpack.c.b16 %v551, %v547
      %v580 = vpack.c.b16 %v556, %v552
      %v581 = vpack.c.b16 %v557, %v553
      %v582 = vpack.c.b16 %v558, %v554
      %v583 = vpack.c.b16 %v559, %v555
      %v609 = vsel %vm334, %v461, 0
      %v612 = vsel %vm334, %v462, 0
      %614 = vmatprep.subr.bf16.mxu0 %v561
      %615 = vmatpush1.bf16.msra.mxu0 %v560
      %616 = vmatprep.subr.bf16.mxu0 %v565
      %617 = vmatpush1.bf16.msra.mxu0 %v564
      %618 = vmatprep.subr.bf16.mxu0 %v569
      %619 = vmatpush1.bf16.msra.mxu0 %v568
      %620 = vmatprep.subr.bf16.mxu0 %v573
      %621 = vmatpush1.bf16.msra.mxu0 %v572
      %622 = vmatprep.subr.bf16.mxu0 %v577
      %623 = vmatpush1.bf16.msra.mxu0 %v576
      %624 = vmatprep.subr.bf16.mxu0 %v581
      %625 = vmatpush1.bf16.msra.mxu0 %v580
      %626 = vmatprep.subr.bf16.mxu0 0
      %627 = vmatpush1.bf16.msra.mxu0 0
      %628 = vmatprep.subr.bf16.mxu0 0
      %629 = vmatpush1.bf16.msra.mxu0 0
      %630 = vmatprep.subr.bf16.mxu0 0
      %631 = vmatpush1.bf16.msra.mxu0 0
      %632 = vmatprep.subr.bf16.mxu0 0
      %633 = vmatpush1.bf16.msra.mxu0 0
      %634 = vmatprep.subr.bf16.mxu0 0
      %635 = vmatpush1.bf16.msra.mxu0 0
      %636 = vmatprep.subr.bf16.mxu0 0
      %637 = vmatpush1.bf16.msra.mxu0 0
      %638 = vmatprep.subr.bf16.mxu0 0
      %639 = vmatpush1.bf16.msra.mxu0 0
      %640 = vmatprep.subr.bf16.mxu0 0
      %641 = vmatpush1.bf16.msra.mxu0 0
      %642 = vmatprep.subr.bf16.mxu0 0
      %643 = vmatpush1.bf16.msra.mxu0 0
      %644 = vmatprep.subr.bf16.mxu0 0
      %645 = vmatpush1.bf16.msra.mxu0 0
      %646 = vmatprep.mubr.bf16.mxu0 0
      %647 = vmatmul.mubr.bf16.gmra.mrb[0].mxu0 %v609
      %v648 = vpop.f32.mrb[0].mxu0
      %v649 = vadd.f32 0.0, %v648
      %v650 = vpop.f32.mrb[0].mxu0
      %v651 = vadd.f32 0.0, %v650
      %v652 = vpop.f32.mrb[0].mxu0
      %v653 = vadd.f32 0.0, %v652
      %v654 = vpop.f32.mrb[0].mxu0
      %v655 = vadd.f32 0.0, %v654
      %656 = vmatprep.mubr.bf16.mxu0 0
      %657 = vmatmul.mubr.bf16.gmra.mrb[0].mxu0 %v612
      %v658 = vpop.f32.mrb[0].mxu0
      %v659 = vadd.f32 0.0, %v658
      %v660 = vpop.f32.mrb[0].mxu0
      %v661 = vadd.f32 0.0, %v660
      %v662 = vpop.f32.mrb[0].mxu0
      %v663 = vadd.f32 0.0, %v662
      %v664 = vpop.f32.mrb[0].mxu0
      %v665 = vadd.f32 0.0, %v664
      %666 = vdwg.mxu0
      %667 = vmatprep.subr.bf16.mxu0 %v563
      %668 = vmatpush1.bf16.msra.mxu0 %v562
      %669 = vmatprep.subr.bf16.mxu0 %v567
      %670 = vmatpush1.bf16.msra.mxu0 %v566
      %671 = vmatprep.subr.bf16.mxu0 %v571
      %672 = vmatpush1.bf16.msra.mxu0 %v570
      %673 = vmatprep.subr.bf16.mxu0 %v575
      %674 = vmatpush1.bf16.msra.mxu0 %v574
      %675 = vmatprep.subr.bf16.mxu0 %v579
      %676 = vmatpush1.bf16.msra.mxu0 %v578
      %677 = vmatprep.subr.bf16.mxu0 %v583
      %678 = vmatpush1.bf16.msra.mxu0 %v582
      %679 = vmatprep.subr.bf16.mxu0 0
      %680 = vmatpush1.bf16.msra.mxu0 0
      %681 = vmatprep.subr.bf16.mxu0 0
      %682 = vmatpush1.bf16.msra.mxu0 0
      %683 = vmatprep.subr.bf16.mxu0 0
      %684 = vmatpush1.bf16.msra.mxu0 0
      %685 = vmatprep.subr.bf16.mxu0 0
      %686 = vmatpush1.bf16.msra.mxu0 0
      %687 = vmatprep.subr.bf16.mxu0 0
      %688 = vmatpush1.bf16.msra.mxu0 0
      %689 = vmatprep.subr.bf16.mxu0 0
      %690 = vmatpush1.bf16.msra.mxu0 0
      %691 = vmatprep.subr.bf16.mxu0 0
      %692 = vmatpush1.bf16.msra.mxu0 0
      %693 = vmatprep.subr.bf16.mxu0 0
      %694 = vmatpush1.bf16.msra.mxu0 0
      %695 = vmatprep.subr.bf16.mxu0 0
      %696 = vmatpush1.bf16.msra.mxu0 0
      %697 = vmatprep.subr.bf16.mxu0 0
      %698 = vmatpush1.bf16.msra.mxu0 0
      %699 = vmatprep.mubr.bf16.mxu0 0
      %700 = vmatmul.mubr.bf16.gmra.mrb[0].mxu0 %v609
      %v701 = vpop.f32.mrb[0].mxu0
      %v702 = vadd.f32 0.0, %v701
      %v703 = vpop.f32.mrb[0].mxu0
      %v704 = vadd.f32 0.0, %v703
      %v705 = vpop.f32.mrb[0].mxu0
      %v706 = vadd.f32 0.0, %v705
      %v707 = vpop.f32.mrb[0].mxu0
      %v708 = vadd.f32 0.0, %v707
      %709 = vmatprep.mubr.bf16.mxu0 0
      %710 = vmatmul.mubr.bf16.gmra.mrb[0].mxu0 %v612
      %v711 = vpop.f32.mrb[0].mxu0
      %v712 = vadd.f32 0.0, %v711
      %v713 = vpop.f32.mrb[0].mxu0
      %v714 = vadd.f32 0.0, %v713
      %v715 = vpop.f32.mrb[0].mxu0
      %v716 = vadd.f32 0.0, %v715
      %v717 = vpop.f32.mrb[0].mxu0
      %v718 = vadd.f32 0.0, %v717
      %719 = vdwg.mxu0
      %v744 = vunpack.c.l.b16 %v433
      %v745 = vunpack.c.h.b16 %v433
      %v746 = vunpack.c.l.b16 %v434
      %v747 = vunpack.c.h.b16 %v434
      %v748 = vunpack.c.l.b16 %v435
      %v749 = vunpack.c.h.b16 %v435
      %v750 = vunpack.c.l.b16 %v436
      %v751 = vunpack.c.h.b16 %v436
      %v752 = vunpack.c.l.b16 %v437
      %v753 = vunpack.c.h.b16 %v437
      %v754 = vunpack.c.l.b16 %v438
      %v755 = vunpack.c.h.b16 %v438
      %v756 = vunpack.c.l.b16 %v439
      %v757 = vunpack.c.h.b16 %v439
      %v758 = vunpack.c.l.b16 %v440
      %v759 = vunpack.c.h.b16 %v440
      %v760 = vunpack.c.l.b16 %v441
      %v761 = vunpack.c.h.b16 %v441
      %v762 = vunpack.c.l.b16 %v442
      %v763 = vunpack.c.h.b16 %v442
      %v764 = vunpack.c.l.b16 %v443
      %v765 = vunpack.c.h.b16 %v443
      %v766 = vunpack.c.l.b16 %v444
      %v767 = vunpack.c.h.b16 %v444
      %v768 = vunpack.c.l.b16 %v445
      %v769 = vunpack.c.h.b16 %v445
      %v770 = vunpack.c.l.b16 %v446
      %v771 = vunpack.c.h.b16 %v446
      %v772 = vunpack.c.l.b16 %v447
      %v773 = vunpack.c.h.b16 %v447
      %v774 = vunpack.c.l.b16 %v448
      %v775 = vunpack.c.h.b16 %v448
      %v776 = vunpack.c.l.b16 %v449
      %v777 = vunpack.c.h.b16 %v449
      %v778 = vunpack.c.l.b16 %v450
      %v779 = vunpack.c.h.b16 %v450
      %v780 = vunpack.c.l.b16 %v451
      %v781 = vunpack.c.h.b16 %v451
      %v782 = vunpack.c.l.b16 %v452
      %v783 = vunpack.c.h.b16 %v452
      %v784 = vunpack.c.l.b16 %v453
      %v785 = vunpack.c.h.b16 %v453
      %v786 = vunpack.c.l.b16 %v454
      %v787 = vunpack.c.h.b16 %v454
      %v788 = vunpack.c.l.b16 %v455
      %v789 = vunpack.c.h.b16 %v455
      %v790 = vunpack.c.l.b16 %v456
      %v791 = vunpack.c.h.b16 %v456
      %v792 = vpack.c.b16 %v748, %v744
      %v793 = vpack.c.b16 %v749, %v745
      %v794 = vpack.c.b16 %v750, %v746
      %v795 = vpack.c.b16 %v751, %v747
      %v796 = vpack.c.b16 %v756, %v752
      %v797 = vpack.c.b16 %v757, %v753
      %v798 = vpack.c.b16 %v758, %v754
      %v799 = vpack.c.b16 %v759, %v755
      %v800 = vpack.c.b16 %v764, %v760
      %v801 = vpack.c.b16 %v765, %v761
      %v802 = vpack.c.b16 %v766, %v762
      %v803 = vpack.c.b16 %v767, %v763
      %v804 = vpack.c.b16 %v772, %v768
      %v805 = vpack.c.b16 %v773, %v769
      %v806 = vpack.c.b16 %v774, %v770
      %v807 = vpack.c.b16 %v775, %v771
      %v808 = vpack.c.b16 %v780, %v776
      %v809 = vpack.c.b16 %v781, %v777
      %v810 = vpack.c.b16 %v782, %v778
      %v811 = vpack.c.b16 %v783, %v779
      %v812 = vpack.c.b16 %v788, %v784
      %v813 = vpack.c.b16 %v789, %v785
      %v814 = vpack.c.b16 %v790, %v786
      %v815 = vpack.c.b16 %v791, %v787
      %v841 = vsel %vm334, %v431, 0
      %v844 = vsel %vm334, %v432, 0
      %846 = vmatprep.subr.bf16.mxu0 %v793
      %847 = vmatpush1.bf16.msra.mxu0 %v792
      %848 = vmatprep.subr.bf16.mxu0 %v797
      %849 = vmatpush1.bf16.msra.mxu0 %v796
      %850 = vmatprep.subr.bf16.mxu0 %v801
      %851 = vmatpush1.bf16.msra.mxu0 %v800
      %852 = vmatprep.subr.bf16.mxu0 %v805
      %853 = vmatpush1.bf16.msra.mxu0 %v804
      %854 = vmatprep.subr.bf16.mxu0 %v809
      %855 = vmatpush1.bf16.msra.mxu0 %v808
      %856 = vmatprep.subr.bf16.mxu0 %v813
      %857 = vmatpush1.bf16.msra.mxu0 %v812
      %858 = vmatprep.subr.bf16.mxu0 0
      %859 = vmatpush1.bf16.msra.mxu0 0
      %860 = vmatprep.subr.bf16.mxu0 0
      %861 = vmatpush1.bf16.msra.mxu0 0
      %862 = vmatprep.subr.bf16.mxu0 0
      %863 = vmatpush1.bf16.msra.mxu0 0
      %864 = vmatprep.subr.bf16.mxu0 0
      %865 = vmatpush1.bf16.msra.mxu0 0
      %866 = vmatprep.subr.bf16.mxu0 0
      %867 = vmatpush1.bf16.msra.mxu0 0
      %868 = vmatprep.subr.bf16.mxu0 0
      %869 = vmatpush1.bf16.msra.mxu0 0
      %870 = vmatprep.subr.bf16.mxu0 0
      %871 = vmatpush1.bf16.msra.mxu0 0
      %872 = vmatprep.subr.bf16.mxu0 0
      %873 = vmatpush1.bf16.msra.mxu0 0
      %874 = vmatprep.subr.bf16.mxu0 0
      %875 = vmatpush1.bf16.msra.mxu0 0
      %876 = vmatprep.subr.bf16.mxu0 0
      %877 = vmatpush1.bf16.msra.mxu0 0
      %878 = vmatprep.mubr.bf16.mxu0 0
      %879 = vmatmul.mubr.bf16.gmra.mrb[0].mxu0 %v841
      %v880 = vpop.f32.mrb[0].mxu0
      %v881 = vadd.f32 %v649, %v880
      %v882 = vpop.f32.mrb[0].mxu0
      %v883 = vadd.f32 %v651, %v882
      %v884 = vpop.f32.mrb[0].mxu0
      %v885 = vadd.f32 %v653, %v884
      %v886 = vpop.f32.mrb[0].mxu0
      %v887 = vadd.f32 %v655, %v886
      %888 = vmatprep.mubr.bf16.mxu0 0
      %889 = vmatmul.mubr.bf16.gmra.mrb[0].mxu0 %v844
      %v890 = vpop.f32.mrb[0].mxu0
      %v891 = vadd.f32 %v659, %v890
      %v892 = vpop.f32.mrb[0].mxu0
      %v893 = vadd.f32 %v661, %v892
      %v894 = vpop.f32.mrb[0].mxu0
      %v895 = vadd.f32 %v663, %v894
      %v896 = vpop.f32.mrb[0].mxu0
      %v897 = vadd.f32 %v665, %v896
      %898 = vdwg.mxu0
      %899 = vmatprep.subr.bf16.mxu0 %v795
      %900 = vmatpush1.bf16.msra.mxu0 %v794
      %901 = vmatprep.subr.bf16.mxu0 %v799
      %902 = vmatpush1.bf16.msra.mxu0 %v798
      %903 = vmatprep.subr.bf16.mxu0 %v803
      %904 = vmatpush1.bf16.msra.mxu0 %v802
      %905 = vmatprep.subr.bf16.mxu0 %v807
      %906 = vmatpush1.bf16.msra.mxu0 %v806
      %907 = vmatprep.subr.bf16.mxu0 %v811
      %908 = vmatpush1.bf16.msra.mxu0 %v810
      %909 = vmatprep.subr.bf16.mxu0 %v815
      %910 = vmatpush1.bf16.msra.mxu0 %v814
      %911 = vmatprep.subr.bf16.mxu0 0
      %912 = vmatpush1.bf16.msra.mxu0 0
      %913 = vmatprep.subr.bf16.mxu0 0
      %914 = vmatpush1.bf16.msra.mxu0 0
      %915 = vmatprep.subr.bf16.mxu0 0
      %916 = vmatpush1.bf16.msra.mxu0 0
      %917 = vmatprep.subr.bf16.mxu0 0
      %918 = vmatpush1.bf16.msra.mxu0 0
      %919 = vmatprep.subr.bf16.mxu0 0
      %920 = vmatpush1.bf16.msra.mxu0 0
      %921 = vmatprep.subr.bf16.mxu0 0
      %922 = vmatpush1.bf16.msra.mxu0 0
      %923 = vmatprep.subr.bf16.mxu0 0
      %924 = vmatpush1.bf16.msra.mxu0 0
      %925 = vmatprep.subr.bf16.mxu0 0
      %926 = vmatpush1.bf16.msra.mxu0 0
      %927 = vmatprep.subr.bf16.mxu0 0
      %928 = vmatpush1.bf16.msra.mxu0 0
      %929 = vmatprep.subr.bf16.mxu0 0
      %930 = vmatpush1.bf16.msra.mxu0 0
      %931 = vmatprep.mubr.bf16.mxu0 0
      %932 = vmatmul.mubr.bf16.gmra.mrb[0].mxu0 %v841
      %v933 = vpop.f32.mrb[0].mxu0
      %v934 = vadd.f32 %v702, %v933
      %v935 = vpop.f32.mrb[0].mxu0
      %v936 = vadd.f32 %v704, %v935
      %v937 = vpop.f32.mrb[0].mxu0
      %v938 = vadd.f32 %v706, %v937
      %v939 = vpop.f32.mrb[0].mxu0
      %v940 = vadd.f32 %v708, %v939
      %941 = vmatprep.mubr.bf16.mxu0 0
      %942 = vmatmul.mubr.bf16.gmra.mrb[0].mxu0 %v844
      %v943 = vpop.f32.mrb[0].mxu0
      %v944 = vadd.f32 %v712, %v943
      %v945 = vpop.f32.mrb[0].mxu0
      %v946 = vadd.f32 %v714, %v945
      %v947 = vpop.f32.mrb[0].mxu0
      %v948 = vadd.f32 %v716, %v947
      %v949 = vpop.f32.mrb[0].mxu0
      %v950 = vadd.f32 %v718, %v949
      %951 = vdwg.mxu0
      %v952 = vld [vmem:[#allocation2 + $0x9] sm:$0xff]
      %v953 = vld [vmem:[#allocation2 + $0x11] sm:$0xff]
      %v954 = vld [vmem:[#allocation2 + $0x19] sm:$0xff]
      %v955 = vld [vmem:[#allocation2 + $0x21] sm:$0xff]
      %v956 = vpack.c.bf16 %v953, %v952
      %v957 = vpack.c.bf16 %v955, %v954
      %s958 = scalar_lea.vmem %s3, 384
      %v959 = vld [vmem:[%s958] sm:$0xff]
      %v960 = vld [vmem:[%s958 + $0x8] sm:$0xff]
      %v961 = vld [vmem:[%s958 + $0x10] sm:$0xff]
      %v962 = vld [vmem:[%s958 + $0x18] sm:$0xff]
      %v963 = vld [vmem:[%s958 + $0x20] sm:$0xff]
      %v964 = vld [vmem:[%s958 + $0x28] sm:$0xff]
      %v965 = vld [vmem:[%s958 + $0x30] sm:$0xff]
      %v966 = vld [vmem:[%s958 + $0x38] sm:$0xff]
      %v967 = vld [vmem:[%s958 + $0x40] sm:$0xff]
      %v968 = vld [vmem:[%s958 + $0x48] sm:$0xff]
      %v969 = vld [vmem:[%s958 + $0x50] sm:$0xff]
      %v970 = vld [vmem:[%s958 + $0x58] sm:$0xff]
      %v971 = vld [vmem:[%s958 + $0x60] sm:$0xff]
      %v972 = vld [vmem:[%s958 + $0x68] sm:$0xff]
      %v973 = vld [vmem:[%s958 + $0x70] sm:$0xff]
      %v974 = vld [vmem:[%s958 + $0x78] sm:$0xff]
      %v975 = vld [vmem:[%s958 + $0x80] sm:$0xff]
      %v976 = vld [vmem:[%s958 + $0x88] sm:$0xff]
      %v977 = vld [vmem:[%s958 + $0x90] sm:$0xff]
      %v978 = vld [vmem:[%s958 + $0x98] sm:$0xff]
      %v979 = vld [vmem:[%s958 + $0xa0] sm:$0xff]
      %v980 = vld [vmem:[%s958 + $0xa8] sm:$0xff]
      %v981 = vld [vmem:[%s958 + $0xb0] sm:$0xff]
      %v982 = vld [vmem:[%s958 + $0xb8] sm:$0xff]
      %v1007 = vunpack.c.l.b16 %v959
      %v1008 = vunpack.c.h.b16 %v959
      %v1009 = vunpack.c.l.b16 %v960
      %v1010 = vunpack.c.h.b16 %v960
      %v1011 = vunpack.c.l.b16 %v961
      %v1012 = vunpack.c.h.b16 %v961
      %v1013 = vunpack.c.l.b16 %v962
      %v1014 = vunpack.c.h.b16 %v962
      %v1015 = vunpack.c.l.b16 %v963
      %v1016 = vunpack.c.h.b16 %v963
      %v1017 = vunpack.c.l.b16 %v964
      %v1018 = vunpack.c.h.b16 %v964
      %v1019 = vunpack.c.l.b16 %v965
      %v1020 = vunpack.c.h.b16 %v965
      %v1021 = vunpack.c.l.b16 %v966
      %v1022 = vunpack.c.h.b16 %v966
      %v1023 = vunpack.c.l.b16 %v967
      %v1024 = vunpack.c.h.b16 %v967
      %v1025 = vunpack.c.l.b16 %v968
      %v1026 = vunpack.c.h.b16 %v968
      %v1027 = vunpack.c.l.b16 %v969
      %v1028 = vunpack.c.h.b16 %v969
      %v1029 = vunpack.c.l.b16 %v970
      %v1030 = vunpack.c.h.b16 %v970
      %v1031 = vunpack.c.l.b16 %v971
      %v1032 = vunpack.c.h.b16 %v971
      %v1033 = vunpack.c.l.b16 %v972
      %v1034 = vunpack.c.h.b16 %v972
      %v1035 = vunpack.c.l.b16 %v973
      %v1036 = vunpack.c.h.b16 %v973
      %v1037 = vunpack.c.l.b16 %v974
      %v1038 = vunpack.c.h.b16 %v974
      %v1039 = vunpack.c.l.b16 %v975
      %v1040 = vunpack.c.h.b16 %v975
      %v1041 = vunpack.c.l.b16 %v976
      %v1042 = vunpack.c.h.b16 %v976
      %v1043 = vunpack.c.l.b16 %v977
      %v1044 = vunpack.c.h.b16 %v977
      %v1045 = vunpack.c.l.b16 %v978
      %v1046 = vunpack.c.h.b16 %v978
      %v1047 = vunpack.c.l.b16 %v979
      %v1048 = vunpack.c.h.b16 %v979
      %v1049 = vunpack.c.l.b16 %v980
      %v1050 = vunpack.c.h.b16 %v980
      %v1051 = vunpack.c.l.b16 %v981
      %v1052 = vunpack.c.h.b16 %v981
      %v1053 = vunpack.c.l.b16 %v982
      %v1054 = vunpack.c.h.b16 %v982
      %v1055 = vpack.c.b16 %v1011, %v1007
      %v1056 = vpack.c.b16 %v1012, %v1008
      %v1057 = vpack.c.b16 %v1013, %v1009
      %v1058 = vpack.c.b16 %v1014, %v1010
      %v1059 = vpack.c.b16 %v1019, %v1015
      %v1060 = vpack.c.b16 %v1020, %v1016
      %v1061 = vpack.c.b16 %v1021, %v1017
      %v1062 = vpack.c.b16 %v1022, %v1018
      %v1063 = vpack.c.b16 %v1027, %v1023
      %v1064 = vpack.c.b16 %v1028, %v1024
      %v1065 = vpack.c.b16 %v1029, %v1025
      %v1066 = vpack.c.b16 %v1030, %v1026
      %v1067 = vpack.c.b16 %v1035, %v1031
      %v1068 = vpack.c.b16 %v1036, %v1032
      %v1069 = vpack.c.b16 %v1037, %v1033
      %v1070 = vpack.c.b16 %v1038, %v1034
      %v1071 = vpack.c.b16 %v1043, %v1039
      %v1072 = vpack.c.b16 %v1044, %v1040
      %v1073 = vpack.c.b16 %v1045, %v1041
      %v1074 = vpack.c.b16 %v1046, %v1042
      %v1075 = vpack.c.b16 %v1051, %v1047
      %v1076 = vpack.c.b16 %v1052, %v1048
      %v1077 = vpack.c.b16 %v1053, %v1049
      %v1078 = vpack.c.b16 %v1054, %v1050
      %v1104 = vsel %vm334, %v956, 0
      %v1107 = vsel %vm334, %v957, 0
      %1109 = vmatprep.subr.bf16.mxu0 %v1056
      %1110 = vmatpush1.bf16.msra.mxu0 %v1055
      %1111 = vmatprep.subr.bf16.mxu0 %v1060
      %1112 = vmatpush1.bf16.msra.mxu0 %v1059
      %1113 = vmatprep.subr.bf16.mxu0 %v1064
      %1114 = vmatpush1.bf16.msra.mxu0 %v1063
      %1115 = vmatprep.subr.bf16.mxu0 %v1068
      %1116 = vmatpush1.bf16.msra.mxu0 %v1067
      %1117 = vmatprep.subr.bf16.mxu0 %v1072
      %1118 = vmatpush1.bf16.msra.mxu0 %v1071
      %1119 = vmatprep.subr.bf16.mxu0 %v1076
      %1120 = vmatpush1.bf16.msra.mxu0 %v1075
      %1121 = vmatprep.subr.bf16.mxu0 0
      %1122 = vmatpush1.bf16.msra.mxu0 0
      %1123 = vmatprep.subr.bf16.mxu0 0
      %1124 = vmatpush1.bf16.msra.mxu0 0
      %1125 = vmatprep.subr.bf16.mxu0 0
      %1126 = vmatpush1.bf16.msra.mxu0 0
      %1127 = vmatprep.subr.bf16.mxu0 0
      %1128 = vmatpush1.bf16.msra.mxu0 0
      %1129 = vmatprep.subr.bf16.mxu0 0
      %1130 = vmatpush1.bf16.msra.mxu0 0
      %1131 = vmatprep.subr.bf16.mxu0 0
      %1132 = vmatpush1.bf16.msra.mxu0 0
      %1133 = vmatprep.subr.bf16.mxu0 0
      %1134 = vmatpush1.bf16.msra.mxu0 0
      %1135 = vmatprep.subr.bf16.mxu0 0
      %1136 = vmatpush1.bf16.msra.mxu0 0
      %1137 = vmatprep.subr.bf16.mxu0 0
      %1138 = vmatpush1.bf16.msra.mxu0 0
      %1139 = vmatprep.subr.bf16.mxu0 0
      %1140 = vmatpush1.bf16.msra.mxu0 0
      %1141 = vmatprep.mubr.bf16.mxu0 0
      %1142 = vmatmul.mubr.bf16.gmra.mrb[0].mxu0 %v1104
      %v1143 = vpop.f32.mrb[0].mxu0
      %v1144 = vadd.f32 0.0, %v1143
      %v1145 = vpop.f32.mrb[0].mxu0
      %v1146 = vadd.f32 0.0, %v1145
      %v1147 = vpop.f32.mrb[0].mxu0
      %v1148 = vadd.f32 0.0, %v1147
      %v1149 = vpop.f32.mrb[0].mxu0
      %v1150 = vadd.f32 0.0, %v1149
      %1151 = vmatprep.mubr.bf16.mxu0 0
      %1152 = vmatmul.mubr.bf16.gmra.mrb[0].mxu0 %v1107
      %v1153 = vpop.f32.mrb[0].mxu0
      %v1154 = vadd.f32 0.0, %v1153
      %v1155 = vpop.f32.mrb[0].mxu0
      %v1156 = vadd.f32 0.0, %v1155
      %v1157 = vpop.f32.mrb[0].mxu0
      %v1158 = vadd.f32 0.0, %v1157
      %v1159 = vpop.f32.mrb[0].mxu0
      %v1160 = vadd.f32 0.0, %v1159
      %1161 = vdwg.mxu0
      %1162 = vmatprep.subr.bf16.mxu0 %v1058
      %1163 = vmatpush1.bf16.msra.mxu0 %v1057
      %1164 = vmatprep.subr.bf16.mxu0 %v1062
      %1165 = vmatpush1.bf16.msra.mxu0 %v1061
      %1166 = vmatprep.subr.bf16.mxu0 %v1066
      %1167 = vmatpush1.bf16.msra.mxu0 %v1065
      %1168 = vmatprep.subr.bf16.mxu0 %v1070
      %1169 = vmatpush1.bf16.msra.mxu0 %v1069
      %1170 = vmatprep.subr.bf16.mxu0 %v1074
      %1171 = vmatpush1.bf16.msra.mxu0 %v1073
      %1172 = vmatprep.subr.bf16.mxu0 %v1078
      %1173 = vmatpush1.bf16.msra.mxu0 %v1077
      %1174 = vmatprep.subr.bf16.mxu0 0
      %1175 = vmatpush1.bf16.msra.mxu0 0
      %1176 = vmatprep.subr.bf16.mxu0 0
      %1177 = vmatpush1.bf16.msra.mxu0 0
      %1178 = vmatprep.subr.bf16.mxu0 0
      %1179 = vmatpush1.bf16.msra.mxu0 0
      %1180 = vmatprep.subr.bf16.mxu0 0
      %1181 = vmatpush1.bf16.msra.mxu0 0
      %1182 = vmatprep.subr.bf16.mxu0 0
      %1183 = vmatpush1.bf16.msra.mxu0 0
      %1184 = vmatprep.subr.bf16.mxu0 0
      %1185 = vmatpush1.bf16.msra.mxu0 0
      %1186 = vmatprep.subr.bf16.mxu0 0
      %1187 = vmatpush1.bf16.msra.mxu0 0
      %1188 = vmatprep.subr.bf16.mxu0 0
      %1189 = vmatpush1.bf16.msra.mxu0 0
      %1190 = vmatprep.subr.bf16.mxu0 0
      %1191 = vmatpush1.bf16.msra.mxu0 0
      %1192 = vmatprep.subr.bf16.mxu0 0
      %1193 = vmatpush1.bf16.msra.mxu0 0
      %1194 = vmatprep.mubr.bf16.mxu0 0
      %1195 = vmatmul.mubr.bf16.gmra.mrb[0].mxu0 %v1104
      %v1196 = vpop.f32.mrb[0].mxu0
      %v1197 = vadd.f32 0.0, %v1196
      %v1198 = vpop.f32.mrb[0].mxu0
      %v1199 = vadd.f32 0.0, %v1198
      %v1200 = vpop.f32.mrb[0].mxu0
      %v1201 = vadd.f32 0.0, %v1200
      %v1202 = vpop.f32.mrb[0].mxu0
      %v1203 = vadd.f32 0.0, %v1202
      %1204 = vmatprep.mubr.bf16.mxu0 0
      %1205 = vmatmul.mubr.bf16.gmra.mrb[0].mxu0 %v1107
      %v1206 = vpop.f32.mrb[0].mxu0
      %v1207 = vadd.f32 0.0, %v1206
      %v1208 = vpop.f32.mrb[0].mxu0
      %v1209 = vadd.f32 0.0, %v1208
      %v1210 = vpop.f32.mrb[0].mxu0
      %v1211 = vadd.f32 0.0, %v1210
      %v1212 = vpop.f32.mrb[0].mxu0
      %v1213 = vadd.f32 0.0, %v1212
      %1214 = vdwg.mxu0
      %v1215 = vadd.f32 %v881, %v1144
      %v1216 = vadd.f32 %v883, %v1146
      %v1217 = vadd.f32 %v934, %v1197
      %v1218 = vadd.f32 %v936, %v1199
      %v1219 = vadd.f32 %v885, %v1148
      %v1220 = vadd.f32 %v887, %v1150
      %v1221 = vadd.f32 %v938, %v1201
      %v1222 = vadd.f32 %v940, %v1203
      %v1223 = vadd.f32 %v891, %v1154
      %v1224 = vadd.f32 %v893, %v1156
      %v1225 = vadd.f32 %v944, %v1207
      %v1226 = vadd.f32 %v946, %v1209
      %v1227 = vadd.f32 %v895, %v1158
      %v1228 = vadd.f32 %v897, %v1160
      %v1229 = vadd.f32 %v948, %v1211
      %v1230 = vadd.f32 %v950, %v1213
      %v1231 = vld [vmem:[%s4] sm:$0xf]
      %v1233 = vlaneseq
      %v1234 = vshrl.u32 %v1233, 7
      %v1235 = vsub.s32 0, %v1234
      %v1236 = vrot.slane %v1231, %v1235
      %v1237 = vlaneseq
      %v1238 = vshrl.u32 %v1237, 7
      %v1239 = vsub.s32 1, %v1238
      %v1240 = vrot.slane %v1231, %v1239
      %v1241 = vlaneseq
      %v1242 = vshrl.u32 %v1241, 7
      %v1243 = vsub.s32 2, %v1242
      %v1244 = vrot.slane %v1231, %v1243
      %v1245 = vlaneseq
      %v1246 = vshrl.u32 %v1245, 7
      %v1247 = vsub.s32 3, %v1246
      %v1248 = vrot.slane %v1231, %v1247
      %v1253 = vadd.f32 %v1215, %v1236
      %v1254 = vadd.f32 %v1216, %v1240
      %v1255 = vadd.f32 %v1217, %v1244
      %v1256 = vadd.f32 %v1218, %v1248
      %v1257 = vadd.f32 %v1219, %v1236
      %v1258 = vadd.f32 %v1220, %v1240
      %v1259 = vadd.f32 %v1221, %v1244
      %v1260 = vadd.f32 %v1222, %v1248
      %v1261 = vadd.f32 %v1223, %v1236
      %v1262 = vadd.f32 %v1224, %v1240
      %v1263 = vadd.f32 %v1225, %v1244
      %v1264 = vadd.f32 %v1226, %v1248
      %v1265 = vadd.f32 %v1227, %v1236
      %v1266 = vadd.f32 %v1228, %v1240
      %v1267 = vadd.f32 %v1229, %v1244
      %v1268 = vadd.f32 %v1230, %v1248
      %v1269 = vmax.f32 %v1253, 0.0
      %v1270 = vmax.f32 %v1254, 0.0
      %v1271 = vmax.f32 %v1255, 0.0
      %v1272 = vmax.f32 %v1256, 0.0
      %v1273 = vmax.f32 %v1257, 0.0
      %v1274 = vmax.f32 %v1258, 0.0
      %v1275 = vmax.f32 %v1259, 0.0
      %v1276 = vmax.f32 %v1260, 0.0
      %v1277 = vmax.f32 %v1261, 0.0
      %v1278 = vmax.f32 %v1262, 0.0
      %v1279 = vmax.f32 %v1263, 0.0
      %v1280 = vmax.f32 %v1264, 0.0
      %v1281 = vmax.f32 %v1265, 0.0
      %v1282 = vmax.f32 %v1266, 0.0
      %v1283 = vmax.f32 %v1267, 0.0
      %v1284 = vmax.f32 %v1268, 0.0
      %1285 = vst [vmem:[#allocation3 + $0x20] sm:$0xff] %v1269
      %1286 = vst [vmem:[#allocation3 + $0x28] sm:$0xff] %v1270
      %1287 = vst [vmem:[#allocation3 + $0x30] sm:$0xff] %v1271
      %1288 = vst [vmem:[#allocation3 + $0x38] sm:$0xff] %v1272
      %1289 = vst [vmem:[#allocation3 + $0x40] sm:$0xff] %v1273
      %1290 = vst [vmem:[#allocation3 + $0x48] sm:$0xff] %v1274
      %1291 = vst [vmem:[#allocation3 + $0x50] sm:$0xff] %v1275
      %1292 = vst [vmem:[#allocation3 + $0x58] sm:$0xff] %v1276
      %1293 = vst [vmem:[#allocation3 + $0x60] sm:$0xff] %v1277
      %1294 = vst [vmem:[#allocation3 + $0x68] sm:$0xff] %v1278
      %1295 = vst [vmem:[#allocation3 + $0x70] sm:$0xff] %v1279
      %1296 = vst [vmem:[#allocation3 + $0x78] sm:$0xff] %v1280
      %1297 = vst [vmem:[#allocation3 + $0x80] sm:$0xff] %v1281
      %1298 = vst [vmem:[#allocation3 + $0x88] sm:$0xff] %v1282
      %1299 = vst [vmem:[#allocation3 + $0x90] sm:$0xff] %v1283
      %1300 = vst [vmem:[#allocation3 + $0x98] sm:$0xff] %v1284
      %v1301 = vld [vmem:[#allocation3] sm:$0x80]
      %v1302 = vld [vmem:[#allocation3 + $0x8] sm:$0x80]
      %v1303 = vld [vmem:[#allocation3 + $0x10] sm:$0x80]
      %v1304 = vld [vmem:[#allocation3 + $0x18] sm:$0x80]
      %v1305 = vld [vmem:[#allocation3 + $0x20] sm:$0xff]
      %v1306 = vld [vmem:[#allocation3 + $0x28] sm:$0xff]
      %v1307 = vld [vmem:[#allocation3 + $0x30] sm:$0xff]
      %v1308 = vld [vmem:[#allocation3 + $0x38] sm:$0xff]
      %v1309 = vld [vmem:[#allocation3 + $0x40] sm:$0xff]
      %v1310 = vld [vmem:[#allocation3 + $0x48] sm:$0xff]
      %v1311 = vld [vmem:[#allocation3 + $0x50] sm:$0xff]
      %v1312 = vld [vmem:[#allocation3 + $0x58] sm:$0xff]
      %v1313 = vld [vmem:[#allocation3 + $0x60] sm:$0xff]
      %v1314 = vld [vmem:[#allocation3 + $0x68] sm:$0xff]
      %v1315 = vld [vmem:[#allocation3 + $0x70] sm:$0xff]
      %v1316 = vld [vmem:[#allocation3 + $0x78] sm:$0xff]
      %v1317 = vld [vmem:[#allocation3 + $0x80] sm:$0x7f]
      %v1318 = vld [vmem:[#allocation3 + $0x88] sm:$0x7f]
      %v1319 = vld [vmem:[#allocation3 + $0x90] sm:$0x7f]
      %v1320 = vld [vmem:[#allocation3 + $0x98] sm:$0x7f]
      %v1321 = vpack.c.bf16 %v1305, %v1301
      %v1322 = vpack.c.bf16 %v1306, %v1302
      %v1323 = vpack.c.bf16 %v1307, %v1303
      %v1324 = vpack.c.bf16 %v1308, %v1304
      %v1325 = vpack.c.bf16 %v1313, %v1309
      %v1326 = vpack.c.bf16 %v1314, %v1310
      %v1327 = vpack.c.bf16 %v1315, %v1311
      %v1328 = vpack.c.bf16 %v1316, %v1312
      %v1329 = vpack.c.bf16 %v1317, %v1317
      %v1330 = vpack.c.bf16 %v1318, %v1318
      %v1331 = vpack.c.bf16 %v1319, %v1319
      %v1332 = vpack.c.bf16 %v1320, %v1320
      %v1333 = vld [vmem:[%s5] sm:$0xff]
      %v1334 = vld [vmem:[%s5 + $0x8] sm:$0xff]
      %v1335 = vld [vmem:[%s5 + $0x10] sm:$0xff]
      %v1336 = vld [vmem:[%s5 + $0x18] sm:$0xff]
      %v1337 = vld [vmem:[%s5 + $0x20] sm:$0xff]
      %v1338 = vld [vmem:[%s5 + $0x28] sm:$0xff]
      %v1339 = vld [vmem:[%s5 + $0x30] sm:$0xff]
      %v1340 = vld [vmem:[%s5 + $0x38] sm:$0xff]
      %v1341 = vld [vmem:[%s5 + $0x40] sm:$0xff]
      %v1342 = vld [vmem:[%s5 + $0x48] sm:$0xff]
      %v1343 = vld [vmem:[%s5 + $0x50] sm:$0xff]
      %v1344 = vld [vmem:[%s5 + $0x58] sm:$0xff]
      %v1345 = vld [vmem:[%s5 + $0x60] sm:$0xff]
      %v1346 = vld [vmem:[%s5 + $0x68] sm:$0xff]
      %v1347 = vld [vmem:[%s5 + $0x70] sm:$0xff]
      %v1348 = vld [vmem:[%s5 + $0x78] sm:$0xff]
      %v1349 = vld [vmem:[%s5 + $0x80] sm:$0xff]
      %v1350 = vld [vmem:[%s5 + $0x88] sm:$0xff]
      %v1351 = vld [vmem:[%s5 + $0x90] sm:$0xff]
      %v1352 = vld [vmem:[%s5 + $0x98] sm:$0xff]
      %v1353 = vld [vmem:[%s5 + $0xa0] sm:$0xff]
      %v1354 = vld [vmem:[%s5 + $0xa8] sm:$0xff]
      %v1355 = vld [vmem:[%s5 + $0xb0] sm:$0xff]
      %v1356 = vld [vmem:[%s5 + $0xb8] sm:$0xff]
      %v1357 = vld [vmem:[%s5 + $0xc0] sm:$0xff]
      %v1358 = vld [vmem:[%s5 + $0xc8] sm:$0xff]
      %v1359 = vld [vmem:[%s5 + $0xd0] sm:$0xff]
      %v1360 = vld [vmem:[%s5 + $0xd8] sm:$0xff]
      %v1361 = vld [vmem:[%s5 + $0xe0] sm:$0xff]
      %v1362 = vld [vmem:[%s5 + $0xe8] sm:$0xff]
      %v1363 = vld [vmem:[%s5 + $0xf0] sm:$0xff]
      %v1364 = vld [vmem:[%s5 + $0xf8] sm:$0xff]
      %v1365 = vld [vmem:[%s5 + $0x100] sm:$0xff]
      %v1366 = vld [vmem:[%s5 + $0x108] sm:$0xff]
      %v1367 = vld [vmem:[%s5 + $0x110] sm:$0xff]
      %v1368 = vld [vmem:[%s5 + $0x118] sm:$0xff]
      %v1369 = vld [vmem:[%s5 + $0x120] sm:$0xff]
      %v1370 = vld [vmem:[%s5 + $0x128] sm:$0xff]
      %v1371 = vld [vmem:[%s5 + $0x130] sm:$0xff]
      %v1372 = vld [vmem:[%s5 + $0x138] sm:$0xff]
      %v1373 = vld [vmem:[%s5 + $0x140] sm:$0xff]
      %v1374 = vld [vmem:[%s5 + $0x148] sm:$0xff]
      %v1375 = vld [vmem:[%s5 + $0x150] sm:$0xff]
      %v1376 = vld [vmem:[%s5 + $0x158] sm:$0xff]
      %v1377 = vld [vmem:[%s5 + $0x160] sm:$0xff]
      %v1378 = vld [vmem:[%s5 + $0x168] sm:$0xff]
      %v1379 = vld [vmem:[%s5 + $0x170] sm:$0xff]
      %v1380 = vld [vmem:[%s5 + $0x178] sm:$0xff]
      %v1381 = vld [vmem:[%s5 + $0x180] sm:$0xff]
      %v1382 = vld [vmem:[%s5 + $0x188] sm:$0xff]
      %v1383 = vld [vmem:[%s5 + $0x190] sm:$0xff]
      %v1384 = vld [vmem:[%s5 + $0x198] sm:$0xff]
      %v1385 = vld [vmem:[%s5 + $0x1a0] sm:$0xff]
      %v1386 = vld [vmem:[%s5 + $0x1a8] sm:$0xff]
      %v1387 = vld [vmem:[%s5 + $0x1b0] sm:$0xff]
      %v1388 = vld [vmem:[%s5 + $0x1b8] sm:$0xff]
      %v1389 = vld [vmem:[%s5 + $0x1c0] sm:$0xff]
      %v1390 = vld [vmem:[%s5 + $0x1c8] sm:$0xff]
      %v1391 = vld [vmem:[%s5 + $0x1d0] sm:$0xff]
      %v1392 = vld [vmem:[%s5 + $0x1d8] sm:$0xff]
      %v1393 = vld [vmem:[%s5 + $0x1e0] sm:$0xff]
      %v1394 = vld [vmem:[%s5 + $0x1e8] sm:$0xff]
      %v1395 = vld [vmem:[%s5 + $0x1f0] sm:$0xff]
      %v1396 = vld [vmem:[%s5 + $0x1f8] sm:$0xff]
      %v1397 = vld [vmem:[%s5 + $0x200] sm:$0xff]
      %v1398 = vld [vmem:[%s5 + $0x208] sm:$0xff]
      %v1399 = vld [vmem:[%s5 + $0x210] sm:$0xff]
      %v1400 = vld [vmem:[%s5 + $0x218] sm:$0xff]
      %v1401 = vld [vmem:[%s5 + $0x220] sm:$0xff]
      %v1402 = vld [vmem:[%s5 + $0x228] sm:$0xff]
      %v1403 = vld [vmem:[%s5 + $0x230] sm:$0xff]
      %v1404 = vld [vmem:[%s5 + $0x238] sm:$0xff]
      %v1405 = vld [vmem:[%s5 + $0x240] sm:$0xff]
      %v1406 = vld [vmem:[%s5 + $0x248] sm:$0xff]
      %v1407 = vld [vmem:[%s5 + $0x250] sm:$0xff]
      %v1408 = vld [vmem:[%s5 + $0x258] sm:$0xff]
      %v1409 = vld [vmem:[%s5 + $0x260] sm:$0xff]
      %v1410 = vld [vmem:[%s5 + $0x268] sm:$0xff]
      %v1411 = vld [vmem:[%s5 + $0x270] sm:$0xff]
      %v1412 = vld [vmem:[%s5 + $0x278] sm:$0xff]
      %v1413 = vld [vmem:[%s5 + $0x280] sm:$0xff]
      %v1414 = vld [vmem:[%s5 + $0x288] sm:$0xff]
      %v1415 = vld [vmem:[%s5 + $0x290] sm:$0xff]
      %v1416 = vld [vmem:[%s5 + $0x298] sm:$0xff]
      %v1417 = vld [vmem:[%s5 + $0x2a0] sm:$0xff]
      %v1418 = vld [vmem:[%s5 + $0x2a8] sm:$0xff]
      %v1419 = vld [vmem:[%s5 + $0x2b0] sm:$0xff]
      %v1420 = vld [vmem:[%s5 + $0x2b8] sm:$0xff]
      %v1421 = vld [vmem:[%s5 + $0x2c0] sm:$0xff]
      %v1422 = vld [vmem:[%s5 + $0x2c8] sm:$0xff]
      %v1423 = vld [vmem:[%s5 + $0x2d0] sm:$0xff]
      %v1424 = vld [vmem:[%s5 + $0x2d8] sm:$0xff]
      %v1425 = vld [vmem:[%s5 + $0x2e0] sm:$0xff]
      %v1426 = vld [vmem:[%s5 + $0x2e8] sm:$0xff]
      %v1427 = vld [vmem:[%s5 + $0x2f0] sm:$0xff]
      %v1428 = vld [vmem:[%s5 + $0x2f8] sm:$0xff]
      %v1429 = vld [vmem:[%s5 + $0x300] sm:$0xff]
      %v1430 = vld [vmem:[%s5 + $0x308] sm:$0xff]
      %v1431 = vld [vmem:[%s5 + $0x310] sm:$0xff]
      %v1432 = vld [vmem:[%s5 + $0x318] sm:$0xff]
      %v1433 = vld [vmem:[%s5 + $0x320] sm:$0xff]
      %v1434 = vld [vmem:[%s5 + $0x328] sm:$0xff]
      %v1435 = vld [vmem:[%s5 + $0x330] sm:$0xff]
      %v1436 = vld [vmem:[%s5 + $0x338] sm:$0xff]
      %v1437 = vld [vmem:[%s5 + $0x340] sm:$0xff]
      %v1438 = vld [vmem:[%s5 + $0x348] sm:$0xff]
      %v1439 = vld [vmem:[%s5 + $0x350] sm:$0xff]
      %v1440 = vld [vmem:[%s5 + $0x358] sm:$0xff]
      %v1441 = vld [vmem:[%s5 + $0x360] sm:$0xff]
      %v1442 = vld [vmem:[%s5 + $0x368] sm:$0xff]
      %v1443 = vld [vmem:[%s5 + $0x370] sm:$0xff]
      %v1444 = vld [vmem:[%s5 + $0x378] sm:$0xff]
      %v1445 = vld [vmem:[%s5 + $0x380] sm:$0xff]
      %v1446 = vld [vmem:[%s5 + $0x388] sm:$0xff]
      %v1447 = vld [vmem:[%s5 + $0x390] sm:$0xff]
      %v1448 = vld [vmem:[%s5 + $0x398] sm:$0xff]
      %v1449 = vld [vmem:[%s5 + $0x3a0] sm:$0xff]
      %v1450 = vld [vmem:[%s5 + $0x3a8] sm:$0xff]
      %v1451 = vld [vmem:[%s5 + $0x3b0] sm:$0xff]
      %v1452 = vld [vmem:[%s5 + $0x3b8] sm:$0xff]
      %v1453 = vld [vmem:[%s5 + $0x3c0] sm:$0xff]
      %v1454 = vld [vmem:[%s5 + $0x3c8] sm:$0xff]
      %v1455 = vld [vmem:[%s5 + $0x3d0] sm:$0xff]
      %v1456 = vld [vmem:[%s5 + $0x3d8] sm:$0xff]
      %v1457 = vld [vmem:[%s5 + $0x3e0] sm:$0xff]
      %v1458 = vld [vmem:[%s5 + $0x3e8] sm:$0xff]
      %v1459 = vld [vmem:[%s5 + $0x3f0] sm:$0xff]
      %v1460 = vld [vmem:[%s5 + $0x3f8] sm:$0xff]
      %v1461 = vld [vmem:[#allocation3 + $0x80] sm:$0xff]
      %v1462 = vld [vmem:[#allocation3 + $0x88] sm:$0xff]
      %v1463 = vld [vmem:[#allocation3 + $0x90] sm:$0xff]
      %v1464 = vld [vmem:[#allocation3 + $0x98] sm:$0xff]
      %v1465 = vpack.c.bf16 %v1309, %v1305
      %v1466 = vpack.c.bf16 %v1310, %v1306
      %v1467 = vpack.c.bf16 %v1311, %v1307
      %v1468 = vpack.c.bf16 %v1312, %v1308
      %v1469 = vpack.c.bf16 %v1461, %v1313
      %v1470 = vpack.c.bf16 %v1462, %v1314
      %v1471 = vpack.c.bf16 %v1463, %v1315
      %v1472 = vpack.c.bf16 %v1464, %v1316
      %s1473 = scalar_lea.vmem %s5, 1024
      %v1474 = vld [vmem:[%s1473] sm:$0xff]
      %v1475 = vld [vmem:[%s1473 + $0x8] sm:$0xff]
      %v1476 = vld [vmem:[%s1473 + $0x10] sm:$0xff]
      %v1477 = vld [vmem:[%s1473 + $0x18] sm:$0xff]
      %v1478 = vld [vmem:[%s1473 + $0x20] sm:$0xff]
      %v1479 = vld [vmem:[%s1473 + $0x28] sm:$0xff]
      %v1480 = vld [vmem:[%s1473 + $0x30] sm:$0xff]
      %v1481 = vld [vmem:[%s1473 + $0x38] sm:$0xff]
      %v1482 = vld [vmem:[%s1473 + $0x40] sm:$0xff]
      %v1483 = vld [vmem:[%s1473 + $0x48] sm:$0xff]
      %v1484 = vld [vmem:[%s1473 + $0x50] sm:$0xff]
      %v1485 = vld [vmem:[%s1473 + $0x58] sm:$0xff]
      %v1486 = vld [vmem:[%s1473 + $0x60] sm:$0xff]
      %v1487 = vld [vmem:[%s1473 + $0x68] sm:$0xff]
      %v1488 = vld [vmem:[%s1473 + $0x70] sm:$0xff]
      %v1489 = vld [vmem:[%s1473 + $0x78] sm:$0xff]
      %v1490 = vld [vmem:[%s1473 + $0x80] sm:$0xff]
      %v1491 = vld [vmem:[%s1473 + $0x88] sm:$0xff]
      %v1492 = vld [vmem:[%s1473 + $0x90] sm:$0xff]
      %v1493 = vld [vmem:[%s1473 + $0x98] sm:$0xff]
      %v1494 = vld [vmem:[%s1473 + $0xa0] sm:$0xff]
      %v1495 = vld [vmem:[%s1473 + $0xa8] sm:$0xff]
      %v1496 = vld [vmem:[%s1473 + $0xb0] sm:$0xff]
      %v1497 = vld [vmem:[%s1473 + $0xb8] sm:$0xff]
      %v1498 = vld [vmem:[%s1473 + $0xc0] sm:$0xff]
      %v1499 = vld [vmem:[%s1473 + $0xc8] sm:$0xff]
      %v1500 = vld [vmem:[%s1473 + $0xd0] sm:$0xff]
      %v1501 = vld [vmem:[%s1473 + $0xd8] sm:$0xff]
      %v1502 = vld [vmem:[%s1473 + $0xe0] sm:$0xff]
      %v1503 = vld [vmem:[%s1473 + $0xe8] sm:$0xff]
      %v1504 = vld [vmem:[%s1473 + $0xf0] sm:$0xff]
      %v1505 = vld [vmem:[%s1473 + $0xf8] sm:$0xff]
      %v1506 = vld [vmem:[%s1473 + $0x100] sm:$0xff]
      %v1507 = vld [vmem:[%s1473 + $0x108] sm:$0xff]
      %v1508 = vld [vmem:[%s1473 + $0x110] sm:$0xff]
      %v1509 = vld [vmem:[%s1473 + $0x118] sm:$0xff]
      %v1510 = vld [vmem:[%s1473 + $0x120] sm:$0xff]
      %v1511 = vld [vmem:[%s1473 + $0x128] sm:$0xff]
      %v1512 = vld [vmem:[%s1473 + $0x130] sm:$0xff]
      %v1513 = vld [vmem:[%s1473 + $0x138] sm:$0xff]
      %v1514 = vld [vmem:[%s1473 + $0x140] sm:$0xff]
      %v1515 = vld [vmem:[%s1473 + $0x148] sm:$0xff]
      %v1516 = vld [vmem:[%s1473 + $0x150] sm:$0xff]
      %v1517 = vld [vmem:[%s1473 + $0x158] sm:$0xff]
      %v1518 = vld [vmem:[%s1473 + $0x160] sm:$0xff]
      %v1519 = vld [vmem:[%s1473 + $0x168] sm:$0xff]
      %v1520 = vld [vmem:[%s1473 + $0x170] sm:$0xff]
      %v1521 = vld [vmem:[%s1473 + $0x178] sm:$0xff]
      %v1522 = vld [vmem:[%s1473 + $0x180] sm:$0xff]
      %v1523 = vld [vmem:[%s1473 + $0x188] sm:$0xff]
      %v1524 = vld [vmem:[%s1473 + $0x190] sm:$0xff]
      %v1525 = vld [vmem:[%s1473 + $0x198] sm:$0xff]
      %v1526 = vld [vmem:[%s1473 + $0x1a0] sm:$0xff]
      %v1527 = vld [vmem:[%s1473 + $0x1a8] sm:$0xff]
      %v1528 = vld [vmem:[%s1473 + $0x1b0] sm:$0xff]
      %v1529 = vld [vmem:[%s1473 + $0x1b8] sm:$0xff]
      %v1530 = vld [vmem:[%s1473 + $0x1c0] sm:$0xff]
      %v1531 = vld [vmem:[%s1473 + $0x1c8] sm:$0xff]
      %v1532 = vld [vmem:[%s1473 + $0x1d0] sm:$0xff]
      %v1533 = vld [vmem:[%s1473 + $0x1d8] sm:$0xff]
      %v1534 = vld [vmem:[%s1473 + $0x1e0] sm:$0xff]
      %v1535 = vld [vmem:[%s1473 + $0x1e8] sm:$0xff]
      %v1536 = vld [vmem:[%s1473 + $0x1f0] sm:$0xff]
      %v1537 = vld [vmem:[%s1473 + $0x1f8] sm:$0xff]
      %v1538 = vld [vmem:[%s1473 + $0x200] sm:$0xff]
      %v1539 = vld [vmem:[%s1473 + $0x208] sm:$0xff]
      %v1540 = vld [vmem:[%s1473 + $0x210] sm:$0xff]
      %v1541 = vld [vmem:[%s1473 + $0x218] sm:$0xff]
      %v1542 = vld [vmem:[%s1473 + $0x220] sm:$0xff]
      %v1543 = vld [vmem:[%s1473 + $0x228] sm:$0xff]
      %v1544 = vld [vmem:[%s1473 + $0x230] sm:$0xff]
      %v1545 = vld [vmem:[%s1473 + $0x238] sm:$0xff]
      %v1546 = vld [vmem:[%s1473 + $0x240] sm:$0xff]
      %v1547 = vld [vmem:[%s1473 + $0x248] sm:$0xff]
      %v1548 = vld [vmem:[%s1473 + $0x250] sm:$0xff]
      %v1549 = vld [vmem:[%s1473 + $0x258] sm:$0xff]
      %v1550 = vld [vmem:[%s1473 + $0x260] sm:$0xff]
      %v1551 = vld [vmem:[%s1473 + $0x268] sm:$0xff]
      %v1552 = vld [vmem:[%s1473 + $0x270] sm:$0xff]
      %v1553 = vld [vmem:[%s1473 + $0x278] sm:$0xff]
      %v1554 = vld [vmem:[%s1473 + $0x280] sm:$0xff]
      %v1555 = vld [vmem:[%s1473 + $0x288] sm:$0xff]
      %v1556 = vld [vmem:[%s1473 + $0x290] sm:$0xff]
      %v1557 = vld [vmem:[%s1473 + $0x298] sm:$0xff]
      %v1558 = vld [vmem:[%s1473 + $0x2a0] sm:$0xff]
      %v1559 = vld [vmem:[%s1473 + $0x2a8] sm:$0xff]
      %v1560 = vld [vmem:[%s1473 + $0x2b0] sm:$0xff]
      %v1561 = vld [vmem:[%s1473 + $0x2b8] sm:$0xff]
      %v1562 = vld [vmem:[%s1473 + $0x2c0] sm:$0xff]
      %v1563 = vld [vmem:[%s1473 + $0x2c8] sm:$0xff]
      %v1564 = vld [vmem:[%s1473 + $0x2d0] sm:$0xff]
      %v1565 = vld [vmem:[%s1473 + $0x2d8] sm:$0xff]
      %v1566 = vld [vmem:[%s1473 + $0x2e0] sm:$0xff]
      %v1567 = vld [vmem:[%s1473 + $0x2e8] sm:$0xff]
      %v1568 = vld [vmem:[%s1473 + $0x2f0] sm:$0xff]
      %v1569 = vld [vmem:[%s1473 + $0x2f8] sm:$0xff]
      %v1570 = vld [vmem:[%s1473 + $0x300] sm:$0xff]
      %v1571 = vld [vmem:[%s1473 + $0x308] sm:$0xff]
      %v1572 = vld [vmem:[%s1473 + $0x310] sm:$0xff]
      %v1573 = vld [vmem:[%s1473 + $0x318] sm:$0xff]
      %v1574 = vld [vmem:[%s1473 + $0x320] sm:$0xff]
      %v1575 = vld [vmem:[%s1473 + $0x328] sm:$0xff]
      %v1576 = vld [vmem:[%s1473 + $0x330] sm:$0xff]
      %v1577 = vld [vmem:[%s1473 + $0x338] sm:$0xff]
      %v1578 = vld [vmem:[%s1473 + $0x340] sm:$0xff]
      %v1579 = vld [vmem:[%s1473 + $0x348] sm:$0xff]
      %v1580 = vld [vmem:[%s1473 + $0x350] sm:$0xff]
      %v1581 = vld [vmem:[%s1473 + $0x358] sm:$0xff]
      %v1582 = vld [vmem:[%s1473 + $0x360] sm:$0xff]
      %v1583 = vld [vmem:[%s1473 + $0x368] sm:$0xff]
      %v1584 = vld [vmem:[%s1473 + $0x370] sm:$0xff]
      %v1585 = vld [vmem:[%s1473 + $0x378] sm:$0xff]
      %v1586 = vld [vmem:[%s1473 + $0x380] sm:$0xff]
      %v1587 = vld [vmem:[%s1473 + $0x388] sm:$0xff]
      %v1588 = vld [vmem:[%s1473 + $0x390] sm:$0xff]
      %v1589 = vld [vmem:[%s1473 + $0x398] sm:$0xff]
      %v1590 = vld [vmem:[%s1473 + $0x3a0] sm:$0xff]
      %v1591 = vld [vmem:[%s1473 + $0x3a8] sm:$0xff]
      %v1592 = vld [vmem:[%s1473 + $0x3b0] sm:$0xff]
      %v1593 = vld [vmem:[%s1473 + $0x3b8] sm:$0xff]
      %v1594 = vld [vmem:[%s1473 + $0x3c0] sm:$0xff]
      %v1595 = vld [vmem:[%s1473 + $0x3c8] sm:$0xff]
      %v1596 = vld [vmem:[%s1473 + $0x3d0] sm:$0xff]
      %v1597 = vld [vmem:[%s1473 + $0x3d8] sm:$0xff]
      %v1598 = vld [vmem:[%s1473 + $0x3e0] sm:$0xff]
      %v1599 = vld [vmem:[%s1473 + $0x3e8] sm:$0xff]
      %v1600 = vld [vmem:[%s1473 + $0x3f0] sm:$0xff]
      %v1601 = vld [vmem:[%s1473 + $0x3f8] sm:$0xff]
      %v1730 = vunpack.c.l.b16 %v1474
      %v1731 = vunpack.c.h.b16 %v1474
      %v1732 = vunpack.c.l.b16 %v1475
      %v1733 = vunpack.c.h.b16 %v1475
      %v1734 = vunpack.c.l.b16 %v1476
      %v1735 = vunpack.c.h.b16 %v1476
      %v1736 = vunpack.c.l.b16 %v1477
      %v1737 = vunpack.c.h.b16 %v1477
      %v1738 = vunpack.c.l.b16 %v1478
      %v1739 = vunpack.c.h.b16 %v1478
      %v1740 = vunpack.c.l.b16 %v1479
      %v1741 = vunpack.c.h.b16 %v1479
      %v1742 = vunpack.c.l.b16 %v1480
      %v1743 = vunpack.c.h.b16 %v1480
      %v1744 = vunpack.c.l.b16 %v1481
      %v1745 = vunpack.c.h.b16 %v1481
      %v1746 = vunpack.c.l.b16 %v1482
      %v1747 = vunpack.c.h.b16 %v1482
      %v1748 = vunpack.c.l.b16 %v1483
      %v1749 = vunpack.c.h.b16 %v1483
      %v1750 = vunpack.c.l.b16 %v1484
      %v1751 = vunpack.c.h.b16 %v1484
      %v1752 = vunpack.c.l.b16 %v1485
      %v1753 = vunpack.c.h.b16 %v1485
      %v1754 = vunpack.c.l.b16 %v1486
      %v1755 = vunpack.c.h.b16 %v1486
      %v1756 = vunpack.c.l.b16 %v1487
      %v1757 = vunpack.c.h.b16 %v1487
      %v1758 = vunpack.c.l.b16 %v1488
      %v1759 = vunpack.c.h.b16 %v1488
      %v1760 = vunpack.c.l.b16 %v1489
      %v1761 = vunpack.c.h.b16 %v1489
      %v1762 = vunpack.c.l.b16 %v1490
      %v1763 = vunpack.c.h.b16 %v1490
      %v1764 = vunpack.c.l.b16 %v1491
      %v1765 = vunpack.c.h.b16 %v1491
      %v1766 = vunpack.c.l.b16 %v1492
      %v1767 = vunpack.c.h.b16 %v1492
      %v1768 = vunpack.c.l.b16 %v1493
      %v1769 = vunpack.c.h.b16 %v1493
      %v1770 = vunpack.c.l.b16 %v1494
      %v1771 = vunpack.c.h.b16 %v1494
      %v1772 = vunpack.c.l.b16 %v1495
      %v1773 = vunpack.c.h.b16 %v1495
      %v1774 = vunpack.c.l.b16 %v1496
      %v1775 = vunpack.c.h.b16 %v1496
      %v1776 = vunpack.c.l.b16 %v1497
      %v1777 = vunpack.c.h.b16 %v1497
      %v1778 = vunpack.c.l.b16 %v1498
      %v1779 = vunpack.c.h.b16 %v1498
      %v1780 = vunpack.c.l.b16 %v1499
      %v1781 = vunpack.c.h.b16 %v1499
      %v1782 = vunpack.c.l.b16 %v1500
      %v1783 = vunpack.c.h.b16 %v1500
      %v1784 = vunpack.c.l.b16 %v1501
      %v1785 = vunpack.c.h.b16 %v1501
      %v1786 = vunpack.c.l.b16 %v1502
      %v1787 = vunpack.c.h.b16 %v1502
      %v1788 = vunpack.c.l.b16 %v1503
      %v1789 = vunpack.c.h.b16 %v1503
      %v1790 = vunpack.c.l.b16 %v1504
      %v1791 = vunpack.c.h.b16 %v1504
      %v1792 = vunpack.c.l.b16 %v1505
      %v1793 = vunpack.c.h.b16 %v1505
      %v1794 = vunpack.c.l.b16 %v1506
      %v1795 = vunpack.c.h.b16 %v1506
      %v1796 = vunpack.c.l.b16 %v1507
      %v1797 = vunpack.c.h.b16 %v1507
      %v1798 = vunpack.c.l.b16 %v1508
      %v1799 = vunpack.c.h.b16 %v1508
      %v1800 = vunpack.c.l.b16 %v1509
      %v1801 = vunpack.c.h.b16 %v1509
      %v1802 = vunpack.c.l.b16 %v1510
      %v1803 = vunpack.c.h.b16 %v1510
      %v1804 = vunpack.c.l.b16 %v1511
      %v1805 = vunpack.c.h.b16 %v1511
      %v1806 = vunpack.c.l.b16 %v1512
      %v1807 = vunpack.c.h.b16 %v1512
      %v1808 = vunpack.c.l.b16 %v1513
      %v1809 = vunpack.c.h.b16 %v1513
      %v1810 = vunpack.c.l.b16 %v1514
      %v1811 = vunpack.c.h.b16 %v1514
      %v1812 = vunpack.c.l.b16 %v1515
      %v1813 = vunpack.c.h.b16 %v1515
      %v1814 = vunpack.c.l.b16 %v1516
      %v1815 = vunpack.c.h.b16 %v1516
      %v1816 = vunpack.c.l.b16 %v1517
      %v1817 = vunpack.c.h.b16 %v1517
      %v1818 = vunpack.c.l.b16 %v1518
      %v1819 = vunpack.c.h.b16 %v1518
      %v1820 = vunpack.c.l.b16 %v1519
      %v1821 = vunpack.c.h.b16 %v1519
      %v1822 = vunpack.c.l.b16 %v1520
      %v1823 = vunpack.c.h.b16 %v1520
      %v1824 = vunpack.c.l.b16 %v1521
      %v1825 = vunpack.c.h.b16 %v1521
      %v1826 = vunpack.c.l.b16 %v1522
      %v1827 = vunpack.c.h.b16 %v1522
      %v1828 = vunpack.c.l.b16 %v1523
      %v1829 = vunpack.c.h.b16 %v1523
      %v1830 = vunpack.c.l.b16 %v1524
      %v1831 = vunpack.c.h.b16 %v1524
      %v1832 = vunpack.c.l.b16 %v1525
      %v1833 = vunpack.c.h.b16 %v1525
      %v1834 = vunpack.c.l.b16 %v1526
      %v1835 = vunpack.c.h.b16 %v1526
      %v1836 = vunpack.c.l.b16 %v1527
      %v1837 = vunpack.c.h.b16 %v1527
      %v1838 = vunpack.c.l.b16 %v1528
      %v1839 = vunpack.c.h.b16 %v1528
      %v1840 = vunpack.c.l.b16 %v1529
      %v1841 = vunpack.c.h.b16 %v1529
      %v1842 = vunpack.c.l.b16 %v1530
      %v1843 = vunpack.c.h.b16 %v1530
      %v1844 = vunpack.c.l.b16 %v1531
      %v1845 = vunpack.c.h.b16 %v1531
      %v1846 = vunpack.c.l.b16 %v1532
      %v1847 = vunpack.c.h.b16 %v1532
      %v1848 = vunpack.c.l.b16 %v1533
      %v1849 = vunpack.c.h.b16 %v1533
      %v1850 = vunpack.c.l.b16 %v1534
      %v1851 = vunpack.c.h.b16 %v1534
      %v1852 = vunpack.c.l.b16 %v1535
      %v1853 = vunpack.c.h.b16 %v1535
      %v1854 = vunpack.c.l.b16 %v1536
      %v1855 = vunpack.c.h.b16 %v1536
      %v1856 = vunpack.c.l.b16 %v1537
      %v1857 = vunpack.c.h.b16 %v1537
      %v1858 = vunpack.c.l.b16 %v1538
      %v1859 = vunpack.c.h.b16 %v1538
      %v1860 = vunpack.c.l.b16 %v1539
      %v1861 = vunpack.c.h.b16 %v1539
      %v1862 = vunpack.c.l.b16 %v1540
      %v1863 = vunpack.c.h.b16 %v1540
      %v1864 = vunpack.c.l.b16 %v1541
      %v1865 = vunpack.c.h.b16 %v1541
      %v1866 = vunpack.c.l.b16 %v1542
      %v1867 = vunpack.c.h.b16 %v1542
      %v1868 = vunpack.c.l.b16 %v1543
      %v1869 = vunpack.c.h.b16 %v1543
      %v1870 = vunpack.c.l.b16 %v1544
      %v1871 = vunpack.c.h.b16 %v1544
      %v1872 = vunpack.c.l.b16 %v1545
      %v1873 = vunpack.c.h.b16 %v1545
      %v1874 = vunpack.c.l.b16 %v1546
      %v1875 = vunpack.c.h.b16 %v1546
      %v1876 = vunpack.c.l.b16 %v1547
      %v1877 = vunpack.c.h.b16 %v1547
      %v1878 = vunpack.c.l.b16 %v1548
      %v1879 = vunpack.c.h.b16 %v1548
      %v1880 = vunpack.c.l.b16 %v1549
      %v1881 = vunpack.c.h.b16 %v1549
      %v1882 = vunpack.c.l.b16 %v1550
      %v1883 = vunpack.c.h.b16 %v1550
      %v1884 = vunpack.c.l.b16 %v1551
      %v1885 = vunpack.c.h.b16 %v1551
      %v1886 = vunpack.c.l.b16 %v1552
      %v1887 = vunpack.c.h.b16 %v1552
      %v1888 = vunpack.c.l.b16 %v1553
      %v1889 = vunpack.c.h.b16 %v1553
      %v1890 = vunpack.c.l.b16 %v1554
      %v1891 = vunpack.c.h.b16 %v1554
      %v1892 = vunpack.c.l.b16 %v1555
      %v1893 = vunpack.c.h.b16 %v1555
      %v1894 = vunpack.c.l.b16 %v1556
      %v1895 = vunpack.c.h.b16 %v1556
      %v1896 = vunpack.c.l.b16 %v1557
      %v1897 = vunpack.c.h.b16 %v1557
      %v1898 = vunpack.c.l.b16 %v1558
      %v1899 = vunpack.c.h.b16 %v1558
      %v1900 = vunpack.c.l.b16 %v1559
      %v1901 = vunpack.c.h.b16 %v1559
      %v1902 = vunpack.c.l.b16 %v1560
      %v1903 = vunpack.c.h.b16 %v1560
      %v1904 = vunpack.c.l.b16 %v1561
      %v1905 = vunpack.c.h.b16 %v1561
      %v1906 = vunpack.c.l.b16 %v1562
      %v1907 = vunpack.c.h.b16 %v1562
      %v1908 = vunpack.c.l.b16 %v1563
      %v1909 = vunpack.c.h.b16 %v1563
      %v1910 = vunpack.c.l.b16 %v1564
      %v1911 = vunpack.c.h.b16 %v1564
      %v1912 = vunpack.c.l.b16 %v1565
      %v1913 = vunpack.c.h.b16 %v1565
      %v1914 = vunpack.c.l.b16 %v1566
      %v1915 = vunpack.c.h.b16 %v1566
      %v1916 = vunpack.c.l.b16 %v1567
      %v1917 = vunpack.c.h.b16 %v1567
      %v1918 = vunpack.c.l.b16 %v1568
      %v1919 = vunpack.c.h.b16 %v1568
      %v1920 = vunpack.c.l.b16 %v1569
      %v1921 = vunpack.c.h.b16 %v1569
      %v1922 = vunpack.c.l.b16 %v1570
      %v1923 = vunpack.c.h.b16 %v1570
      %v1924 = vunpack.c.l.b16 %v1571
      %v1925 = vunpack.c.h.b16 %v1571
      %v1926 = vunpack.c.l.b16 %v1572
      %v1927 = vunpack.c.h.b16 %v1572
      %v1928 = vunpack.c.l.b16 %v1573
      %v1929 = vunpack.c.h.b16 %v1573
      %v1930 = vunpack.c.l.b16 %v1574
      %v1931 = vunpack.c.h.b16 %v1574
      %v1932 = vunpack.c.l.b16 %v1575
      %v1933 = vunpack.c.h.b16 %v1575
      %v1934 = vunpack.c.l.b16 %v1576
      %v1935 = vunpack.c.h.b16 %v1576
      %v1936 = vunpack.c.l.b16 %v1577
      %v1937 = vunpack.c.h.b16 %v1577
      %v1938 = vunpack.c.l.b16 %v1578
      %v1939 = vunpack.c.h.b16 %v1578
      %v1940 = vunpack.c.l.b16 %v1579
      %v1941 = vunpack.c.h.b16 %v1579
      %v1942 = vunpack.c.l.b16 %v1580
      %v1943 = vunpack.c.h.b16 %v1580
      %v1944 = vunpack.c.l.b16 %v1581
      %v1945 = vunpack.c.h.b16 %v1581
      %v1946 = vunpack.c.l.b16 %v1582
      %v1947 = vunpack.c.h.b16 %v1582
      %v1948 = vunpack.c.l.b16 %v1583
      %v1949 = vunpack.c.h.b16 %v1583
      %v1950 = vunpack.c.l.b16 %v1584
      %v1951 = vunpack.c.h.b16 %v1584
      %v1952 = vunpack.c.l.b16 %v1585
      %v1953 = vunpack.c.h.b16 %v1585
      %v1954 = vunpack.c.l.b16 %v1586
      %v1955 = vunpack.c.h.b16 %v1586
      %v1956 = vunpack.c.l.b16 %v1587
      %v1957 = vunpack.c.h.b16 %v1587
      %v1958 = vunpack.c.l.b16 %v1588
      %v1959 = vunpack.c.h.b16 %v1588
      %v1960 = vunpack.c.l.b16 %v1589
      %v1961 = vunpack.c.h.b16 %v1589
      %v1962 = vunpack.c.l.b16 %v1590
      %v1963 = vunpack.c.h.b16 %v1590
      %v1964 = vunpack.c.l.b16 %v1591
      %v1965 = vunpack.c.h.b16 %v1591
      %v1966 = vunpack.c.l.b16 %v1592
      %v1967 = vunpack.c.h.b16 %v1592
      %v1968 = vunpack.c.l.b16 %v1593
      %v1969 = vunpack.c.h.b16 %v1593
      %v1970 = vunpack.c.l.b16 %v1594
      %v1971 = vunpack.c.h.b16 %v1594
      %v1972 = vunpack.c.l.b16 %v1595
      %v1973 = vunpack.c.h.b16 %v1595
      %v1974 = vunpack.c.l.b16 %v1596
      %v1975 = vunpack.c.h.b16 %v1596
      %v1976 = vunpack.c.l.b16 %v1597
      %v1977 = vunpack.c.h.b16 %v1597
      %v1978 = vunpack.c.l.b16 %v1598
      %v1979 = vunpack.c.h.b16 %v1598
      %v1980 = vunpack.c.l.b16 %v1599
      %v1981 = vunpack.c.h.b16 %v1599
      %v1982 = vunpack.c.l.b16 %v1600
      %v1983 = vunpack.c.h.b16 %v1600
      %v1984 = vunpack.c.l.b16 %v1601
      %v1985 = vunpack.c.h.b16 %v1601
      %v1986 = vpack.c.b16 %v1734, %v1730
      %v1987 = vpack.c.b16 %v1735, %v1731
      %v1988 = vpack.c.b16 %v1736, %v1732
      %v1989 = vpack.c.b16 %v1737, %v1733
      %v1990 = vpack.c.b16 %v1742, %v1738
      %v1991 = vpack.c.b16 %v1743, %v1739
      %v1992 = vpack.c.b16 %v1744, %v1740
      %v1993 = vpack.c.b16 %v1745, %v1741
      %v1994 = vpack.c.b16 %v1750, %v1746
      %v1995 = vpack.c.b16 %v1751, %v1747
      %v1996 = vpack.c.b16 %v1752, %v1748
      %v1997 = vpack.c.b16 %v1753, %v1749
      %v1998 = vpack.c.b16 %v1758, %v1754
      %v1999 = vpack.c.b16 %v1759, %v1755
      %v2000 = vpack.c.b16 %v1760, %v1756
      %v2001 = vpack.c.b16 %v1761, %v1757
      %v2002 = vpack.c.b16 %v1766, %v1762
      %v2003 = vpack.c.b16 %v1767, %v1763
      %v2004 = vpack.c.b16 %v1768, %v1764
      %v2005 = vpack.c.b16 %v1769, %v1765
      %v2006 = vpack.c.b16 %v1774, %v1770
      %v2007 = vpack.c.b16 %v1775, %v1771
      %v2008 = vpack.c.b16 %v1776, %v1772
      %v2009 = vpack.c.b16 %v1777, %v1773
      %v2010 = vpack.c.b16 %v1782, %v1778
      %v2011 = vpack.c.b16 %v1783, %v1779
      %v2012 = vpack.c.b16 %v1784, %v1780
      %v2013 = vpack.c.b16 %v1785, %v1781
      %v2014 = vpack.c.b16 %v1790, %v1786
      %v2015 = vpack.c.b16 %v1791, %v1787
      %v2016 = vpack.c.b16 %v1792, %v1788
      %v2017 = vpack.c.b16 %v1793, %v1789
      %v2018 = vpack.c.b16 %v1798, %v1794
      %v2019 = vpack.c.b16 %v1799, %v1795
      %v2020 = vpack.c.b16 %v1800, %v1796
      %v2021 = vpack.c.b16 %v1801, %v1797
      %v2022 = vpack.c.b16 %v1806, %v1802
      %v2023 = vpack.c.b16 %v1807, %v1803
      %v2024 = vpack.c.b16 %v1808, %v1804
      %v2025 = vpack.c.b16 %v1809, %v1805
      %v2026 = vpack.c.b16 %v1814, %v1810
      %v2027 = vpack.c.b16 %v1815, %v1811
      %v2028 = vpack.c.b16 %v1816, %v1812
      %v2029 = vpack.c.b16 %v1817, %v1813
      %v2030 = vpack.c.b16 %v1822, %v1818
      %v2031 = vpack.c.b16 %v1823, %v1819
      %v2032 = vpack.c.b16 %v1824, %v1820
      %v2033 = vpack.c.b16 %v1825, %v1821
      %v2034 = vpack.c.b16 %v1830, %v1826
      %v2035 = vpack.c.b16 %v1831, %v1827
      %v2036 = vpack.c.b16 %v1832, %v1828
      %v2037 = vpack.c.b16 %v1833, %v1829
      %v2038 = vpack.c.b16 %v1838, %v1834
      %v2039 = vpack.c.b16 %v1839, %v1835
      %v2040 = vpack.c.b16 %v1840, %v1836
      %v2041 = vpack.c.b16 %v1841, %v1837
      %v2042 = vpack.c.b16 %v1846, %v1842
      %v2043 = vpack.c.b16 %v1847, %v1843
      %v2044 = vpack.c.b16 %v1848, %v1844
      %v2045 = vpack.c.b16 %v1849, %v1845
      %v2046 = vpack.c.b16 %v1854, %v1850
      %v2047 = vpack.c.b16 %v1855, %v1851
      %v2048 = vpack.c.b16 %v1856, %v1852
      %v2049 = vpack.c.b16 %v1857, %v1853
      %v2050 = vpack.c.b16 %v1862, %v1858
      %v2051 = vpack.c.b16 %v1863, %v1859
      %v2052 = vpack.c.b16 %v1864, %v1860
      %v2053 = vpack.c.b16 %v1865, %v1861
      %v2054 = vpack.c.b16 %v1870, %v1866
      %v2055 = vpack.c.b16 %v1871, %v1867
      %v2056 = vpack.c.b16 %v1872, %v1868
      %v2057 = vpack.c.b16 %v1873, %v1869
      %v2058 = vpack.c.b16 %v1878, %v1874
      %v2059 = vpack.c.b16 %v1879, %v1875
      %v2060 = vpack.c.b16 %v1880, %v1876
      %v2061 = vpack.c.b16 %v1881, %v1877
      %v2062 = vpack.c.b16 %v1886, %v1882
      %v2063 = vpack.c.b16 %v1887, %v1883
      %v2064 = vpack.c.b16 %v1888, %v1884
      %v2065 = vpack.c.b16 %v1889, %v1885
      %v2066 = vpack.c.b16 %v1894, %v1890
      %v2067 = vpack.c.b16 %v1895, %v1891
      %v2068 = vpack.c.b16 %v1896, %v1892
      %v2069 = vpack.c.b16 %v1897, %v1893
      %v2070 = vpack.c.b16 %v1902, %v1898
      %v2071 = vpack.c.b16 %v1903, %v1899
      %v2072 = vpack.c.b16 %v1904, %v1900
      %v2073 = vpack.c.b16 %v1905, %v1901
      %v2074 = vpack.c.b16 %v1910, %v1906
      %v2075 = vpack.c.b16 %v1911, %v1907
      %v2076 = vpack.c.b16 %v1912, %v1908
      %v2077 = vpack.c.b16 %v1913, %v1909
      %v2078 = vpack.c.b16 %v1918, %v1914
      %v2079 = vpack.c.b16 %v1919, %v1915
      %v2080 = vpack.c.b16 %v1920, %v1916
      %v2081 = vpack.c.b16 %v1921, %v1917
      %v2082 = vpack.c.b16 %v1926, %v1922
      %v2083 = vpack.c.b16 %v1927, %v1923
      %v2084 = vpack.c.b16 %v1928, %v1924
      %v2085 = vpack.c.b16 %v1929, %v1925
      %v2086 = vpack.c.b16 %v1934, %v1930
      %v2087 = vpack.c.b16 %v1935, %v1931
      %v2088 = vpack.c.b16 %v1936, %v1932
      %v2089 = vpack.c.b16 %v1937, %v1933
      %v2090 = vpack.c.b16 %v1942, %v1938
      %v2091 = vpack.c.b16 %v1943, %v1939
      %v2092 = vpack.c.b16 %v1944, %v1940
      %v2093 = vpack.c.b16 %v1945, %v1941
      %v2094 = vpack.c.b16 %v1950, %v1946
      %v2095 = vpack.c.b16 %v1951, %v1947
      %v2096 = vpack.c.b16 %v1952, %v1948
      %v2097 = vpack.c.b16 %v1953, %v1949
      %v2098 = vpack.c.b16 %v1958, %v1954
      %v2099 = vpack.c.b16 %v1959, %v1955
      %v2100 = vpack.c.b16 %v1960, %v1956
      %v2101 = vpack.c.b16 %v1961, %v1957
      %v2102 = vpack.c.b16 %v1966, %v1962
      %v2103 = vpack.c.b16 %v1967, %v1963
      %v2104 = vpack.c.b16 %v1968, %v1964
      %v2105 = vpack.c.b16 %v1969, %v1965
      %v2106 = vpack.c.b16 %v1974, %v1970
      %v2107 = vpack.c.b16 %v1975, %v1971
      %v2108 = vpack.c.b16 %v1976, %v1972
      %v2109 = vpack.c.b16 %v1977, %v1973
      %v2110 = vpack.c.b16 %v1982, %v1978
      %v2111 = vpack.c.b16 %v1983, %v1979
      %v2112 = vpack.c.b16 %v1984, %v1980
      %v2113 = vpack.c.b16 %v1985, %v1981
      %2242 = vmatprep.subr.bf16.mxu0 %v1987
      %2243 = vmatpush1.bf16.msra.mxu0 %v1986
      %2244 = vmatprep.subr.bf16.mxu0 %v1991
      %2245 = vmatpush1.bf16.msra.mxu0 %v1990
      %2246 = vmatprep.subr.bf16.mxu0 %v1995
      %2247 = vmatpush1.bf16.msra.mxu0 %v1994
      %2248 = vmatprep.subr.bf16.mxu0 %v1999
      %2249 = vmatpush1.bf16.msra.mxu0 %v1998
      %2250 = vmatprep.subr.bf16.mxu0 %v2003
      %2251 = vmatpush1.bf16.msra.mxu0 %v2002
      %2252 = vmatprep.subr.bf16.mxu0 %v2007
      %2253 = vmatpush1.bf16.msra.mxu0 %v2006
      %2254 = vmatprep.subr.bf16.mxu0 %v2011
      %2255 = vmatpush1.bf16.msra.mxu0 %v2010
      %2256 = vmatprep.subr.bf16.mxu0 %v2015
      %2257 = vmatpush1.bf16.msra.mxu0 %v2014
      %2258 = vmatprep.subr.bf16.mxu0 %v2019
      %2259 = vmatpush1.bf16.msra.mxu0 %v2018
      %2260 = vmatprep.subr.bf16.mxu0 %v2023
      %2261 = vmatpush1.bf16.msra.mxu0 %v2022
      %2262 = vmatprep.subr.bf16.mxu0 %v2027
      %2263 = vmatpush1.bf16.msra.mxu0 %v2026
      %2264 = vmatprep.subr.bf16.mxu0 %v2031
      %2265 = vmatpush1.bf16.msra.mxu0 %v2030
      %2266 = vmatprep.subr.bf16.mxu0 %v2035
      %2267 = vmatpush1.bf16.msra.mxu0 %v2034
      %2268 = vmatprep.subr.bf16.mxu0 %v2039
      %2269 = vmatpush1.bf16.msra.mxu0 %v2038
      %2270 = vmatprep.subr.bf16.mxu0 %v2043
      %2271 = vmatpush1.bf16.msra.mxu0 %v2042
      %2272 = vmatprep.subr.bf16.mxu0 %v2047
      %2273 = vmatpush1.bf16.msra.mxu0 %v2046
      %2274 = vmatprep.mubr.bf16.mxu0 %v1466
      %2275 = vmatmul.mubr.bf16.gmra.mrb[0].mxu0 %v1465
      %v2276 = vpop.f32.mrb[0].mxu0
      %v2277 = vadd.f32 0.0, %v2276
      %v2278 = vpop.f32.mrb[0].mxu0
      %v2279 = vadd.f32 0.0, %v2278
      %v2280 = vpop.f32.mrb[0].mxu0
      %v2281 = vadd.f32 0.0, %v2280
      %v2282 = vpop.f32.mrb[0].mxu0
      %v2283 = vadd.f32 0.0, %v2282
      %2284 = vmatprep.mubr.bf16.mxu0 %v1470
      %2285 = vmatmul.mubr.bf16.gmra.mrb[0].mxu0 %v1469
      %v2286 = vpop.f32.mrb[0].mxu0
      %v2287 = vadd.f32 0.0, %v2286
      %v2288 = vpop.f32.mrb[0].mxu0
      %v2289 = vadd.f32 0.0, %v2288
      %v2290 = vpop.f32.mrb[0].mxu0
      %v2291 = vadd.f32 0.0, %v2290
      %v2292 = vpop.f32.mrb[0].mxu0
      %v2293 = vadd.f32 0.0, %v2292
      %2294 = vdwg.mxu0
      %2295 = vmatprep.subr.bf16.mxu0 %v2051
      %2296 = vmatpush1.bf16.msra.mxu0 %v2050
      %2297 = vmatprep.subr.bf16.mxu0 %v2055
      %2298 = vmatpush1.bf16.msra.mxu0 %v2054
      %2299 = vmatprep.subr.bf16.mxu0 %v2059
      %2300 = vmatpush1.bf16.msra.mxu0 %v2058
      %2301 = vmatprep.subr.bf16.mxu0 %v2063
      %2302 = vmatpush1.bf16.msra.mxu0 %v2062
      %2303 = vmatprep.subr.bf16.mxu0 %v2067
      %2304 = vmatpush1.bf16.msra.mxu0 %v2066
      %2305 = vmatprep.subr.bf16.mxu0 %v2071
      %2306 = vmatpush1.bf16.msra.mxu0 %v2070
      %2307 = vmatprep.subr.bf16.mxu0 %v2075
      %2308 = vmatpush1.bf16.msra.mxu0 %v2074
      %2309 = vmatprep.subr.bf16.mxu0 %v2079
      %2310 = vmatpush1.bf16.msra.mxu0 %v2078
      %2311 = vmatprep.subr.bf16.mxu0 %v2083
      %2312 = vmatpush1.bf16.msra.mxu0 %v2082
      %2313 = vmatprep.subr.bf16.mxu0 %v2087
      %2314 = vmatpush1.bf16.msra.mxu0 %v2086
      %2315 = vmatprep.subr.bf16.mxu0 %v2091
      %2316 = vmatpush1.bf16.msra.mxu0 %v2090
      %2317 = vmatprep.subr.bf16.mxu0 %v2095
      %2318 = vmatpush1.bf16.msra.mxu0 %v2094
      %2319 = vmatprep.subr.bf16.mxu0 %v2099
      %2320 = vmatpush1.bf16.msra.mxu0 %v2098
      %2321 = vmatprep.subr.bf16.mxu0 %v2103
      %2322 = vmatpush1.bf16.msra.mxu0 %v2102
      %2323 = vmatprep.subr.bf16.mxu0 %v2107
      %2324 = vmatpush1.bf16.msra.mxu0 %v2106
      %2325 = vmatprep.subr.bf16.mxu0 %v2111
      %2326 = vmatpush1.bf16.msra.mxu0 %v2110
      %2327 = vmatprep.mubr.bf16.mxu0 %v1468
      %2328 = vmatmul.mubr.bf16.gmra.mrb[0].mxu0 %v1467
      %v2329 = vpop.f32.mrb[0].mxu0
      %v2330 = vadd.f32 %v2277, %v2329
      %v2331 = vpop.f32.mrb[0].mxu0
      %v2332 = vadd.f32 %v2279, %v2331
      %v2333 = vpop.f32.mrb[0].mxu0
      %v2334 = vadd.f32 %v2281, %v2333
      %v2335 = vpop.f32.mrb[0].mxu0
      %v2336 = vadd.f32 %v2283, %v2335
      %2337 = vmatprep.mubr.bf16.mxu0 %v1472
      %2338 = vmatmul.mubr.bf16.gmra.mrb[0].mxu0 %v1471
      %v2339 = vpop.f32.mrb[0].mxu0
      %v2340 = vadd.f32 %v2287, %v2339
      %v2341 = vpop.f32.mrb[0].mxu0
      %v2342 = vadd.f32 %v2289, %v2341
      %v2343 = vpop.f32.mrb[0].mxu0
      %v2344 = vadd.f32 %v2291, %v2343
      %v2345 = vpop.f32.mrb[0].mxu0
      %v2346 = vadd.f32 %v2293, %v2345
      %2347 = vdwg.mxu0
      %2348 = vmatprep.subr.bf16.mxu0 %v1989
      %2349 = vmatpush1.bf16.msra.mxu0 %v1988
      %2350 = vmatprep.subr.bf16.mxu0 %v1993
      %2351 = vmatpush1.bf16.msra.mxu0 %v1992
      %2352 = vmatprep.subr.bf16.mxu0 %v1997
      %2353 = vmatpush1.bf16.msra.mxu0 %v1996
      %2354 = vmatprep.subr.bf16.mxu0 %v2001
      %2355 = vmatpush1.bf16.msra.mxu0 %v2000
      %2356 = vmatprep.subr.bf16.mxu0 %v2005
      %2357 = vmatpush1.bf16.msra.mxu0 %v2004
      %2358 = vmatprep.subr.bf16.mxu0 %v2009
      %2359 = vmatpush1.bf16.msra.mxu0 %v2008
      %2360 = vmatprep.subr.bf16.mxu0 %v2013
      %2361 = vmatpush1.bf16.msra.mxu0 %v2012
      %2362 = vmatprep.subr.bf16.mxu0 %v2017
      %2363 = vmatpush1.bf16.msra.mxu0 %v2016
      %2364 = vmatprep.subr.bf16.mxu0 %v2021
      %2365 = vmatpush1.bf16.msra.mxu0 %v2020
      %2366 = vmatprep.subr.bf16.mxu0 %v2025
      %2367 = vmatpush1.bf16.msra.mxu0 %v2024
      %2368 = vmatprep.subr.bf16.mxu0 %v2029
      %2369 = vmatpush1.bf16.msra.mxu0 %v2028
      %2370 = vmatprep.subr.bf16.mxu0 %v2033
      %2371 = vmatpush1.bf16.msra.mxu0 %v2032
      %2372 = vmatprep.subr.bf16.mxu0 %v2037
      %2373 = vmatpush1.bf16.msra.mxu0 %v2036
      %2374 = vmatprep.subr.bf16.mxu0 %v2041
      %2375 = vmatpush1.bf16.msra.mxu0 %v2040
      %2376 = vmatprep.subr.bf16.mxu0 %v2045
      %2377 = vmatpush1.bf16.msra.mxu0 %v2044
      %2378 = vmatprep.subr.bf16.mxu0 %v2049
      %2379 = vmatpush1.bf16.msra.mxu0 %v2048
      %2380 = vmatprep.mubr.bf16.mxu0 %v1466
      %2381 = vmatmul.mubr.bf16.gmra.mrb[0].mxu0 %v1465
      %v2382 = vpop.f32.mrb[0].mxu0
      %v2383 = vadd.f32 0.0, %v2382
      %v2384 = vpop.f32.mrb[0].mxu0
      %v2385 = vadd.f32 0.0, %v2384
      %v2386 = vpop.f32.mrb[0].mxu0
      %v2387 = vadd.f32 0.0, %v2386
      %v2388 = vpop.f32.mrb[0].mxu0
      %v2389 = vadd.f32 0.0, %v2388
      %2390 = vmatprep.mubr.bf16.mxu0 %v1470
      %2391 = vmatmul.mubr.bf16.gmra.mrb[0].mxu0 %v1469
      %v2392 = vpop.f32.mrb[0].mxu0
      %v2393 = vadd.f32 0.0, %v2392
      %v2394 = vpop.f32.mrb[0].mxu0
      %v2395 = vadd.f32 0.0, %v2394
      %v2396 = vpop.f32.mrb[0].mxu0
      %v2397 = vadd.f32 0.0, %v2396
      %v2398 = vpop.f32.mrb[0].mxu0
      %v2399 = vadd.f32 0.0, %v2398
      %2400 = vdwg.mxu0
      %2401 = vmatprep.subr.bf16.mxu0 %v2053
      %2402 = vmatpush1.bf16.msra.mxu0 %v2052
      %2403 = vmatprep.subr.bf16.mxu0 %v2057
      %2404 = vmatpush1.bf16.msra.mxu0 %v2056
      %2405 = vmatprep.subr.bf16.mxu0 %v2061
      %2406 = vmatpush1.bf16.msra.mxu0 %v2060
      %2407 = vmatprep.subr.bf16.mxu0 %v2065
      %2408 = vmatpush1.bf16.msra.mxu0 %v2064
      %2409 = vmatprep.subr.bf16.mxu0 %v2069
      %2410 = vmatpush1.bf16.msra.mxu0 %v2068
      %2411 = vmatprep.subr.bf16.mxu0 %v2073
      %2412 = vmatpush1.bf16.msra.mxu0 %v2072
      %2413 = vmatprep.subr.bf16.mxu0 %v2077
      %2414 = vmatpush1.bf16.msra.mxu0 %v2076
      %2415 = vmatprep.subr.bf16.mxu0 %v2081
      %2416 = vmatpush1.bf16.msra.mxu0 %v2080
      %2417 = vmatprep.subr.bf16.mxu0 %v2085
      %2418 = vmatpush1.bf16.msra.mxu0 %v2084
      %2419 = vmatprep.subr.bf16.mxu0 %v2089
      %2420 = vmatpush1.bf16.msra.mxu0 %v2088
      %2421 = vmatprep.subr.bf16.mxu0 %v2093
      %2422 = vmatpush1.bf16.msra.mxu0 %v2092
      %2423 = vmatprep.subr.bf16.mxu0 %v2097
      %2424 = vmatpush1.bf16.msra.mxu0 %v2096
      %2425 = vmatprep.subr.bf16.mxu0 %v2101
      %2426 = vmatpush1.bf16.msra.mxu0 %v2100
      %2427 = vmatprep.subr.bf16.mxu0 %v2105
      %2428 = vmatpush1.bf16.msra.mxu0 %v2104
      %2429 = vmatprep.subr.bf16.mxu0 %v2109
      %2430 = vmatpush1.bf16.msra.mxu0 %v2108
      %2431 = vmatprep.subr.bf16.mxu0 %v2113
      %2432 = vmatpush1.bf16.msra.mxu0 %v2112
      %2433 = vmatprep.mubr.bf16.mxu0 %v1468
      %2434 = vmatmul.mubr.bf16.gmra.mrb[0].mxu0 %v1467
      %v2435 = vpop.f32.mrb[0].mxu0
      %v2436 = vadd.f32 %v2383, %v2435
      %v2437 = vpop.f32.mrb[0].mxu0
      %v2438 = vadd.f32 %v2385, %v2437
      %v2439 = vpop.f32.mrb[0].mxu0
      %v2440 = vadd.f32 %v2387, %v2439
      %v2441 = vpop.f32.mrb[0].mxu0
      %v2442 = vadd.f32 %v2389, %v2441
      %2443 = vmatprep.mubr.bf16.mxu0 %v1472
      %2444 = vmatmul.mubr.bf16.gmra.mrb[0].mxu0 %v1471
      %v2445 = vpop.f32.mrb[0].mxu0
      %v2446 = vadd.f32 %v2393, %v2445
      %v2447 = vpop.f32.mrb[0].mxu0
      %v2448 = vadd.f32 %v2395, %v2447
      %v2449 = vpop.f32.mrb[0].mxu0
      %v2450 = vadd.f32 %v2397, %v2449
      %v2451 = vpop.f32.mrb[0].mxu0
      %v2452 = vadd.f32 %v2399, %v2451
      %2453 = vdwg.mxu0
      %vm2454 = vsmask.f32 4352
      %v2456 = vshrl.u32 %v1321, 16
      %v2458 = vrot.slane %v2456, 3
      %v2459 = vshll.u32 %v1321, 16
      %v2461 = vrot.slane %v2459, 4
      %v2462 = vor.u32 %v2458, %v2461
      %v2464 = vshrl.u32 %v1325, 16
      %v2466 = vrot.slane %v2464, 3
      %v2467 = vshll.u32 %v1325, 16
      %v2469 = vrot.slane %v2467, 4
      %v2470 = vor.u32 %v2466, %v2469
      %v2471 = vsel %vm2454, %v2462, %v2470
      %v2473 = vshrl.u32 %v1322, 16
      %v2475 = vrot.slane %v2473, 3
      %v2476 = vshll.u32 %v1322, 16
      %v2478 = vrot.slane %v2476, 4
      %v2479 = vor.u32 %v2475, %v2478
      %v2481 = vshrl.u32 %v1326, 16
      %v2483 = vrot.slane %v2481, 3
      %v2484 = vshll.u32 %v1326, 16
      %v2486 = vrot.slane %v2484, 4
      %v2487 = vor.u32 %v2483, %v2486
      %v2488 = vsel %vm2454, %v2479, %v2487
      %v2490 = vshrl.u32 %v1323, 16
      %v2492 = vrot.slane %v2490, 3
      %v2493 = vshll.u32 %v1323, 16
      %v2495 = vrot.slane %v2493, 4
      %v2496 = vor.u32 %v2492, %v2495
      %v2498 = vshrl.u32 %v1327, 16
      %v2500 = vrot.slane %v2498, 3
      %v2501 = vshll.u32 %v1327, 16
      %v2503 = vrot.slane %v2501, 4
      %v2504 = vor.u32 %v2500, %v2503
      %v2505 = vsel %vm2454, %v2496, %v2504
      %v2507 = vshrl.u32 %v1324, 16
      %v2509 = vrot.slane %v2507, 3
      %v2510 = vshll.u32 %v1324, 16
      %v2512 = vrot.slane %v2510, 4
      %v2513 = vor.u32 %v2509, %v2512
      %v2515 = vshrl.u32 %v1328, 16
      %v2517 = vrot.slane %v2515, 3
      %v2518 = vshll.u32 %v1328, 16
      %v2520 = vrot.slane %v2518, 4
      %v2521 = vor.u32 %v2517, %v2520
      %v2522 = vsel %vm2454, %v2513, %v2521
      %v2524 = vshrl.u32 %v1329, 16
      %v2526 = vrot.slane %v2524, 3
      %v2527 = vshll.u32 %v1329, 16
      %v2529 = vrot.slane %v2527, 4
      %v2530 = vor.u32 %v2526, %v2529
      %v2531 = vsel %vm2454, %v2470, %v2530
      %v2533 = vshrl.u32 %v1330, 16
      %v2535 = vrot.slane %v2533, 3
      %v2536 = vshll.u32 %v1330, 16
      %v2538 = vrot.slane %v2536, 4
      %v2539 = vor.u32 %v2535, %v2538
      %v2540 = vsel %vm2454, %v2487, %v2539
      %v2542 = vshrl.u32 %v1331, 16
      %v2544 = vrot.slane %v2542, 3
      %v2545 = vshll.u32 %v1331, 16
      %v2547 = vrot.slane %v2545, 4
      %v2548 = vor.u32 %v2544, %v2547
      %v2549 = vsel %vm2454, %v2504, %v2548
      %v2551 = vshrl.u32 %v1332, 16
      %v2553 = vrot.slane %v2551, 3
      %v2554 = vshll.u32 %v1332, 16
      %v2556 = vrot.slane %v2554, 4
      %v2557 = vor.u32 %v2553, %v2556
      %v2558 = vsel %vm2454, %v2521, %v2557
      %v2695 = vunpack.c.l.b16 %v1333
      %v2696 = vunpack.c.h.b16 %v1333
      %v2697 = vunpack.c.l.b16 %v1334
      %v2698 = vunpack.c.h.b16 %v1334
      %v2699 = vunpack.c.l.b16 %v1335
      %v2700 = vunpack.c.h.b16 %v1335
      %v2701 = vunpack.c.l.b16 %v1336
      %v2702 = vunpack.c.h.b16 %v1336
      %v2703 = vunpack.c.l.b16 %v1337
      %v2704 = vunpack.c.h.b16 %v1337
      %v2705 = vunpack.c.l.b16 %v1338
      %v2706 = vunpack.c.h.b16 %v1338
      %v2707 = vunpack.c.l.b16 %v1339
      %v2708 = vunpack.c.h.b16 %v1339
      %v2709 = vunpack.c.l.b16 %v1340
      %v2710 = vunpack.c.h.b16 %v1340
      %v2711 = vunpack.c.l.b16 %v1341
      %v2712 = vunpack.c.h.b16 %v1341
      %v2713 = vunpack.c.l.b16 %v1342
      %v2714 = vunpack.c.h.b16 %v1342
      %v2715 = vunpack.c.l.b16 %v1343
      %v2716 = vunpack.c.h.b16 %v1343
      %v2717 = vunpack.c.l.b16 %v1344
      %v2718 = vunpack.c.h.b16 %v1344
      %v2719 = vunpack.c.l.b16 %v1345
      %v2720 = vunpack.c.h.b16 %v1345
      %v2721 = vunpack.c.l.b16 %v1346
      %v2722 = vunpack.c.h.b16 %v1346
      %v2723 = vunpack.c.l.b16 %v1347
      %v2724 = vunpack.c.h.b16 %v1347
      %v2725 = vunpack.c.l.b16 %v1348
      %v2726 = vunpack.c.h.b16 %v1348
      %v2727 = vunpack.c.l.b16 %v1349
      %v2728 = vunpack.c.h.b16 %v1349
      %v2729 = vunpack.c.l.b16 %v1350
      %v2730 = vunpack.c.h.b16 %v1350
      %v2731 = vunpack.c.l.b16 %v1351
      %v2732 = vunpack.c.h.b16 %v1351
      %v2733 = vunpack.c.l.b16 %v1352
      %v2734 = vunpack.c.h.b16 %v1352
      %v2735 = vunpack.c.l.b16 %v1353
      %v2736 = vunpack.c.h.b16 %v1353
      %v2737 = vunpack.c.l.b16 %v1354
      %v2738 = vunpack.c.h.b16 %v1354
      %v2739 = vunpack.c.l.b16 %v1355
      %v2740 = vunpack.c.h.b16 %v1355
      %v2741 = vunpack.c.l.b16 %v1356
      %v2742 = vunpack.c.h.b16 %v1356
      %v2743 = vunpack.c.l.b16 %v1357
      %v2744 = vunpack.c.h.b16 %v1357
      %v2745 = vunpack.c.l.b16 %v1358
      %v2746 = vunpack.c.h.b16 %v1358
      %v2747 = vunpack.c.l.b16 %v1359
      %v2748 = vunpack.c.h.b16 %v1359
      %v2749 = vunpack.c.l.b16 %v1360
      %v2750 = vunpack.c.h.b16 %v1360
      %v2751 = vunpack.c.l.b16 %v1361
      %v2752 = vunpack.c.h.b16 %v1361
      %v2753 = vunpack.c.l.b16 %v1362
      %v2754 = vunpack.c.h.b16 %v1362
      %v2755 = vunpack.c.l.b16 %v1363
      %v2756 = vunpack.c.h.b16 %v1363
      %v2757 = vunpack.c.l.b16 %v1364
      %v2758 = vunpack.c.h.b16 %v1364
      %v2759 = vunpack.c.l.b16 %v1365
      %v2760 = vunpack.c.h.b16 %v1365
      %v2761 = vunpack.c.l.b16 %v1366
      %v2762 = vunpack.c.h.b16 %v1366
      %v2763 = vunpack.c.l.b16 %v1367
      %v2764 = vunpack.c.h.b16 %v1367
      %v2765 = vunpack.c.l.b16 %v1368
      %v2766 = vunpack.c.h.b16 %v1368
      %v2767 = vunpack.c.l.b16 %v1369
      %v2768 = vunpack.c.h.b16 %v1369
      %v2769 = vunpack.c.l.b16 %v1370
      %v2770 = vunpack.c.h.b16 %v1370
      %v2771 = vunpack.c.l.b16 %v1371
      %v2772 = vunpack.c.h.b16 %v1371
      %v2773 = vunpack.c.l.b16 %v1372
      %v2774 = vunpack.c.h.b16 %v1372
      %v2775 = vunpack.c.l.b16 %v1373
      %v2776 = vunpack.c.h.b16 %v1373
      %v2777 = vunpack.c.l.b16 %v1374
      %v2778 = vunpack.c.h.b16 %v1374
      %v2779 = vunpack.c.l.b16 %v1375
      %v2780 = vunpack.c.h.b16 %v1375
      %v2781 = vunpack.c.l.b16 %v1376
      %v2782 = vunpack.c.h.b16 %v1376
      %v2783 = vunpack.c.l.b16 %v1377
      %v2784 = vunpack.c.h.b16 %v1377
      %v2785 = vunpack.c.l.b16 %v1378
      %v2786 = vunpack.c.h.b16 %v1378
      %v2787 = vunpack.c.l.b16 %v1379
      %v2788 = vunpack.c.h.b16 %v1379
      %v2789 = vunpack.c.l.b16 %v1380
      %v2790 = vunpack.c.h.b16 %v1380
      %v2791 = vunpack.c.l.b16 %v1381
      %v2792 = vunpack.c.h.b16 %v1381
      %v2793 = vunpack.c.l.b16 %v1382
      %v2794 = vunpack.c.h.b16 %v1382
      %v2795 = vunpack.c.l.b16 %v1383
      %v2796 = vunpack.c.h.b16 %v1383
      %v2797 = vunpack.c.l.b16 %v1384
      %v2798 = vunpack.c.h.b16 %v1384
      %v2799 = vunpack.c.l.b16 %v1385
      %v2800 = vunpack.c.h.b16 %v1385
      %v2801 = vunpack.c.l.b16 %v1386
      %v2802 = vunpack.c.h.b16 %v1386
      %v2803 = vunpack.c.l.b16 %v1387
      %v2804 = vunpack.c.h.b16 %v1387
      %v2805 = vunpack.c.l.b16 %v1388
      %v2806 = vunpack.c.h.b16 %v1388
      %v2807 = vunpack.c.l.b16 %v1389
      %v2808 = vunpack.c.h.b16 %v1389
      %v2809 = vunpack.c.l.b16 %v1390
      %v2810 = vunpack.c.h.b16 %v1390
      %v2811 = vunpack.c.l.b16 %v1391
      %v2812 = vunpack.c.h.b16 %v1391
      %v2813 = vunpack.c.l.b16 %v1392
      %v2814 = vunpack.c.h.b16 %v1392
      %v2815 = vunpack.c.l.b16 %v1393
      %v2816 = vunpack.c.h.b16 %v1393
      %v2817 = vunpack.c.l.b16 %v1394
      %v2818 = vunpack.c.h.b16 %v1394
      %v2819 = vunpack.c.l.b16 %v1395
      %v2820 = vunpack.c.h.b16 %v1395
      %v2821 = vunpack.c.l.b16 %v1396
      %v2822 = vunpack.c.h.b16 %v1396
      %v2823 = vunpack.c.l.b16 %v1397
      %v2824 = vunpack.c.h.b16 %v1397
      %v2825 = vunpack.c.l.b16 %v1398
      %v2826 = vunpack.c.h.b16 %v1398
      %v2827 = vunpack.c.l.b16 %v1399
      %v2828 = vunpack.c.h.b16 %v1399
      %v2829 = vunpack.c.l.b16 %v1400
      %v2830 = vunpack.c.h.b16 %v1400
      %v2831 = vunpack.c.l.b16 %v1401
      %v2832 = vunpack.c.h.b16 %v1401
      %v2833 = vunpack.c.l.b16 %v1402
      %v2834 = vunpack.c.h.b16 %v1402
      %v2835 = vunpack.c.l.b16 %v1403
      %v2836 = vunpack.c.h.b16 %v1403
      %v2837 = vunpack.c.l.b16 %v1404
      %v2838 = vunpack.c.h.b16 %v1404
      %v2839 = vunpack.c.l.b16 %v1405
      %v2840 = vunpack.c.h.b16 %v1405
      %v2841 = vunpack.c.l.b16 %v1406
      %v2842 = vunpack.c.h.b16 %v1406
      %v2843 = vunpack.c.l.b16 %v1407
      %v2844 = vunpack.c.h.b16 %v1407
      %v2845 = vunpack.c.l.b16 %v1408
      %v2846 = vunpack.c.h.b16 %v1408
      %v2847 = vunpack.c.l.b16 %v1409
      %v2848 = vunpack.c.h.b16 %v1409
      %v2849 = vunpack.c.l.b16 %v1410
      %v2850 = vunpack.c.h.b16 %v1410
      %v2851 = vunpack.c.l.b16 %v1411
      %v2852 = vunpack.c.h.b16 %v1411
      %v2853 = vunpack.c.l.b16 %v1412
      %v2854 = vunpack.c.h.b16 %v1412
      %v2855 = vunpack.c.l.b16 %v1413
      %v2856 = vunpack.c.h.b16 %v1413
      %v2857 = vunpack.c.l.b16 %v1414
      %v2858 = vunpack.c.h.b16 %v1414
      %v2859 = vunpack.c.l.b16 %v1415
      %v2860 = vunpack.c.h.b16 %v1415
      %v2861 = vunpack.c.l.b16 %v1416
      %v2862 = vunpack.c.h.b16 %v1416
      %v2863 = vunpack.c.l.b16 %v1417
      %v2864 = vunpack.c.h.b16 %v1417
      %v2865 = vunpack.c.l.b16 %v1418
      %v2866 = vunpack.c.h.b16 %v1418
      %v2867 = vunpack.c.l.b16 %v1419
      %v2868 = vunpack.c.h.b16 %v1419
      %v2869 = vunpack.c.l.b16 %v1420
      %v2870 = vunpack.c.h.b16 %v1420
      %v2871 = vunpack.c.l.b16 %v1421
      %v2872 = vunpack.c.h.b16 %v1421
      %v2873 = vunpack.c.l.b16 %v1422
      %v2874 = vunpack.c.h.b16 %v1422
      %v2875 = vunpack.c.l.b16 %v1423
      %v2876 = vunpack.c.h.b16 %v1423
      %v2877 = vunpack.c.l.b16 %v1424
      %v2878 = vunpack.c.h.b16 %v1424
      %v2879 = vunpack.c.l.b16 %v1425
      %v2880 = vunpack.c.h.b16 %v1425
      %v2881 = vunpack.c.l.b16 %v1426
      %v2882 = vunpack.c.h.b16 %v1426
      %v2883 = vunpack.c.l.b16 %v1427
      %v2884 = vunpack.c.h.b16 %v1427
      %v2885 = vunpack.c.l.b16 %v1428
      %v2886 = vunpack.c.h.b16 %v1428
      %v2887 = vunpack.c.l.b16 %v1429
      %v2888 = vunpack.c.h.b16 %v1429
      %v2889 = vunpack.c.l.b16 %v1430
      %v2890 = vunpack.c.h.b16 %v1430
      %v2891 = vunpack.c.l.b16 %v1431
      %v2892 = vunpack.c.h.b16 %v1431
      %v2893 = vunpack.c.l.b16 %v1432
      %v2894 = vunpack.c.h.b16 %v1432
      %v2895 = vunpack.c.l.b16 %v1433
      %v2896 = vunpack.c.h.b16 %v1433
      %v2897 = vunpack.c.l.b16 %v1434
      %v2898 = vunpack.c.h.b16 %v1434
      %v2899 = vunpack.c.l.b16 %v1435
      %v2900 = vunpack.c.h.b16 %v1435
      %v2901 = vunpack.c.l.b16 %v1436
      %v2902 = vunpack.c.h.b16 %v1436
      %v2903 = vunpack.c.l.b16 %v1437
      %v2904 = vunpack.c.h.b16 %v1437
      %v2905 = vunpack.c.l.b16 %v1438
      %v2906 = vunpack.c.h.b16 %v1438
      %v2907 = vunpack.c.l.b16 %v1439
      %v2908 = vunpack.c.h.b16 %v1439
      %v2909 = vunpack.c.l.b16 %v1440
      %v2910 = vunpack.c.h.b16 %v1440
      %v2911 = vunpack.c.l.b16 %v1441
      %v2912 = vunpack.c.h.b16 %v1441
      %v2913 = vunpack.c.l.b16 %v1442
      %v2914 = vunpack.c.h.b16 %v1442
      %v2915 = vunpack.c.l.b16 %v1443
      %v2916 = vunpack.c.h.b16 %v1443
      %v2917 = vunpack.c.l.b16 %v1444
      %v2918 = vunpack.c.h.b16 %v1444
      %v2919 = vunpack.c.l.b16 %v1445
      %v2920 = vunpack.c.h.b16 %v1445
      %v2921 = vunpack.c.l.b16 %v1446
      %v2922 = vunpack.c.h.b16 %v1446
      %v2923 = vunpack.c.l.b16 %v1447
      %v2924 = vunpack.c.h.b16 %v1447
      %v2925 = vunpack.c.l.b16 %v1448
      %v2926 = vunpack.c.h.b16 %v1448
      %v2927 = vunpack.c.l.b16 %v1449
      %v2928 = vunpack.c.h.b16 %v1449
      %v2929 = vunpack.c.l.b16 %v1450
      %v2930 = vunpack.c.h.b16 %v1450
      %v2931 = vunpack.c.l.b16 %v1451
      %v2932 = vunpack.c.h.b16 %v1451
      %v2933 = vunpack.c.l.b16 %v1452
      %v2934 = vunpack.c.h.b16 %v1452
      %v2935 = vunpack.c.l.b16 %v1453
      %v2936 = vunpack.c.h.b16 %v1453
      %v2937 = vunpack.c.l.b16 %v1454
      %v2938 = vunpack.c.h.b16 %v1454
      %v2939 = vunpack.c.l.b16 %v1455
      %v2940 = vunpack.c.h.b16 %v1455
      %v2941 = vunpack.c.l.b16 %v1456
      %v2942 = vunpack.c.h.b16 %v1456
      %v2943 = vunpack.c.l.b16 %v1457
      %v2944 = vunpack.c.h.b16 %v1457
      %v2945 = vunpack.c.l.b16 %v1458
      %v2946 = vunpack.c.h.b16 %v1458
      %v2947 = vunpack.c.l.b16 %v1459
      %v2948 = vunpack.c.h.b16 %v1459
      %v2949 = vunpack.c.l.b16 %v1460
      %v2950 = vunpack.c.h.b16 %v1460
      %v2951 = vpack.c.b16 %v2699, %v2695
      %v2952 = vpack.c.b16 %v2700, %v2696
      %v2953 = vpack.c.b16 %v2701, %v2697
      %v2954 = vpack.c.b16 %v2702, %v2698
      %v2955 = vpack.c.b16 %v2707, %v2703
      %v2956 = vpack.c.b16 %v2708, %v2704
      %v2957 = vpack.c.b16 %v2709, %v2705
      %v2958 = vpack.c.b16 %v2710, %v2706
      %v2959 = vpack.c.b16 %v2715, %v2711
      %v2960 = vpack.c.b16 %v2716, %v2712
      %v2961 = vpack.c.b16 %v2717, %v2713
      %v2962 = vpack.c.b16 %v2718, %v2714
      %v2963 = vpack.c.b16 %v2723, %v2719
      %v2964 = vpack.c.b16 %v2724, %v2720
      %v2965 = vpack.c.b16 %v2725, %v2721
      %v2966 = vpack.c.b16 %v2726, %v2722
      %v2967 = vpack.c.b16 %v2731, %v2727
      %v2968 = vpack.c.b16 %v2732, %v2728
      %v2969 = vpack.c.b16 %v2733, %v2729
      %v2970 = vpack.c.b16 %v2734, %v2730
      %v2971 = vpack.c.b16 %v2739, %v2735
      %v2972 = vpack.c.b16 %v2740, %v2736
      %v2973 = vpack.c.b16 %v2741, %v2737
      %v2974 = vpack.c.b16 %v2742, %v2738
      %v2975 = vpack.c.b16 %v2747, %v2743
      %v2976 = vpack.c.b16 %v2748, %v2744
      %v2977 = vpack.c.b16 %v2749, %v2745
      %v2978 = vpack.c.b16 %v2750, %v2746
      %v2979 = vpack.c.b16 %v2755, %v2751
      %v2980 = vpack.c.b16 %v2756, %v2752
      %v2981 = vpack.c.b16 %v2757, %v2753
      %v2982 = vpack.c.b16 %v2758, %v2754
      %v2983 = vpack.c.b16 %v2763, %v2759
      %v2984 = vpack.c.b16 %v2764, %v2760
      %v2985 = vpack.c.b16 %v2765, %v2761
      %v2986 = vpack.c.b16 %v2766, %v2762
      %v2987 = vpack.c.b16 %v2771, %v2767
      %v2988 = vpack.c.b16 %v2772, %v2768
      %v2989 = vpack.c.b16 %v2773, %v2769
      %v2990 = vpack.c.b16 %v2774, %v2770
      %v2991 = vpack.c.b16 %v2779, %v2775
      %v2992 = vpack.c.b16 %v2780, %v2776
      %v2993 = vpack.c.b16 %v2781, %v2777
      %v2994 = vpack.c.b16 %v2782, %v2778
      %v2995 = vpack.c.b16 %v2787, %v2783
      %v2996 = vpack.c.b16 %v2788, %v2784
      %v2997 = vpack.c.b16 %v2789, %v2785
      %v2998 = vpack.c.b16 %v2790, %v2786
      %v2999 = vpack.c.b16 %v2795, %v2791
      %v3000 = vpack.c.b16 %v2796, %v2792
      %v3001 = vpack.c.b16 %v2797, %v2793
      %v3002 = vpack.c.b16 %v2798, %v2794
      %v3003 = vpack.c.b16 %v2803, %v2799
      %v3004 = vpack.c.b16 %v2804, %v2800
      %v3005 = vpack.c.b16 %v2805, %v2801
      %v3006 = vpack.c.b16 %v2806, %v2802
      %v3007 = vpack.c.b16 %v2811, %v2807
      %v3008 = vpack.c.b16 %v2812, %v2808
      %v3009 = vpack.c.b16 %v2813, %v2809
      %v3010 = vpack.c.b16 %v2814, %v2810
      %v3011 = vpack.c.b16 %v2819, %v2815
      %v3012 = vpack.c.b16 %v2820, %v2816
      %v3013 = vpack.c.b16 %v2821, %v2817
      %v3014 = vpack.c.b16 %v2822, %v2818
      %v3015 = vpack.c.b16 %v2827, %v2823
      %v3016 = vpack.c.b16 %v2828, %v2824
      %v3017 = vpack.c.b16 %v2829, %v2825
      %v3018 = vpack.c.b16 %v2830, %v2826
      %v3019 = vpack.c.b16 %v2835, %v2831
      %v3020 = vpack.c.b16 %v2836, %v2832
      %v3021 = vpack.c.b16 %v2837, %v2833
      %v3022 = vpack.c.b16 %v2838, %v2834
      %v3023 = vpack.c.b16 %v2843, %v2839
      %v3024 = vpack.c.b16 %v2844, %v2840
      %v3025 = vpack.c.b16 %v2845, %v2841
      %v3026 = vpack.c.b16 %v2846, %v2842
      %v3027 = vpack.c.b16 %v2851, %v2847
      %v3028 = vpack.c.b16 %v2852, %v2848
      %v3029 = vpack.c.b16 %v2853, %v2849
      %v3030 = vpack.c.b16 %v2854, %v2850
      %v3031 = vpack.c.b16 %v2859, %v2855
      %v3032 = vpack.c.b16 %v2860, %v2856
      %v3033 = vpack.c.b16 %v2861, %v2857
      %v3034 = vpack.c.b16 %v2862, %v2858
      %v3035 = vpack.c.b16 %v2867, %v2863
      %v3036 = vpack.c.b16 %v2868, %v2864
      %v3037 = vpack.c.b16 %v2869, %v2865
      %v3038 = vpack.c.b16 %v2870, %v2866
      %v3039 = vpack.c.b16 %v2875, %v2871
      %v3040 = vpack.c.b16 %v2876, %v2872
      %v3041 = vpack.c.b16 %v2877, %v2873
      %v3042 = vpack.c.b16 %v2878, %v2874
      %v3043 = vpack.c.b16 %v2883, %v2879
      %v3044 = vpack.c.b16 %v2884, %v2880
      %v3045 = vpack.c.b16 %v2885, %v2881
      %v3046 = vpack.c.b16 %v2886, %v2882
      %v3047 = vpack.c.b16 %v2891, %v2887
      %v3048 = vpack.c.b16 %v2892, %v2888
      %v3049 = vpack.c.b16 %v2893, %v2889
      %v3050 = vpack.c.b16 %v2894, %v2890
      %v3051 = vpack.c.b16 %v2899, %v2895
      %v3052 = vpack.c.b16 %v2900, %v2896
      %v3053 = vpack.c.b16 %v2901, %v2897
      %v3054 = vpack.c.b16 %v2902, %v2898
      %v3055 = vpack.c.b16 %v2907, %v2903
      %v3056 = vpack.c.b16 %v2908, %v2904
      %v3057 = vpack.c.b16 %v2909, %v2905
      %v3058 = vpack.c.b16 %v2910, %v2906
      %v3059 = vpack.c.b16 %v2915, %v2911
      %v3060 = vpack.c.b16 %v2916, %v2912
      %v3061 = vpack.c.b16 %v2917, %v2913
      %v3062 = vpack.c.b16 %v2918, %v2914
      %v3063 = vpack.c.b16 %v2923, %v2919
      %v3064 = vpack.c.b16 %v2924, %v2920
      %v3065 = vpack.c.b16 %v2925, %v2921
      %v3066 = vpack.c.b16 %v2926, %v2922
      %v3067 = vpack.c.b16 %v2931, %v2927
      %v3068 = vpack.c.b16 %v2932, %v2928
      %v3069 = vpack.c.b16 %v2933, %v2929
      %v3070 = vpack.c.b16 %v2934, %v2930
      %v3071 = vpack.c.b16 %v2939, %v2935
      %v3072 = vpack.c.b16 %v2940, %v2936
      %v3073 = vpack.c.b16 %v2941, %v2937
      %v3074 = vpack.c.b16 %v2942, %v2938
      %v3075 = vpack.c.b16 %v2947, %v2943
      %v3076 = vpack.c.b16 %v2948, %v2944
      %v3077 = vpack.c.b16 %v2949, %v2945
      %v3078 = vpack.c.b16 %v2950, %v2946
      %3207 = vmatprep.subr.bf16.mxu0 %v2952
      %3208 = vmatpush1.bf16.msra.mxu0 %v2951
      %3209 = vmatprep.subr.bf16.mxu0 %v2956
      %3210 = vmatpush1.bf16.msra.mxu0 %v2955
      %3211 = vmatprep.subr.bf16.mxu0 %v2960
      %3212 = vmatpush1.bf16.msra.mxu0 %v2959
      %3213 = vmatprep.subr.bf16.mxu0 %v2964
      %3214 = vmatpush1.bf16.msra.mxu0 %v2963
      %3215 = vmatprep.subr.bf16.mxu0 %v2968
      %3216 = vmatpush1.bf16.msra.mxu0 %v2967
      %3217 = vmatprep.subr.bf16.mxu0 %v2972
      %3218 = vmatpush1.bf16.msra.mxu0 %v2971
      %3219 = vmatprep.subr.bf16.mxu0 %v2976
      %3220 = vmatpush1.bf16.msra.mxu0 %v2975
      %3221 = vmatprep.subr.bf16.mxu0 %v2980
      %3222 = vmatpush1.bf16.msra.mxu0 %v2979
      %3223 = vmatprep.subr.bf16.mxu0 %v2984
      %3224 = vmatpush1.bf16.msra.mxu0 %v2983
      %3225 = vmatprep.subr.bf16.mxu0 %v2988
      %3226 = vmatpush1.bf16.msra.mxu0 %v2987
      %3227 = vmatprep.subr.bf16.mxu0 %v2992
      %3228 = vmatpush1.bf16.msra.mxu0 %v2991
      %3229 = vmatprep.subr.bf16.mxu0 %v2996
      %3230 = vmatpush1.bf16.msra.mxu0 %v2995
      %3231 = vmatprep.subr.bf16.mxu0 %v3000
      %3232 = vmatpush1.bf16.msra.mxu0 %v2999
      %3233 = vmatprep.subr.bf16.mxu0 %v3004
      %3234 = vmatpush1.bf16.msra.mxu0 %v3003
      %3235 = vmatprep.subr.bf16.mxu0 %v3008
      %3236 = vmatpush1.bf16.msra.mxu0 %v3007
      %3237 = vmatprep.subr.bf16.mxu0 %v3012
      %3238 = vmatpush1.bf16.msra.mxu0 %v3011
      %3239 = vmatprep.mubr.bf16.mxu0 %v2488
      %3240 = vmatmul.mubr.bf16.gmra.mrb[0].mxu0 %v2471
      %v3241 = vpop.f32.mrb[0].mxu0
      %v3242 = vadd.f32 %v2330, %v3241
      %v3243 = vpop.f32.mrb[0].mxu0
      %v3244 = vadd.f32 %v2332, %v3243
      %v3245 = vpop.f32.mrb[0].mxu0
      %v3246 = vadd.f32 %v2334, %v3245
      %v3247 = vpop.f32.mrb[0].mxu0
      %v3248 = vadd.f32 %v2336, %v3247
      %3249 = vmatprep.mubr.bf16.mxu0 %v2540
      %3250 = vmatmul.mubr.bf16.gmra.mrb[0].mxu0 %v2531
      %v3251 = vpop.f32.mrb[0].mxu0
      %v3252 = vadd.f32 %v2340, %v3251
      %v3253 = vpop.f32.mrb[0].mxu0
      %v3254 = vadd.f32 %v2342, %v3253
      %v3255 = vpop.f32.mrb[0].mxu0
      %v3256 = vadd.f32 %v2344, %v3255
      %v3257 = vpop.f32.mrb[0].mxu0
      %v3258 = vadd.f32 %v2346, %v3257
      %3259 = vdwg.mxu0
      %3260 = vmatprep.subr.bf16.mxu0 %v3016
      %3261 = vmatpush1.bf16.msra.mxu0 %v3015
      %3262 = vmatprep.subr.bf16.mxu0 %v3020
      %3263 = vmatpush1.bf16.msra.mxu0 %v3019
      %3264 = vmatprep.subr.bf16.mxu0 %v3024
      %3265 = vmatpush1.bf16.msra.mxu0 %v3023
      %3266 = vmatprep.subr.bf16.mxu0 %v3028
      %3267 = vmatpush1.bf16.msra.mxu0 %v3027
      %3268 = vmatprep.subr.bf16.mxu0 %v3032
      %3269 = vmatpush1.bf16.msra.mxu0 %v3031
      %3270 = vmatprep.subr.bf16.mxu0 %v3036
      %3271 = vmatpush1.bf16.msra.mxu0 %v3035
      %3272 = vmatprep.subr.bf16.mxu0 %v3040
      %3273 = vmatpush1.bf16.msra.mxu0 %v3039
      %3274 = vmatprep.subr.bf16.mxu0 %v3044
      %3275 = vmatpush1.bf16.msra.mxu0 %v3043
      %3276 = vmatprep.subr.bf16.mxu0 %v3048
      %3277 = vmatpush1.bf16.msra.mxu0 %v3047
      %3278 = vmatprep.subr.bf16.mxu0 %v3052
      %3279 = vmatpush1.bf16.msra.mxu0 %v3051
      %3280 = vmatprep.subr.bf16.mxu0 %v3056
      %3281 = vmatpush1.bf16.msra.mxu0 %v3055
      %3282 = vmatprep.subr.bf16.mxu0 %v3060
      %3283 = vmatpush1.bf16.msra.mxu0 %v3059
      %3284 = vmatprep.subr.bf16.mxu0 %v3064
      %3285 = vmatpush1.bf16.msra.mxu0 %v3063
      %3286 = vmatprep.subr.bf16.mxu0 %v3068
      %3287 = vmatpush1.bf16.msra.mxu0 %v3067
      %3288 = vmatprep.subr.bf16.mxu0 %v3072
      %3289 = vmatpush1.bf16.msra.mxu0 %v3071
      %3290 = vmatprep.subr.bf16.mxu0 %v3076
      %3291 = vmatpush1.bf16.msra.mxu0 %v3075
      %3292 = vmatprep.mubr.bf16.mxu0 %v2522
      %3293 = vmatmul.mubr.bf16.gmra.mrb[0].mxu0 %v2505
      %v3294 = vpop.f32.mrb[0].mxu0
      %v3295 = vadd.f32 %v3242, %v3294
      %v3296 = vpop.f32.mrb[0].mxu0
      %v3297 = vadd.f32 %v3244, %v3296
      %v3298 = vpop.f32.mrb[0].mxu0
      %v3299 = vadd.f32 %v3246, %v3298
      %v3300 = vpop.f32.mrb[0].mxu0
      %v3301 = vadd.f32 %v3248, %v3300
      %3302 = vmatprep.mubr.bf16.mxu0 %v2558
      %3303 = vmatmul.mubr.bf16.gmra.mrb[0].mxu0 %v2549
      %v3304 = vpop.f32.mrb[0].mxu0
      %v3305 = vadd.f32 %v3252, %v3304
      %v3306 = vpop.f32.mrb[0].mxu0
      %v3307 = vadd.f32 %v3254, %v3306
      %v3308 = vpop.f32.mrb[0].mxu0
      %v3309 = vadd.f32 %v3256, %v3308
      %v3310 = vpop.f32.mrb[0].mxu0
      %v3311 = vadd.f32 %v3258, %v3310
      %3312 = vdwg.mxu0
      %3313 = vmatprep.subr.bf16.mxu0 %v2954
      %3314 = vmatpush1.bf16.msra.mxu0 %v2953
      %3315 = vmatprep.subr.bf16.mxu0 %v2958
      %3316 = vmatpush1.bf16.msra.mxu0 %v2957
      %3317 = vmatprep.subr.bf16.mxu0 %v2962
      %3318 = vmatpush1.bf16.msra.mxu0 %v2961
      %3319 = vmatprep.subr.bf16.mxu0 %v2966
      %3320 = vmatpush1.bf16.msra.mxu0 %v2965
      %3321 = vmatprep.subr.bf16.mxu0 %v2970
      %3322 = vmatpush1.bf16.msra.mxu0 %v2969
      %3323 = vmatprep.subr.bf16.mxu0 %v2974
      %3324 = vmatpush1.bf16.msra.mxu0 %v2973
      %3325 = vmatprep.subr.bf16.mxu0 %v2978
      %3326 = vmatpush1.bf16.msra.mxu0 %v2977
      %3327 = vmatprep.subr.bf16.mxu0 %v2982
      %3328 = vmatpush1.bf16.msra.mxu0 %v2981
      %3329 = vmatprep.subr.bf16.mxu0 %v2986
      %3330 = vmatpush1.bf16.msra.mxu0 %v2985
      %3331 = vmatprep.subr.bf16.mxu0 %v2990
      %3332 = vmatpush1.bf16.msra.mxu0 %v2989
      %3333 = vmatprep.subr.bf16.mxu0 %v2994
      %3334 = vmatpush1.bf16.msra.mxu0 %v2993
      %3335 = vmatprep.subr.bf16.mxu0 %v2998
      %3336 = vmatpush1.bf16.msra.mxu0 %v2997
      %3337 = vmatprep.subr.bf16.mxu0 %v3002
      %3338 = vmatpush1.bf16.msra.mxu0 %v3001
      %3339 = vmatprep.subr.bf16.mxu0 %v3006
      %3340 = vmatpush1.bf16.msra.mxu0 %v3005
      %3341 = vmatprep.subr.bf16.mxu0 %v3010
      %3342 = vmatpush1.bf16.msra.mxu0 %v3009
      %3343 = vmatprep.subr.bf16.mxu0 %v3014
      %3344 = vmatpush1.bf16.msra.mxu0 %v3013
      %3345 = vmatprep.mubr.bf16.mxu0 %v2488
      %3346 = vmatmul.mubr.bf16.gmra.mrb[0].mxu0 %v2471
      %v3347 = vpop.f32.mrb[0].mxu0
      %v3348 = vadd.f32 %v2436, %v3347
      %v3349 = vpop.f32.mrb[0].mxu0
      %v3350 = vadd.f32 %v2438, %v3349
      %v3351 = vpop.f32.mrb[0].mxu0
      %v3352 = vadd.f32 %v2440, %v3351
      %v3353 = vpop.f32.mrb[0].mxu0
      %v3354 = vadd.f32 %v2442, %v3353
      %3355 = vmatprep.mubr.bf16.mxu0 %v2540
      %3356 = vmatmul.mubr.bf16.gmra.mrb[0].mxu0 %v2531
      %v3357 = vpop.f32.mrb[0].mxu0
      %v3358 = vadd.f32 %v2446, %v3357
      %v3359 = vpop.f32.mrb[0].mxu0
      %v3360 = vadd.f32 %v2448, %v3359
      %v3361 = vpop.f32.mrb[0].mxu0
      %v3362 = vadd.f32 %v2450, %v3361
      %v3363 = vpop.f32.mrb[0].mxu0
      %v3364 = vadd.f32 %v2452, %v3363
      %3365 = vdwg.mxu0
      %3366 = vmatprep.subr.bf16.mxu0 %v3018
      %3367 = vmatpush1.bf16.msra.mxu0 %v3017
      %3368 = vmatprep.subr.bf16.mxu0 %v3022
      %3369 = vmatpush1.bf16.msra.mxu0 %v3021
      %3370 = vmatprep.subr.bf16.mxu0 %v3026
      %3371 = vmatpush1.bf16.msra.mxu0 %v3025
      %3372 = vmatprep.subr.bf16.mxu0 %v3030
      %3373 = vmatpush1.bf16.msra.mxu0 %v3029
      %3374 = vmatprep.subr.bf16.mxu0 %v3034
      %3375 = vmatpush1.bf16.msra.mxu0 %v3033
      %3376 = vmatprep.subr.bf16.mxu0 %v3038
      %3377 = vmatpush1.bf16.msra.mxu0 %v3037
      %3378 = vmatprep.subr.bf16.mxu0 %v3042
      %3379 = vmatpush1.bf16.msra.mxu0 %v3041
      %3380 = vmatprep.subr.bf16.mxu0 %v3046
      %3381 = vmatpush1.bf16.msra.mxu0 %v3045
      %3382 = vmatprep.subr.bf16.mxu0 %v3050
      %3383 = vmatpush1.bf16.msra.mxu0 %v3049
      %3384 = vmatprep.subr.bf16.mxu0 %v3054
      %3385 = vmatpush1.bf16.msra.mxu0 %v3053
      %3386 = vmatprep.subr.bf16.mxu0 %v3058
      %3387 = vmatpush1.bf16.msra.mxu0 %v3057
      %3388 = vmatprep.subr.bf16.mxu0 %v3062
      %3389 = vmatpush1.bf16.msra.mxu0 %v3061
      %3390 = vmatprep.subr.bf16.mxu0 %v3066
      %3391 = vmatpush1.bf16.msra.mxu0 %v3065
      %3392 = vmatprep.subr.bf16.mxu0 %v3070
      %3393 = vmatpush1.bf16.msra.mxu0 %v3069
      %3394 = vmatprep.subr.bf16.mxu0 %v3074
      %3395 = vmatpush1.bf16.msra.mxu0 %v3073
      %3396 = vmatprep.subr.bf16.mxu0 %v3078
      %3397 = vmatpush1.bf16.msra.mxu0 %v3077
      %3398 = vmatprep.mubr.bf16.mxu0 %v2522
      %3399 = vmatmul.mubr.bf16.gmra.mrb[0].mxu0 %v2505
      %v3400 = vpop.f32.mrb[0].mxu0
      %v3401 = vadd.f32 %v3348, %v3400
      %v3402 = vpop.f32.mrb[0].mxu0
      %v3403 = vadd.f32 %v3350, %v3402
      %v3404 = vpop.f32.mrb[0].mxu0
      %v3405 = vadd.f32 %v3352, %v3404
      %v3406 = vpop.f32.mrb[0].mxu0
      %v3407 = vadd.f32 %v3354, %v3406
      %3408 = vmatprep.mubr.bf16.mxu0 %v2558
      %3409 = vmatmul.mubr.bf16.gmra.mrb[0].mxu0 %v2549
      %v3410 = vpop.f32.mrb[0].mxu0
      %v3411 = vadd.f32 %v3358, %v3410
      %v3412 = vpop.f32.mrb[0].mxu0
      %v3413 = vadd.f32 %v3360, %v3412
      %v3414 = vpop.f32.mrb[0].mxu0
      %v3415 = vadd.f32 %v3362, %v3414
      %v3416 = vpop.f32.mrb[0].mxu0
      %v3417 = vadd.f32 %v3364, %v3416
      %3418 = vdwg.mxu0
      %v3419 = vld [vmem:[#allocation3 + $0x20] sm:$0xfe]
      %v3420 = vld [vmem:[#allocation3 + $0x28] sm:$0xfe]
      %v3421 = vld [vmem:[#allocation3 + $0x30] sm:$0xfe]
      %v3422 = vld [vmem:[#allocation3 + $0x38] sm:$0xfe]
      %v3423 = vld [vmem:[#allocation3 + $0x40] sm:$0xff]
      %v3424 = vld [vmem:[#allocation3 + $0x48] sm:$0xff]
      %v3425 = vld [vmem:[#allocation3 + $0x50] sm:$0xff]
      %v3426 = vld [vmem:[#allocation3 + $0x58] sm:$0xff]
      %v3427 = vld [vmem:[#allocation3 + $0x60] sm:$0xff]
      %v3428 = vld [vmem:[#allocation3 + $0x68] sm:$0xff]
      %v3429 = vld [vmem:[#allocation3 + $0x70] sm:$0xff]
      %v3430 = vld [vmem:[#allocation3 + $0x78] sm:$0xff]
      %v3431 = vld [vmem:[#allocation3 + $0x80] sm:$0xff]
      %v3432 = vld [vmem:[#allocation3 + $0x88] sm:$0xff]
      %v3433 = vld [vmem:[#allocation3 + $0x90] sm:$0xff]
      %v3434 = vld [vmem:[#allocation3 + $0x98] sm:$0xff]
      %v3435 = vld [vmem:[#allocation3 + $0xa0] sm:$0x1]
      %v3436 = vld [vmem:[#allocation3 + $0xa8] sm:$0x1]
      %v3437 = vld [vmem:[#allocation3 + $0xb0] sm:$0x1]
      %v3438 = vld [vmem:[#allocation3 + $0xb8] sm:$0x1]
      %v3439 = vpack.c.bf16 %v3423, %v3419
      %v3440 = vpack.c.bf16 %v3424, %v3420
      %v3441 = vpack.c.bf16 %v3425, %v3421
      %v3442 = vpack.c.bf16 %v3426, %v3422
      %v3443 = vpack.c.bf16 %v3431, %v3427
      %v3444 = vpack.c.bf16 %v3432, %v3428
      %v3445 = vpack.c.bf16 %v3433, %v3429
      %v3446 = vpack.c.bf16 %v3434, %v3430
      %v3447 = vpack.c.bf16 %v3435, %v3435
      %v3448 = vpack.c.bf16 %v3436, %v3436
      %v3449 = vpack.c.bf16 %v3437, %v3437
      %v3450 = vpack.c.bf16 %v3438, %v3438
      %s3451 = scalar_lea.vmem %s5, 2048
      %v3452 = vld [vmem:[%s3451] sm:$0xff]
      %v3453 = vld [vmem:[%s3451 + $0x8] sm:$0xff]
      %v3454 = vld [vmem:[%s3451 + $0x10] sm:$0xff]
      %v3455 = vld [vmem:[%s3451 + $0x18] sm:$0xff]
      %v3456 = vld [vmem:[%s3451 + $0x20] sm:$0xff]
      %v3457 = vld [vmem:[%s3451 + $0x28] sm:$0xff]
      %v3458 = vld [vmem:[%s3451 + $0x30] sm:$0xff]
      %v3459 = vld [vmem:[%s3451 + $0x38] sm:$0xff]
      %v3460 = vld [vmem:[%s3451 + $0x40] sm:$0xff]
      %v3461 = vld [vmem:[%s3451 + $0x48] sm:$0xff]
      %v3462 = vld [vmem:[%s3451 + $0x50] sm:$0xff]
      %v3463 = vld [vmem:[%s3451 + $0x58] sm:$0xff]
      %v3464 = vld [vmem:[%s3451 + $0x60] sm:$0xff]
      %v3465 = vld [vmem:[%s3451 + $0x68] sm:$0xff]
      %v3466 = vld [vmem:[%s3451 + $0x70] sm:$0xff]
      %v3467 = vld [vmem:[%s3451 + $0x78] sm:$0xff]
      %v3468 = vld [vmem:[%s3451 + $0x80] sm:$0xff]
      %v3469 = vld [vmem:[%s3451 + $0x88] sm:$0xff]
      %v3470 = vld [vmem:[%s3451 + $0x90] sm:$0xff]
      %v3471 = vld [vmem:[%s3451 + $0x98] sm:$0xff]
      %v3472 = vld [vmem:[%s3451 + $0xa0] sm:$0xff]
      %v3473 = vld [vmem:[%s3451 + $0xa8] sm:$0xff]
      %v3474 = vld [vmem:[%s3451 + $0xb0] sm:$0xff]
      %v3475 = vld [vmem:[%s3451 + $0xb8] sm:$0xff]
      %v3476 = vld [vmem:[%s3451 + $0xc0] sm:$0xff]
      %v3477 = vld [vmem:[%s3451 + $0xc8] sm:$0xff]
      %v3478 = vld [vmem:[%s3451 + $0xd0] sm:$0xff]
      %v3479 = vld [vmem:[%s3451 + $0xd8] sm:$0xff]
      %v3480 = vld [vmem:[%s3451 + $0xe0] sm:$0xff]
      %v3481 = vld [vmem:[%s3451 + $0xe8] sm:$0xff]
      %v3482 = vld [vmem:[%s3451 + $0xf0] sm:$0xff]
      %v3483 = vld [vmem:[%s3451 + $0xf8] sm:$0xff]
      %v3484 = vld [vmem:[%s3451 + $0x100] sm:$0xff]
      %v3485 = vld [vmem:[%s3451 + $0x108] sm:$0xff]
      %v3486 = vld [vmem:[%s3451 + $0x110] sm:$0xff]
      %v3487 = vld [vmem:[%s3451 + $0x118] sm:$0xff]
      %v3488 = vld [vmem:[%s3451 + $0x120] sm:$0xff]
      %v3489 = vld [vmem:[%s3451 + $0x128] sm:$0xff]
      %v3490 = vld [vmem:[%s3451 + $0x130] sm:$0xff]
      %v3491 = vld [vmem:[%s3451 + $0x138] sm:$0xff]
      %v3492 = vld [vmem:[%s3451 + $0x140] sm:$0xff]
      %v3493 = vld [vmem:[%s3451 + $0x148] sm:$0xff]
      %v3494 = vld [vmem:[%s3451 + $0x150] sm:$0xff]
      %v3495 = vld [vmem:[%s3451 + $0x158] sm:$0xff]
      %v3496 = vld [vmem:[%s3451 + $0x160] sm:$0xff]
      %v3497 = vld [vmem:[%s3451 + $0x168] sm:$0xff]
      %v3498 = vld [vmem:[%s3451 + $0x170] sm:$0xff]
      %v3499 = vld [vmem:[%s3451 + $0x178] sm:$0xff]
      %v3500 = vld [vmem:[%s3451 + $0x180] sm:$0xff]
      %v3501 = vld [vmem:[%s3451 + $0x188] sm:$0xff]
      %v3502 = vld [vmem:[%s3451 + $0x190] sm:$0xff]
      %v3503 = vld [vmem:[%s3451 + $0x198] sm:$0xff]
      %v3504 = vld [vmem:[%s3451 + $0x1a0] sm:$0xff]
      %v3505 = vld [vmem:[%s3451 + $0x1a8] sm:$0xff]
      %v3506 = vld [vmem:[%s3451 + $0x1b0] sm:$0xff]
      %v3507 = vld [vmem:[%s3451 + $0x1b8] sm:$0xff]
      %v3508 = vld [vmem:[%s3451 + $0x1c0] sm:$0xff]
      %v3509 = vld [vmem:[%s3451 + $0x1c8] sm:$0xff]
      %v3510 = vld [vmem:[%s3451 + $0x1d0] sm:$0xff]
      %v3511 = vld [vmem:[%s3451 + $0x1d8] sm:$0xff]
      %v3512 = vld [vmem:[%s3451 + $0x1e0] sm:$0xff]
      %v3513 = vld [vmem:[%s3451 + $0x1e8] sm:$0xff]
      %v3514 = vld [vmem:[%s3451 + $0x1f0] sm:$0xff]
      %v3515 = vld [vmem:[%s3451 + $0x1f8] sm:$0xff]
      %v3516 = vld [vmem:[%s3451 + $0x200] sm:$0xff]
      %v3517 = vld [vmem:[%s3451 + $0x208] sm:$0xff]
      %v3518 = vld [vmem:[%s3451 + $0x210] sm:$0xff]
      %v3519 = vld [vmem:[%s3451 + $0x218] sm:$0xff]
      %v3520 = vld [vmem:[%s3451 + $0x220] sm:$0xff]
      %v3521 = vld [vmem:[%s3451 + $0x228] sm:$0xff]
      %v3522 = vld [vmem:[%s3451 + $0x230] sm:$0xff]
      %v3523 = vld [vmem:[%s3451 + $0x238] sm:$0xff]
      %v3524 = vld [vmem:[%s3451 + $0x240] sm:$0xff]
      %v3525 = vld [vmem:[%s3451 + $0x248] sm:$0xff]
      %v3526 = vld [vmem:[%s3451 + $0x250] sm:$0xff]
      %v3527 = vld [vmem:[%s3451 + $0x258] sm:$0xff]
      %v3528 = vld [vmem:[%s3451 + $0x260] sm:$0xff]
      %v3529 = vld [vmem:[%s3451 + $0x268] sm:$0xff]
      %v3530 = vld [vmem:[%s3451 + $0x270] sm:$0xff]
      %v3531 = vld [vmem:[%s3451 + $0x278] sm:$0xff]
      %v3532 = vld [vmem:[%s3451 + $0x280] sm:$0xff]
      %v3533 = vld [vmem:[%s3451 + $0x288] sm:$0xff]
      %v3534 = vld [vmem:[%s3451 + $0x290] sm:$0xff]
      %v3535 = vld [vmem:[%s3451 + $0x298] sm:$0xff]
      %v3536 = vld [vmem:[%s3451 + $0x2a0] sm:$0xff]
      %v3537 = vld [vmem:[%s3451 + $0x2a8] sm:$0xff]
      %v3538 = vld [vmem:[%s3451 + $0x2b0] sm:$0xff]
      %v3539 = vld [vmem:[%s3451 + $0x2b8] sm:$0xff]
      %v3540 = vld [vmem:[%s3451 + $0x2c0] sm:$0xff]
      %v3541 = vld [vmem:[%s3451 + $0x2c8] sm:$0xff]
      %v3542 = vld [vmem:[%s3451 + $0x2d0] sm:$0xff]
      %v3543 = vld [vmem:[%s3451 + $0x2d8] sm:$0xff]
      %v3544 = vld [vmem:[%s3451 + $0x2e0] sm:$0xff]
      %v3545 = vld [vmem:[%s3451 + $0x2e8] sm:$0xff]
      %v3546 = vld [vmem:[%s3451 + $0x2f0] sm:$0xff]
      %v3547 = vld [vmem:[%s3451 + $0x2f8] sm:$0xff]
      %v3548 = vld [vmem:[%s3451 + $0x300] sm:$0xff]
      %v3549 = vld [vmem:[%s3451 + $0x308] sm:$0xff]
      %v3550 = vld [vmem:[%s3451 + $0x310] sm:$0xff]
      %v3551 = vld [vmem:[%s3451 + $0x318] sm:$0xff]
      %v3552 = vld [vmem:[%s3451 + $0x320] sm:$0xff]
      %v3553 = vld [vmem:[%s3451 + $0x328] sm:$0xff]
      %v3554 = vld [vmem:[%s3451 + $0x330] sm:$0xff]
      %v3555 = vld [vmem:[%s3451 + $0x338] sm:$0xff]
      %v3556 = vld [vmem:[%s3451 + $0x340] sm:$0xff]
      %v3557 = vld [vmem:[%s3451 + $0x348] sm:$0xff]
      %v3558 = vld [vmem:[%s3451 + $0x350] sm:$0xff]
      %v3559 = vld [vmem:[%s3451 + $0x358] sm:$0xff]
      %v3560 = vld [vmem:[%s3451 + $0x360] sm:$0xff]
      %v3561 = vld [vmem:[%s3451 + $0x368] sm:$0xff]
      %v3562 = vld [vmem:[%s3451 + $0x370] sm:$0xff]
      %v3563 = vld [vmem:[%s3451 + $0x378] sm:$0xff]
      %v3564 = vld [vmem:[%s3451 + $0x380] sm:$0xff]
      %v3565 = vld [vmem:[%s3451 + $0x388] sm:$0xff]
      %v3566 = vld [vmem:[%s3451 + $0x390] sm:$0xff]
      %v3567 = vld [vmem:[%s3451 + $0x398] sm:$0xff]
      %v3568 = vld [vmem:[%s3451 + $0x3a0] sm:$0xff]
      %v3569 = vld [vmem:[%s3451 + $0x3a8] sm:$0xff]
      %v3570 = vld [vmem:[%s3451 + $0x3b0] sm:$0xff]
      %v3571 = vld [vmem:[%s3451 + $0x3b8] sm:$0xff]
      %v3572 = vld [vmem:[%s3451 + $0x3c0] sm:$0xff]
      %v3573 = vld [vmem:[%s3451 + $0x3c8] sm:$0xff]
      %v3574 = vld [vmem:[%s3451 + $0x3d0] sm:$0xff]
      %v3575 = vld [vmem:[%s3451 + $0x3d8] sm:$0xff]
      %v3576 = vld [vmem:[%s3451 + $0x3e0] sm:$0xff]
      %v3577 = vld [vmem:[%s3451 + $0x3e8] sm:$0xff]
      %v3578 = vld [vmem:[%s3451 + $0x3f0] sm:$0xff]
      %v3579 = vld [vmem:[%s3451 + $0x3f8] sm:$0xff]
      %vm3580 = vsmask.f32 7424
      %v3582 = vshrl.u32 %v3439, 16
      %v3584 = vshll.u32 %v3439, 16
      %v3586 = vrot.slane %v3584, 1
      %v3587 = vor.u32 %v3582, %v3586
      %v3589 = vshll.u32 %v3443, 16
      %v3591 = vrot.slane %v3589, 1
      %v3592 = vsel %vm3580, %v3587, %v3591
      %v3594 = vshrl.u32 %v3440, 16
      %v3596 = vshll.u32 %v3440, 16
      %v3598 = vrot.slane %v3596, 1
      %v3599 = vor.u32 %v3594, %v3598
      %v3601 = vshll.u32 %v3444, 16
      %v3603 = vrot.slane %v3601, 1
      %v3604 = vsel %vm3580, %v3599, %v3603
      %v3606 = vshrl.u32 %v3441, 16
      %v3608 = vshll.u32 %v3441, 16
      %v3610 = vrot.slane %v3608, 1
      %v3611 = vor.u32 %v3606, %v3610
      %v3613 = vshll.u32 %v3445, 16
      %v3615 = vrot.slane %v3613, 1
      %v3616 = vsel %vm3580, %v3611, %v3615
      %v3618 = vshrl.u32 %v3442, 16
      %v3620 = vshll.u32 %v3442, 16
      %v3622 = vrot.slane %v3620, 1
      %v3623 = vor.u32 %v3618, %v3622
      %v3625 = vshll.u32 %v3446, 16
      %v3627 = vrot.slane %v3625, 1
      %v3628 = vsel %vm3580, %v3623, %v3627
      %v3629 = vshrl.u32 %v3443, 16
      %v3631 = vor.u32 %v3629, %v3591
      %v3633 = vshll.u32 %v3447, 16
      %v3635 = vrot.slane %v3633, 1
      %v3636 = vsel %vm3580, %v3631, %v3635
      %v3637 = vshrl.u32 %v3444, 16
      %v3639 = vor.u32 %v3637, %v3603
      %v3641 = vshll.u32 %v3448, 16
      %v3643 = vrot.slane %v3641, 1
      %v3644 = vsel %vm3580, %v3639, %v3643
      %v3645 = vshrl.u32 %v3445, 16
      %v3647 = vor.u32 %v3645, %v3615
      %v3649 = vshll.u32 %v3449, 16
      %v3651 = vrot.slane %v3649, 1
      %v3652 = vsel %vm3580, %v3647, %v3651
      %v3653 = vshrl.u32 %v3446, 16
      %v3655 = vor.u32 %v3653, %v3627
      %v3657 = vshll.u32 %v3450, 16
      %v3659 = vrot.slane %v3657, 1
      %v3660 = vsel %vm3580, %v3655, %v3659
      %v3797 = vunpack.c.l.b16 %v3452
      %v3798 = vunpack.c.h.b16 %v3452
      %v3799 = vunpack.c.l.b16 %v3453
      %v3800 = vunpack.c.h.b16 %v3453
      %v3801 = vunpack.c.l.b16 %v3454
      %v3802 = vunpack.c.h.b16 %v3454
      %v3803 = vunpack.c.l.b16 %v3455
      %v3804 = vunpack.c.h.b16 %v3455
      %v3805 = vunpack.c.l.b16 %v3456
      %v3806 = vunpack.c.h.b16 %v3456
      %v3807 = vunpack.c.l.b16 %v3457
      %v3808 = vunpack.c.h.b16 %v3457
      %v3809 = vunpack.c.l.b16 %v3458
      %v3810 = vunpack.c.h.b16 %v3458
      %v3811 = vunpack.c.l.b16 %v3459
      %v3812 = vunpack.c.h.b16 %v3459
      %v3813 = vunpack.c.l.b16 %v3460
      %v3814 = vunpack.c.h.b16 %v3460
      %v3815 = vunpack.c.l.b16 %v3461
      %v3816 = vunpack.c.h.b16 %v3461
      %v3817 = vunpack.c.l.b16 %v3462
      %v3818 = vunpack.c.h.b16 %v3462
      %v3819 = vunpack.c.l.b16 %v3463
      %v3820 = vunpack.c.h.b16 %v3463
      %v3821 = vunpack.c.l.b16 %v3464
      %v3822 = vunpack.c.h.b16 %v3464
      %v3823 = vunpack.c.l.b16 %v3465
      %v3824 = vunpack.c.h.b16 %v3465
      %v3825 = vunpack.c.l.b16 %v3466
      %v3826 = vunpack.c.h.b16 %v3466
      %v3827 = vunpack.c.l.b16 %v3467
      %v3828 = vunpack.c.h.b16 %v3467
      %v3829 = vunpack.c.l.b16 %v3468
      %v3830 = vunpack.c.h.b16 %v3468
      %v3831 = vunpack.c.l.b16 %v3469
      %v3832 = vunpack.c.h.b16 %v3469
      %v3833 = vunpack.c.l.b16 %v3470
      %v3834 = vunpack.c.h.b16 %v3470
      %v3835 = vunpack.c.l.b16 %v3471
      %v3836 = vunpack.c.h.b16 %v3471
      %v3837 = vunpack.c.l.b16 %v3472
      %v3838 = vunpack.c.h.b16 %v3472
      %v3839 = vunpack.c.l.b16 %v3473
      %v3840 = vunpack.c.h.b16 %v3473
      %v3841 = vunpack.c.l.b16 %v3474
      %v3842 = vunpack.c.h.b16 %v3474
      %v3843 = vunpack.c.l.b16 %v3475
      %v3844 = vunpack.c.h.b16 %v3475
      %v3845 = vunpack.c.l.b16 %v3476
      %v3846 = vunpack.c.h.b16 %v3476
      %v3847 = vunpack.c.l.b16 %v3477
      %v3848 = vunpack.c.h.b16 %v3477
      %v3849 = vunpack.c.l.b16 %v3478
      %v3850 = vunpack.c.h.b16 %v3478
      %v3851 = vunpack.c.l.b16 %v3479
      %v3852 = vunpack.c.h.b16 %v3479
      %v3853 = vunpack.c.l.b16 %v3480
      %v3854 = vunpack.c.h.b16 %v3480
      %v3855 = vunpack.c.l.b16 %v3481
      %v3856 = vunpack.c.h.b16 %v3481
      %v3857 = vunpack.c.l.b16 %v3482
      %v3858 = vunpack.c.h.b16 %v3482
      %v3859 = vunpack.c.l.b16 %v3483
      %v3860 = vunpack.c.h.b16 %v3483
      %v3861 = vunpack.c.l.b16 %v3484
      %v3862 = vunpack.c.h.b16 %v3484
      %v3863 = vunpack.c.l.b16 %v3485
      %v3864 = vunpack.c.h.b16 %v3485
      %v3865 = vunpack.c.l.b16 %v3486
      %v3866 = vunpack.c.h.b16 %v3486
      %v3867 = vunpack.c.l.b16 %v3487
      %v3868 = vunpack.c.h.b16 %v3487
      %v3869 = vunpack.c.l.b16 %v3488
      %v3870 = vunpack.c.h.b16 %v3488
      %v3871 = vunpack.c.l.b16 %v3489
      %v3872 = vunpack.c.h.b16 %v3489
      %v3873 = vunpack.c.l.b16 %v3490
      %v3874 = vunpack.c.h.b16 %v3490
      %v3875 = vunpack.c.l.b16 %v3491
      %v3876 = vunpack.c.h.b16 %v3491
      %v3877 = vunpack.c.l.b16 %v3492
      %v3878 = vunpack.c.h.b16 %v3492
      %v3879 = vunpack.c.l.b16 %v3493
      %v3880 = vunpack.c.h.b16 %v3493
      %v3881 = vunpack.c.l.b16 %v3494
      %v3882 = vunpack.c.h.b16 %v3494
      %v3883 = vunpack.c.l.b16 %v3495
      %v3884 = vunpack.c.h.b16 %v3495
      %v3885 = vunpack.c.l.b16 %v3496
      %v3886 = vunpack.c.h.b16 %v3496
      %v3887 = vunpack.c.l.b16 %v3497
      %v3888 = vunpack.c.h.b16 %v3497
      %v3889 = vunpack.c.l.b16 %v3498
      %v3890 = vunpack.c.h.b16 %v3498
      %v3891 = vunpack.c.l.b16 %v3499
      %v3892 = vunpack.c.h.b16 %v3499
      %v3893 = vunpack.c.l.b16 %v3500
      %v3894 = vunpack.c.h.b16 %v3500
      %v3895 = vunpack.c.l.b16 %v3501
      %v3896 = vunpack.c.h.b16 %v3501
      %v3897 = vunpack.c.l.b16 %v3502
      %v3898 = vunpack.c.h.b16 %v3502
      %v3899 = vunpack.c.l.b16 %v3503
      %v3900 = vunpack.c.h.b16 %v3503
      %v3901 = vunpack.c.l.b16 %v3504
      %v3902 = vunpack.c.h.b16 %v3504
      %v3903 = vunpack.c.l.b16 %v3505
      %v3904 = vunpack.c.h.b16 %v3505
      %v3905 = vunpack.c.l.b16 %v3506
      %v3906 = vunpack.c.h.b16 %v3506
      %v3907 = vunpack.c.l.b16 %v3507
      %v3908 = vunpack.c.h.b16 %v3507
      %v3909 = vunpack.c.l.b16 %v3508
      %v3910 = vunpack.c.h.b16 %v3508
      %v3911 = vunpack.c.l.b16 %v3509
      %v3912 = vunpack.c.h.b16 %v3509
      %v3913 = vunpack.c.l.b16 %v3510
      %v3914 = vunpack.c.h.b16 %v3510
      %v3915 = vunpack.c.l.b16 %v3511
      %v3916 = vunpack.c.h.b16 %v3511
      %v3917 = vunpack.c.l.b16 %v3512
      %v3918 = vunpack.c.h.b16 %v3512
      %v3919 = vunpack.c.l.b16 %v3513
      %v3920 = vunpack.c.h.b16 %v3513
      %v3921 = vunpack.c.l.b16 %v3514
      %v3922 = vunpack.c.h.b16 %v3514
      %v3923 = vunpack.c.l.b16 %v3515
      %v3924 = vunpack.c.h.b16 %v3515
      %v3925 = vunpack.c.l.b16 %v3516
      %v3926 = vunpack.c.h.b16 %v3516
      %v3927 = vunpack.c.l.b16 %v3517
      %v3928 = vunpack.c.h.b16 %v3517
      %v3929 = vunpack.c.l.b16 %v3518
      %v3930 = vunpack.c.h.b16 %v3518
      %v3931 = vunpack.c.l.b16 %v3519
      %v3932 = vunpack.c.h.b16 %v3519
      %v3933 = vunpack.c.l.b16 %v3520
      %v3934 = vunpack.c.h.b16 %v3520
      %v3935 = vunpack.c.l.b16 %v3521
      %v3936 = vunpack.c.h.b16 %v3521
      %v3937 = vunpack.c.l.b16 %v3522
      %v3938 = vunpack.c.h.b16 %v3522
      %v3939 = vunpack.c.l.b16 %v3523
      %v3940 = vunpack.c.h.b16 %v3523
      %v3941 = vunpack.c.l.b16 %v3524
      %v3942 = vunpack.c.h.b16 %v3524
      %v3943 = vunpack.c.l.b16 %v3525
      %v3944 = vunpack.c.h.b16 %v3525
      %v3945 = vunpack.c.l.b16 %v3526
      %v3946 = vunpack.c.h.b16 %v3526
      %v3947 = vunpack.c.l.b16 %v3527
      %v3948 = vunpack.c.h.b16 %v3527
      %v3949 = vunpack.c.l.b16 %v3528
      %v3950 = vunpack.c.h.b16 %v3528
      %v3951 = vunpack.c.l.b16 %v3529
      %v3952 = vunpack.c.h.b16 %v3529
      %v3953 = vunpack.c.l.b16 %v3530
      %v3954 = vunpack.c.h.b16 %v3530
      %v3955 = vunpack.c.l.b16 %v3531
      %v3956 = vunpack.c.h.b16 %v3531
      %v3957 = vunpack.c.l.b16 %v3532
      %v3958 = vunpack.c.h.b16 %v3532
      %v3959 = vunpack.c.l.b16 %v3533
      %v3960 = vunpack.c.h.b16 %v3533
      %v3961 = vunpack.c.l.b16 %v3534
      %v3962 = vunpack.c.h.b16 %v3534
      %v3963 = vunpack.c.l.b16 %v3535
      %v3964 = vunpack.c.h.b16 %v3535
      %v3965 = vunpack.c.l.b16 %v3536
      %v3966 = vunpack.c.h.b16 %v3536
      %v3967 = vunpack.c.l.b16 %v3537
      %v3968 = vunpack.c.h.b16 %v3537
      %v3969 = vunpack.c.l.b16 %v3538
      %v3970 = vunpack.c.h.b16 %v3538
      %v3971 = vunpack.c.l.b16 %v3539
      %v3972 = vunpack.c.h.b16 %v3539
      %v3973 = vunpack.c.l.b16 %v3540
      %v3974 = vunpack.c.h.b16 %v3540
      %v3975 = vunpack.c.l.b16 %v3541
      %v3976 = vunpack.c.h.b16 %v3541
      %v3977 = vunpack.c.l.b16 %v3542
      %v3978 = vunpack.c.h.b16 %v3542
      %v3979 = vunpack.c.l.b16 %v3543
      %v3980 = vunpack.c.h.b16 %v3543
      %v3981 = vunpack.c.l.b16 %v3544
      %v3982 = vunpack.c.h.b16 %v3544
      %v3983 = vunpack.c.l.b16 %v3545
      %v3984 = vunpack.c.h.b16 %v3545
      %v3985 = vunpack.c.l.b16 %v3546
      %v3986 = vunpack.c.h.b16 %v3546
      %v3987 = vunpack.c.l.b16 %v3547
      %v3988 = vunpack.c.h.b16 %v3547
      %v3989 = vunpack.c.l.b16 %v3548
      %v3990 = vunpack.c.h.b16 %v3548
      %v3991 = vunpack.c.l.b16 %v3549
      %v3992 = vunpack.c.h.b16 %v3549
      %v3993 = vunpack.c.l.b16 %v3550
      %v3994 = vunpack.c.h.b16 %v3550
      %v3995 = vunpack.c.l.b16 %v3551
      %v3996 = vunpack.c.h.b16 %v3551
      %v3997 = vunpack.c.l.b16 %v3552
      %v3998 = vunpack.c.h.b16 %v3552
      %v3999 = vunpack.c.l.b16 %v3553
      %v4000 = vunpack.c.h.b16 %v3553
      %v4001 = vunpack.c.l.b16 %v3554
      %v4002 = vunpack.c.h.b16 %v3554
      %v4003 = vunpack.c.l.b16 %v3555
      %v4004 = vunpack.c.h.b16 %v3555
      %v4005 = vunpack.c.l.b16 %v3556
      %v4006 = vunpack.c.h.b16 %v3556
      %v4007 = vunpack.c.l.b16 %v3557
      %v4008 = vunpack.c.h.b16 %v3557
      %v4009 = vunpack.c.l.b16 %v3558
      %v4010 = vunpack.c.h.b16 %v3558
      %v4011 = vunpack.c.l.b16 %v3559
      %v4012 = vunpack.c.h.b16 %v3559
      %v4013 = vunpack.c.l.b16 %v3560
      %v4014 = vunpack.c.h.b16 %v3560
      %v4015 = vunpack.c.l.b16 %v3561
      %v4016 = vunpack.c.h.b16 %v3561
      %v4017 = vunpack.c.l.b16 %v3562
      %v4018 = vunpack.c.h.b16 %v3562
      %v4019 = vunpack.c.l.b16 %v3563
      %v4020 = vunpack.c.h.b16 %v3563
      %v4021 = vunpack.c.l.b16 %v3564
      %v4022 = vunpack.c.h.b16 %v3564
      %v4023 = vunpack.c.l.b16 %v3565
      %v4024 = vunpack.c.h.b16 %v3565
      %v4025 = vunpack.c.l.b16 %v3566
      %v4026 = vunpack.c.h.b16 %v3566
      %v4027 = vunpack.c.l.b16 %v3567
      %v4028 = vunpack.c.h.b16 %v3567
      %v4029 = vunpack.c.l.b16 %v3568
      %v4030 = vunpack.c.h.b16 %v3568
      %v4031 = vunpack.c.l.b16 %v3569
      %v4032 = vunpack.c.h.b16 %v3569
      %v4033 = vunpack.c.l.b16 %v3570
      %v4034 = vunpack.c.h.b16 %v3570
      %v4035 = vunpack.c.l.b16 %v3571
      %v4036 = vunpack.c.h.b16 %v3571
      %v4037 = vunpack.c.l.b16 %v3572
      %v4038 = vunpack.c.h.b16 %v3572
      %v4039 = vunpack.c.l.b16 %v3573
      %v4040 = vunpack.c.h.b16 %v3573
      %v4041 = vunpack.c.l.b16 %v3574
      %v4042 = vunpack.c.h.b16 %v3574
      %v4043 = vunpack.c.l.b16 %v3575
      %v4044 = vunpack.c.h.b16 %v3575
      %v4045 = vunpack.c.l.b16 %v3576
      %v4046 = vunpack.c.h.b16 %v3576
      %v4047 = vunpack.c.l.b16 %v3577
      %v4048 = vunpack.c.h.b16 %v3577
      %v4049 = vunpack.c.l.b16 %v3578
      %v4050 = vunpack.c.h.b16 %v3578
      %v4051 = vunpack.c.l.b16 %v3579
      %v4052 = vunpack.c.h.b16 %v3579
      %v4053 = vpack.c.b16 %v3801, %v3797
      %v4054 = vpack.c.b16 %v3802, %v3798
      %v4055 = vpack.c.b16 %v3803, %v3799
      %v4056 = vpack.c.b16 %v3804, %v3800
      %v4057 = vpack.c.b16 %v3809, %v3805
      %v4058 = vpack.c.b16 %v3810, %v3806
      %v4059 = vpack.c.b16 %v3811, %v3807
      %v4060 = vpack.c.b16 %v3812, %v3808
      %v4061 = vpack.c.b16 %v3817, %v3813
      %v4062 = vpack.c.b16 %v3818, %v3814
      %v4063 = vpack.c.b16 %v3819, %v3815
      %v4064 = vpack.c.b16 %v3820, %v3816
      %v4065 = vpack.c.b16 %v3825, %v3821
      %v4066 = vpack.c.b16 %v3826, %v3822
      %v4067 = vpack.c.b16 %v3827, %v3823
      %v4068 = vpack.c.b16 %v3828, %v3824
      %v4069 = vpack.c.b16 %v3833, %v3829
      %v4070 = vpack.c.b16 %v3834, %v3830
      %v4071 = vpack.c.b16 %v3835, %v3831
      %v4072 = vpack.c.b16 %v3836, %v3832
      %v4073 = vpack.c.b16 %v3841, %v3837
      %v4074 = vpack.c.b16 %v3842, %v3838
      %v4075 = vpack.c.b16 %v3843, %v3839
      %v4076 = vpack.c.b16 %v3844, %v3840
      %v4077 = vpack.c.b16 %v3849, %v3845
      %v4078 = vpack.c.b16 %v3850, %v3846
      %v4079 = vpack.c.b16 %v3851, %v3847
      %v4080 = vpack.c.b16 %v3852, %v3848
      %v4081 = vpack.c.b16 %v3857, %v3853
      %v4082 = vpack.c.b16 %v3858, %v3854
      %v4083 = vpack.c.b16 %v3859, %v3855
      %v4084 = vpack.c.b16 %v3860, %v3856
      %v4085 = vpack.c.b16 %v3865, %v3861
      %v4086 = vpack.c.b16 %v3866, %v3862
      %v4087 = vpack.c.b16 %v3867, %v3863
      %v4088 = vpack.c.b16 %v3868, %v3864
      %v4089 = vpack.c.b16 %v3873, %v3869
      %v4090 = vpack.c.b16 %v3874, %v3870
      %v4091 = vpack.c.b16 %v3875, %v3871
      %v4092 = vpack.c.b16 %v3876, %v3872
      %v4093 = vpack.c.b16 %v3881, %v3877
      %v4094 = vpack.c.b16 %v3882, %v3878
      %v4095 = vpack.c.b16 %v3883, %v3879
      %v4096 = vpack.c.b16 %v3884, %v3880
      %v4097 = vpack.c.b16 %v3889, %v3885
      %v4098 = vpack.c.b16 %v3890, %v3886
      %v4099 = vpack.c.b16 %v3891, %v3887
      %v4100 = vpack.c.b16 %v3892, %v3888
      %v4101 = vpack.c.b16 %v3897, %v3893
      %v4102 = vpack.c.b16 %v3898, %v3894
      %v4103 = vpack.c.b16 %v3899, %v3895
      %v4104 = vpack.c.b16 %v3900, %v3896
      %v4105 = vpack.c.b16 %v3905, %v3901
      %v4106 = vpack.c.b16 %v3906, %v3902
      %v4107 = vpack.c.b16 %v3907, %v3903
      %v4108 = vpack.c.b16 %v3908, %v3904
      %v4109 = vpack.c.b16 %v3913, %v3909
      %v4110 = vpack.c.b16 %v3914, %v3910
      %v4111 = vpack.c.b16 %v3915, %v3911
      %v4112 = vpack.c.b16 %v3916, %v3912
      %v4113 = vpack.c.b16 %v3921, %v3917
      %v4114 = vpack.c.b16 %v3922, %v3918
      %v4115 = vpack.c.b16 %v3923, %v3919
      %v4116 = vpack.c.b16 %v3924, %v3920
      %v4117 = vpack.c.b16 %v3929, %v3925
      %v4118 = vpack.c.b16 %v3930, %v3926
      %v4119 = vpack.c.b16 %v3931, %v3927
      %v4120 = vpack.c.b16 %v3932, %v3928
      %v4121 = vpack.c.b16 %v3937, %v3933
      %v4122 = vpack.c.b16 %v3938, %v3934
      %v4123 = vpack.c.b16 %v3939, %v3935
      %v4124 = vpack.c.b16 %v3940, %v3936
      %v4125 = vpack.c.b16 %v3945, %v3941
      %v4126 = vpack.c.b16 %v3946, %v3942
      %v4127 = vpack.c.b16 %v3947, %v3943
      %v4128 = vpack.c.b16 %v3948, %v3944
      %v4129 = vpack.c.b16 %v3953, %v3949
      %v4130 = vpack.c.b16 %v3954, %v3950
      %v4131 = vpack.c.b16 %v3955, %v3951
      %v4132 = vpack.c.b16 %v3956, %v3952
      %v4133 = vpack.c.b16 %v3961, %v3957
      %v4134 = vpack.c.b16 %v3962, %v3958
      %v4135 = vpack.c.b16 %v3963, %v3959
      %v4136 = vpack.c.b16 %v3964, %v3960
      %v4137 = vpack.c.b16 %v3969, %v3965
      %v4138 = vpack.c.b16 %v3970, %v3966
      %v4139 = vpack.c.b16 %v3971, %v3967
      %v4140 = vpack.c.b16 %v3972, %v3968
      %v4141 = vpack.c.b16 %v3977, %v3973
      %v4142 = vpack.c.b16 %v3978, %v3974
      %v4143 = vpack.c.b16 %v3979, %v3975
      %v4144 = vpack.c.b16 %v3980, %v3976
      %v4145 = vpack.c.b16 %v3985, %v3981
      %v4146 = vpack.c.b16 %v3986, %v3982
      %v4147 = vpack.c.b16 %v3987, %v3983
      %v4148 = vpack.c.b16 %v3988, %v3984
      %v4149 = vpack.c.b16 %v3993, %v3989
      %v4150 = vpack.c.b16 %v3994, %v3990
      %v4151 = vpack.c.b16 %v3995, %v3991
      %v4152 = vpack.c.b16 %v3996, %v3992
      %v4153 = vpack.c.b16 %v4001, %v3997
      %v4154 = vpack.c.b16 %v4002, %v3998
      %v4155 = vpack.c.b16 %v4003, %v3999
      %v4156 = vpack.c.b16 %v4004, %v4000
      %v4157 = vpack.c.b16 %v4009, %v4005
      %v4158 = vpack.c.b16 %v4010, %v4006
      %v4159 = vpack.c.b16 %v4011, %v4007
      %v4160 = vpack.c.b16 %v4012, %v4008
      %v4161 = vpack.c.b16 %v4017, %v4013
      %v4162 = vpack.c.b16 %v4018, %v4014
      %v4163 = vpack.c.b16 %v4019, %v4015
      %v4164 = vpack.c.b16 %v4020, %v4016
      %v4165 = vpack.c.b16 %v4025, %v4021
      %v4166 = vpack.c.b16 %v4026, %v4022
      %v4167 = vpack.c.b16 %v4027, %v4023
      %v4168 = vpack.c.b16 %v4028, %v4024
      %v4169 = vpack.c.b16 %v4033, %v4029
      %v4170 = vpack.c.b16 %v4034, %v4030
      %v4171 = vpack.c.b16 %v4035, %v4031
      %v4172 = vpack.c.b16 %v4036, %v4032
      %v4173 = vpack.c.b16 %v4041, %v4037
      %v4174 = vpack.c.b16 %v4042, %v4038
      %v4175 = vpack.c.b16 %v4043, %v4039
      %v4176 = vpack.c.b16 %v4044, %v4040
      %v4177 = vpack.c.b16 %v4049, %v4045
      %v4178 = vpack.c.b16 %v4050, %v4046
      %v4179 = vpack.c.b16 %v4051, %v4047
      %v4180 = vpack.c.b16 %v4052, %v4048
      %4309 = vmatprep.subr.bf16.mxu0 %v4054
      %4310 = vmatpush1.bf16.msra.mxu0 %v4053
      %4311 = vmatprep.subr.bf16.mxu0 %v4058
      %4312 = vmatpush1.bf16.msra.mxu0 %v4057
      %4313 = vmatprep.subr.bf16.mxu0 %v4062
      %4314 = vmatpush1.bf16.msra.mxu0 %v4061
      %4315 = vmatprep.subr.bf16.mxu0 %v4066
      %4316 = vmatpush1.bf16.msra.mxu0 %v4065
      %4317 = vmatprep.subr.bf16.mxu0 %v4070
      %4318 = vmatpush1.bf16.msra.mxu0 %v4069
      %4319 = vmatprep.subr.bf16.mxu0 %v4074
      %4320 = vmatpush1.bf16.msra.mxu0 %v4073
      %4321 = vmatprep.subr.bf16.mxu0 %v4078
      %4322 = vmatpush1.bf16.msra.mxu0 %v4077
      %4323 = vmatprep.subr.bf16.mxu0 %v4082
      %4324 = vmatpush1.bf16.msra.mxu0 %v4081
      %4325 = vmatprep.subr.bf16.mxu0 %v4086
      %4326 = vmatpush1.bf16.msra.mxu0 %v4085
      %4327 = vmatprep.subr.bf16.mxu0 %v4090
      %4328 = vmatpush1.bf16.msra.mxu0 %v4089
      %4329 = vmatprep.subr.bf16.mxu0 %v4094
      %4330 = vmatpush1.bf16.msra.mxu0 %v4093
      %4331 = vmatprep.subr.bf16.mxu0 %v4098
      %4332 = vmatpush1.bf16.msra.mxu0 %v4097
      %4333 = vmatprep.subr.bf16.mxu0 %v4102
      %4334 = vmatpush1.bf16.msra.mxu0 %v4101
      %4335 = vmatprep.subr.bf16.mxu0 %v4106
      %4336 = vmatpush1.bf16.msra.mxu0 %v4105
      %4337 = vmatprep.subr.bf16.mxu0 %v4110
      %4338 = vmatpush1.bf16.msra.mxu0 %v4109
      %4339 = vmatprep.subr.bf16.mxu0 %v4114
      %4340 = vmatpush1.bf16.msra.mxu0 %v4113
      %4341 = vmatprep.mubr.bf16.mxu0 %v3604
      %4342 = vmatmul.mubr.bf16.gmra.mrb[0].mxu0 %v3592
      %v4343 = vpop.f32.mrb[0].mxu0
      %v4344 = vadd.f32 0.0, %v4343
      %v4345 = vpop.f32.mrb[0].mxu0
      %v4346 = vadd.f32 0.0, %v4345
      %v4347 = vpop.f32.mrb[0].mxu0
      %v4348 = vadd.f32 0.0, %v4347
      %v4349 = vpop.f32.mrb[0].mxu0
      %v4350 = vadd.f32 0.0, %v4349
      %4351 = vmatprep.mubr.bf16.mxu0 %v3644
      %4352 = vmatmul.mubr.bf16.gmra.mrb[0].mxu0 %v3636
      %v4353 = vpop.f32.mrb[0].mxu0
      %v4354 = vadd.f32 0.0, %v4353
      %v4355 = vpop.f32.mrb[0].mxu0
      %v4356 = vadd.f32 0.0, %v4355
      %v4357 = vpop.f32.mrb[0].mxu0
      %v4358 = vadd.f32 0.0, %v4357
      %v4359 = vpop.f32.mrb[0].mxu0
      %v4360 = vadd.f32 0.0, %v4359
      %4361 = vdwg.mxu0
      %4362 = vmatprep.subr.bf16.mxu0 %v4118
      %4363 = vmatpush1.bf16.msra.mxu0 %v4117
      %4364 = vmatprep.subr.bf16.mxu0 %v4122
      %4365 = vmatpush1.bf16.msra.mxu0 %v4121
      %4366 = vmatprep.subr.bf16.mxu0 %v4126
      %4367 = vmatpush1.bf16.msra.mxu0 %v4125
      %4368 = vmatprep.subr.bf16.mxu0 %v4130
      %4369 = vmatpush1.bf16.msra.mxu0 %v4129
      %4370 = vmatprep.subr.bf16.mxu0 %v4134
      %4371 = vmatpush1.bf16.msra.mxu0 %v4133
      %4372 = vmatprep.subr.bf16.mxu0 %v4138
      %4373 = vmatpush1.bf16.msra.mxu0 %v4137
      %4374 = vmatprep.subr.bf16.mxu0 %v4142
      %4375 = vmatpush1.bf16.msra.mxu0 %v4141
      %4376 = vmatprep.subr.bf16.mxu0 %v4146
      %4377 = vmatpush1.bf16.msra.mxu0 %v4145
      %4378 = vmatprep.subr.bf16.mxu0 %v4150
      %4379 = vmatpush1.bf16.msra.mxu0 %v4149
      %4380 = vmatprep.subr.bf16.mxu0 %v4154
      %4381 = vmatpush1.bf16.msra.mxu0 %v4153
      %4382 = vmatprep.subr.bf16.mxu0 %v4158
      %4383 = vmatpush1.bf16.msra.mxu0 %v4157
      %4384 = vmatprep.subr.bf16.mxu0 %v4162
      %4385 = vmatpush1.bf16.msra.mxu0 %v4161
      %4386 = vmatprep.subr.bf16.mxu0 %v4166
      %4387 = vmatpush1.bf16.msra.mxu0 %v4165
      %4388 = vmatprep.subr.bf16.mxu0 %v4170
      %4389 = vmatpush1.bf16.msra.mxu0 %v4169
      %4390 = vmatprep.subr.bf16.mxu0 %v4174
      %4391 = vmatpush1.bf16.msra.mxu0 %v4173
      %4392 = vmatprep.subr.bf16.mxu0 %v4178
      %4393 = vmatpush1.bf16.msra.mxu0 %v4177
      %4394 = vmatprep.mubr.bf16.mxu0 %v3628
      %4395 = vmatmul.mubr.bf16.gmra.mrb[0].mxu0 %v3616
      %v4396 = vpop.f32.mrb[0].mxu0
      %v4397 = vadd.f32 %v4344, %v4396
      %v4398 = vpop.f32.mrb[0].mxu0
      %v4399 = vadd.f32 %v4346, %v4398
      %v4400 = vpop.f32.mrb[0].mxu0
      %v4401 = vadd.f32 %v4348, %v4400
      %v4402 = vpop.f32.mrb[0].mxu0
      %v4403 = vadd.f32 %v4350, %v4402
      %4404 = vmatprep.mubr.bf16.mxu0 %v3660
      %4405 = vmatmul.mubr.bf16.gmra.mrb[0].mxu0 %v3652
      %v4406 = vpop.f32.mrb[0].mxu0
      %v4407 = vadd.f32 %v4354, %v4406
      %v4408 = vpop.f32.mrb[0].mxu0
      %v4409 = vadd.f32 %v4356, %v4408
      %v4410 = vpop.f32.mrb[0].mxu0
      %v4411 = vadd.f32 %v4358, %v4410
      %v4412 = vpop.f32.mrb[0].mxu0
      %v4413 = vadd.f32 %v4360, %v4412
      %4414 = vdwg.mxu0
      %4415 = vmatprep.subr.bf16.mxu0 %v4056
      %4416 = vmatpush1.bf16.msra.mxu0 %v4055
      %4417 = vmatprep.subr.bf16.mxu0 %v4060
      %4418 = vmatpush1.bf16.msra.mxu0 %v4059
      %4419 = vmatprep.subr.bf16.mxu0 %v4064
      %4420 = vmatpush1.bf16.msra.mxu0 %v4063
      %4421 = vmatprep.subr.bf16.mxu0 %v4068
      %4422 = vmatpush1.bf16.msra.mxu0 %v4067
      %4423 = vmatprep.subr.bf16.mxu0 %v4072
      %4424 = vmatpush1.bf16.msra.mxu0 %v4071
      %4425 = vmatprep.subr.bf16.mxu0 %v4076
      %4426 = vmatpush1.bf16.msra.mxu0 %v4075
      %4427 = vmatprep.subr.bf16.mxu0 %v4080
      %4428 = vmatpush1.bf16.msra.mxu0 %v4079
      %4429 = vmatprep.subr.bf16.mxu0 %v4084
      %4430 = vmatpush1.bf16.msra.mxu0 %v4083
      %4431 = vmatprep.subr.bf16.mxu0 %v4088
      %4432 = vmatpush1.bf16.msra.mxu0 %v4087
      %4433 = vmatprep.subr.bf16.mxu0 %v4092
      %4434 = vmatpush1.bf16.msra.mxu0 %v4091
      %4435 = vmatprep.subr.bf16.mxu0 %v4096
      %4436 = vmatpush1.bf16.msra.mxu0 %v4095
      %4437 = vmatprep.subr.bf16.mxu0 %v4100
      %4438 = vmatpush1.bf16.msra.mxu0 %v4099
      %4439 = vmatprep.subr.bf16.mxu0 %v4104
      %4440 = vmatpush1.bf16.msra.mxu0 %v4103
      %4441 = vmatprep.subr.bf16.mxu0 %v4108
      %4442 = vmatpush1.bf16.msra.mxu0 %v4107
      %4443 = vmatprep.subr.bf16.mxu0 %v4112
      %4444 = vmatpush1.bf16.msra.mxu0 %v4111
      %4445 = vmatprep.subr.bf16.mxu0 %v4116
      %4446 = vmatpush1.bf16.msra.mxu0 %v4115
      %4447 = vmatprep.mubr.bf16.mxu0 %v3604
      %4448 = vmatmul.mubr.bf16.gmra.mrb[0].mxu0 %v3592
      %v4449 = vpop.f32.mrb[0].mxu0
      %v4450 = vadd.f32 0.0, %v4449
      %v4451 = vpop.f32.mrb[0].mxu0
      %v4452 = vadd.f32 0.0, %v4451
      %v4453 = vpop.f32.mrb[0].mxu0
      %v4454 = vadd.f32 0.0, %v4453
      %v4455 = vpop.f32.mrb[0].mxu0
      %v4456 = vadd.f32 0.0, %v4455
      %4457 = vmatprep.mubr.bf16.mxu0 %v3644
      %4458 = vmatmul.mubr.bf16.gmra.mrb[0].mxu0 %v3636
      %v4459 = vpop.f32.mrb[0].mxu0
      %v4460 = vadd.f32 0.0, %v4459
      %v4461 = vpop.f32.mrb[0].mxu0
      %v4462 = vadd.f32 0.0, %v4461
      %v4463 = vpop.f32.mrb[0].mxu0
      %v4464 = vadd.f32 0.0, %v4463
      %v4465 = vpop.f32.mrb[0].mxu0
      %v4466 = vadd.f32 0.0, %v4465
      %4467 = vdwg.mxu0
      %4468 = vmatprep.subr.bf16.mxu0 %v4120
      %4469 = vmatpush1.bf16.msra.mxu0 %v4119
      %4470 = vmatprep.subr.bf16.mxu0 %v4124
      %4471 = vmatpush1.bf16.msra.mxu0 %v4123
      %4472 = vmatprep.subr.bf16.mxu0 %v4128
      %4473 = vmatpush1.bf16.msra.mxu0 %v4127
      %4474 = vmatprep.subr.bf16.mxu0 %v4132
      %4475 = vmatpush1.bf16.msra.mxu0 %v4131
      %4476 = vmatprep.subr.bf16.mxu0 %v4136
      %4477 = vmatpush1.bf16.msra.mxu0 %v4135
      %4478 = vmatprep.subr.bf16.mxu0 %v4140
      %4479 = vmatpush1.bf16.msra.mxu0 %v4139
      %4480 = vmatprep.subr.bf16.mxu0 %v4144
      %4481 = vmatpush1.bf16.msra.mxu0 %v4143
      %4482 = vmatprep.subr.bf16.mxu0 %v4148
      %4483 = vmatpush1.bf16.msra.mxu0 %v4147
      %4484 = vmatprep.subr.bf16.mxu0 %v4152
      %4485 = vmatpush1.bf16.msra.mxu0 %v4151
      %4486 = vmatprep.subr.bf16.mxu0 %v4156
      %4487 = vmatpush1.bf16.msra.mxu0 %v4155
      %4488 = vmatprep.subr.bf16.mxu0 %v4160
      %4489 = vmatpush1.bf16.msra.mxu0 %v4159
      %4490 = vmatprep.subr.bf16.mxu0 %v4164
      %4491 = vmatpush1.bf16.msra.mxu0 %v4163
      %4492 = vmatprep.subr.bf16.mxu0 %v4168
      %4493 = vmatpush1.bf16.msra.mxu0 %v4167
      %4494 = vmatprep.subr.bf16.mxu0 %v4172
      %4495 = vmatpush1.bf16.msra.mxu0 %v4171
      %4496 = vmatprep.subr.bf16.mxu0 %v4176
      %4497 = vmatpush1.bf16.msra.mxu0 %v4175
      %4498 = vmatprep.subr.bf16.mxu0 %v4180
      %4499 = vmatpush1.bf16.msra.mxu0 %v4179
      %4500 = vmatprep.mubr.bf16.mxu0 %v3628
      %4501 = vmatmul.mubr.bf16.gmra.mrb[0].mxu0 %v3616
      %v4502 = vpop.f32.mrb[0].mxu0
      %v4503 = vadd.f32 %v4450, %v4502
      %v4504 = vpop.f32.mrb[0].mxu0
      %v4505 = vadd.f32 %v4452, %v4504
      %v4506 = vpop.f32.mrb[0].mxu0
      %v4507 = vadd.f32 %v4454, %v4506
      %v4508 = vpop.f32.mrb[0].mxu0
      %v4509 = vadd.f32 %v4456, %v4508
      %4510 = vmatprep.mubr.bf16.mxu0 %v3660
      %4511 = vmatmul.mubr.bf16.gmra.mrb[0].mxu0 %v3652
      %v4512 = vpop.f32.mrb[0].mxu0
      %v4513 = vadd.f32 %v4460, %v4512
      %v4514 = vpop.f32.mrb[0].mxu0
      %v4515 = vadd.f32 %v4462, %v4514
      %v4516 = vpop.f32.mrb[0].mxu0
      %v4517 = vadd.f32 %v4464, %v4516
      %v4518 = vpop.f32.mrb[0].mxu0
      %v4519 = vadd.f32 %v4466, %v4518
      %4520 = vdwg.mxu0
      %v4521 = vadd.f32 %v3295, %v4397
      %v4522 = vadd.f32 %v3297, %v4399
      %v4523 = vadd.f32 %v3401, %v4503
      %v4524 = vadd.f32 %v3403, %v4505
      %v4525 = vadd.f32 %v3299, %v4401
      %v4526 = vadd.f32 %v3301, %v4403
      %v4527 = vadd.f32 %v3405, %v4507
      %v4528 = vadd.f32 %v3407, %v4509
      %v4529 = vadd.f32 %v3305, %v4407
      %v4530 = vadd.f32 %v3307, %v4409
      %v4531 = vadd.f32 %v3411, %v4513
      %v4532 = vadd.f32 %v3413, %v4515
      %v4533 = vadd.f32 %v3309, %v4411
      %v4534 = vadd.f32 %v3311, %v4413
      %v4535 = vadd.f32 %v3415, %v4517
      %v4536 = vadd.f32 %v3417, %v4519
      %v4537 = vld [vmem:[%s6] sm:$0xf]
      %v4539 = vlaneseq
      %v4540 = vshrl.u32 %v4539, 7
      %v4541 = vsub.s32 0, %v4540
      %v4542 = vrot.slane %v4537, %v4541
      %v4543 = vlaneseq
      %v4544 = vshrl.u32 %v4543, 7
      %v4545 = vsub.s32 1, %v4544
      %v4546 = vrot.slane %v4537, %v4545
      %v4547 = vlaneseq
      %v4548 = vshrl.u32 %v4547, 7
      %v4549 = vsub.s32 2, %v4548
      %v4550 = vrot.slane %v4537, %v4549
      %v4551 = vlaneseq
      %v4552 = vshrl.u32 %v4551, 7
      %v4553 = vsub.s32 3, %v4552
      %v4554 = vrot.slane %v4537, %v4553
      %v4559 = vadd.f32 %v4521, %v4542
      %v4560 = vadd.f32 %v4522, %v4546
      %v4561 = vadd.f32 %v4523, %v4550
      %v4562 = vadd.f32 %v4524, %v4554
      %v4563 = vadd.f32 %v4525, %v4542
      %v4564 = vadd.f32 %v4526, %v4546
      %v4565 = vadd.f32 %v4527, %v4550
      %v4566 = vadd.f32 %v4528, %v4554
      %v4567 = vadd.f32 %v4529, %v4542
      %v4568 = vadd.f32 %v4530, %v4546
      %v4569 = vadd.f32 %v4531, %v4550
      %v4570 = vadd.f32 %v4532, %v4554
      %v4571 = vadd.f32 %v4533, %v4542
      %v4572 = vadd.f32 %v4534, %v4546
      %v4573 = vadd.f32 %v4535, %v4550
      %v4574 = vadd.f32 %v4536, %v4554
      %v4575 = vmax.f32 %v4559, 0.0
      %v4576 = vmax.f32 %v4560, 0.0
      %v4577 = vmax.f32 %v4561, 0.0
      %v4578 = vmax.f32 %v4562, 0.0
      %v4579 = vmax.f32 %v4563, 0.0
      %v4580 = vmax.f32 %v4564, 0.0
      %v4581 = vmax.f32 %v4565, 0.0
      %v4582 = vmax.f32 %v4566, 0.0
      %v4583 = vmax.f32 %v4567, 0.0
      %v4584 = vmax.f32 %v4568, 0.0
      %v4585 = vmax.f32 %v4569, 0.0
      %v4586 = vmax.f32 %v4570, 0.0
      %v4587 = vmax.f32 %v4571, 0.0
      %v4588 = vmax.f32 %v4572, 0.0
      %v4589 = vmax.f32 %v4573, 0.0
      %v4590 = vmax.f32 %v4574, 0.0
      %v4591 = vpack.c.bf16 %v4579, %v4575
      %v4592 = vpack.c.bf16 %v4580, %v4576
      %v4593 = vpack.c.bf16 %v4581, %v4577
      %v4594 = vpack.c.bf16 %v4582, %v4578
      %v4595 = vpack.c.bf16 %v4587, %v4583
      %v4596 = vpack.c.bf16 %v4588, %v4584
      %v4597 = vpack.c.bf16 %v4589, %v4585
      %v4598 = vpack.c.bf16 %v4590, %v4586
      %v4599 = vld [vmem:[%s7] sm:$0xff]
      %v4600 = vld [vmem:[%s7 + $0x8] sm:$0xff]
      %v4601 = vld [vmem:[%s7 + $0x10] sm:$0xff]
      %v4602 = vld [vmem:[%s7 + $0x18] sm:$0xff]
      %v4603 = vld [vmem:[%s7 + $0x20] sm:$0xff]
      %v4604 = vld [vmem:[%s7 + $0x28] sm:$0xff]
      %v4605 = vld [vmem:[%s7 + $0x30] sm:$0xff]
      %v4606 = vld [vmem:[%s7 + $0x38] sm:$0xff]
      %v4607 = vld [vmem:[%s7 + $0x40] sm:$0xff]
      %v4608 = vld [vmem:[%s7 + $0x48] sm:$0xff]
      %v4609 = vld [vmem:[%s7 + $0x50] sm:$0xff]
      %v4610 = vld [vmem:[%s7 + $0x58] sm:$0xff]
      %v4611 = vld [vmem:[%s7 + $0x60] sm:$0xff]
      %v4612 = vld [vmem:[%s7 + $0x68] sm:$0xff]
      %v4613 = vld [vmem:[%s7 + $0x70] sm:$0xff]
      %v4614 = vld [vmem:[%s7 + $0x78] sm:$0xff]
      %v4615 = vld [vmem:[%s7 + $0x80] sm:$0xff]
      %v4616 = vld [vmem:[%s7 + $0x88] sm:$0xff]
      %v4617 = vld [vmem:[%s7 + $0x90] sm:$0xff]
      %v4618 = vld [vmem:[%s7 + $0x98] sm:$0xff]
      %v4619 = vld [vmem:[%s7 + $0xa0] sm:$0xff]
      %v4620 = vld [vmem:[%s7 + $0xa8] sm:$0xff]
      %v4621 = vld [vmem:[%s7 + $0xb0] sm:$0xff]
      %v4622 = vld [vmem:[%s7 + $0xb8] sm:$0xff]
      %v4623 = vld [vmem:[%s7 + $0xc0] sm:$0xff]
      %v4624 = vld [vmem:[%s7 + $0xc8] sm:$0xff]
      %v4625 = vld [vmem:[%s7 + $0xd0] sm:$0xff]
      %v4626 = vld [vmem:[%s7 + $0xd8] sm:$0xff]
      %v4627 = vld [vmem:[%s7 + $0xe0] sm:$0xff]
      %v4628 = vld [vmem:[%s7 + $0xe8] sm:$0xff]
      %v4629 = vld [vmem:[%s7 + $0xf0] sm:$0xff]
      %v4630 = vld [vmem:[%s7 + $0xf8] sm:$0xff]
      %v4631 = vld [vmem:[%s7 + $0x100] sm:$0xff]
      %v4632 = vld [vmem:[%s7 + $0x108] sm:$0xff]
      %v4633 = vld [vmem:[%s7 + $0x110] sm:$0xff]
      %v4634 = vld [vmem:[%s7 + $0x118] sm:$0xff]
      %v4635 = vld [vmem:[%s7 + $0x120] sm:$0xff]
      %v4636 = vld [vmem:[%s7 + $0x128] sm:$0xff]
      %v4637 = vld [vmem:[%s7 + $0x130] sm:$0xff]
      %v4638 = vld [vmem:[%s7 + $0x138] sm:$0xff]
      %v4639 = vld [vmem:[%s7 + $0x140] sm:$0xff]
      %v4640 = vld [vmem:[%s7 + $0x148] sm:$0xff]
      %v4641 = vld [vmem:[%s7 + $0x150] sm:$0xff]
      %v4642 = vld [vmem:[%s7 + $0x158] sm:$0xff]
      %v4643 = vld [vmem:[%s7 + $0x160] sm:$0xff]
      %v4644 = vld [vmem:[%s7 + $0x168] sm:$0xff]
      %v4645 = vld [vmem:[%s7 + $0x170] sm:$0xff]
      %v4646 = vld [vmem:[%s7 + $0x178] sm:$0xff]
      %v4647 = vld [vmem:[%s7 + $0x180] sm:$0xff]
      %v4648 = vld [vmem:[%s7 + $0x188] sm:$0xff]
      %v4649 = vld [vmem:[%s7 + $0x190] sm:$0xff]
      %v4650 = vld [vmem:[%s7 + $0x198] sm:$0xff]
      %v4651 = vld [vmem:[%s7 + $0x1a0] sm:$0xff]
      %v4652 = vld [vmem:[%s7 + $0x1a8] sm:$0xff]
      %v4653 = vld [vmem:[%s7 + $0x1b0] sm:$0xff]
      %v4654 = vld [vmem:[%s7 + $0x1b8] sm:$0xff]
      %v4655 = vld [vmem:[%s7 + $0x1c0] sm:$0xff]
      %v4656 = vld [vmem:[%s7 + $0x1c8] sm:$0xff]
      %v4657 = vld [vmem:[%s7 + $0x1d0] sm:$0xff]
      %v4658 = vld [vmem:[%s7 + $0x1d8] sm:$0xff]
      %v4659 = vld [vmem:[%s7 + $0x1e0] sm:$0xff]
      %v4660 = vld [vmem:[%s7 + $0x1e8] sm:$0xff]
      %v4661 = vld [vmem:[%s7 + $0x1f0] sm:$0xff]
      %v4662 = vld [vmem:[%s7 + $0x1f8] sm:$0xff]
      %v4663 = vld [vmem:[%s7 + $0x200] sm:$0xff]
      %v4664 = vld [vmem:[%s7 + $0x208] sm:$0xff]
      %v4665 = vld [vmem:[%s7 + $0x210] sm:$0xff]
      %v4666 = vld [vmem:[%s7 + $0x218] sm:$0xff]
      %v4667 = vld [vmem:[%s7 + $0x220] sm:$0xff]
      %v4668 = vld [vmem:[%s7 + $0x228] sm:$0xff]
      %v4669 = vld [vmem:[%s7 + $0x230] sm:$0xff]
      %v4670 = vld [vmem:[%s7 + $0x238] sm:$0xff]
      %v4671 = vld [vmem:[%s7 + $0x240] sm:$0xff]
      %v4672 = vld [vmem:[%s7 + $0x248] sm:$0xff]
      %v4673 = vld [vmem:[%s7 + $0x250] sm:$0xff]
      %v4674 = vld [vmem:[%s7 + $0x258] sm:$0xff]
      %v4675 = vld [vmem:[%s7 + $0x260] sm:$0xff]
      %v4676 = vld [vmem:[%s7 + $0x268] sm:$0xff]
      %v4677 = vld [vmem:[%s7 + $0x270] sm:$0xff]
      %v4678 = vld [vmem:[%s7 + $0x278] sm:$0xff]
      %v4679 = vld [vmem:[%s7 + $0x280] sm:$0xff]
      %v4680 = vld [vmem:[%s7 + $0x288] sm:$0xff]
      %v4681 = vld [vmem:[%s7 + $0x290] sm:$0xff]
      %v4682 = vld [vmem:[%s7 + $0x298] sm:$0xff]
      %v4683 = vld [vmem:[%s7 + $0x2a0] sm:$0xff]
      %v4684 = vld [vmem:[%s7 + $0x2a8] sm:$0xff]
      %v4685 = vld [vmem:[%s7 + $0x2b0] sm:$0xff]
      %v4686 = vld [vmem:[%s7 + $0x2b8] sm:$0xff]
      %v4687 = vld [vmem:[%s7 + $0x2c0] sm:$0xff]
      %v4688 = vld [vmem:[%s7 + $0x2c8] sm:$0xff]
      %v4689 = vld [vmem:[%s7 + $0x2d0] sm:$0xff]
      %v4690 = vld [vmem:[%s7 + $0x2d8] sm:$0xff]
      %v4691 = vld [vmem:[%s7 + $0x2e0] sm:$0xff]
      %v4692 = vld [vmem:[%s7 + $0x2e8] sm:$0xff]
      %v4693 = vld [vmem:[%s7 + $0x2f0] sm:$0xff]
      %v4694 = vld [vmem:[%s7 + $0x2f8] sm:$0xff]
      %v4695 = vld [vmem:[%s7 + $0x300] sm:$0xff]
      %v4696 = vld [vmem:[%s7 + $0x308] sm:$0xff]
      %v4697 = vld [vmem:[%s7 + $0x310] sm:$0xff]
      %v4698 = vld [vmem:[%s7 + $0x318] sm:$0xff]
      %v4699 = vld [vmem:[%s7 + $0x320] sm:$0xff]
      %v4700 = vld [vmem:[%s7 + $0x328] sm:$0xff]
      %v4701 = vld [vmem:[%s7 + $0x330] sm:$0xff]
      %v4702 = vld [vmem:[%s7 + $0x338] sm:$0xff]
      %v4703 = vld [vmem:[%s7 + $0x340] sm:$0xff]
      %v4704 = vld [vmem:[%s7 + $0x348] sm:$0xff]
      %v4705 = vld [vmem:[%s7 + $0x350] sm:$0xff]
      %v4706 = vld [vmem:[%s7 + $0x358] sm:$0xff]
      %v4707 = vld [vmem:[%s7 + $0x360] sm:$0xff]
      %v4708 = vld [vmem:[%s7 + $0x368] sm:$0xff]
      %v4709 = vld [vmem:[%s7 + $0x370] sm:$0xff]
      %v4710 = vld [vmem:[%s7 + $0x378] sm:$0xff]
      %v4711 = vld [vmem:[%s7 + $0x380] sm:$0xff]
      %v4712 = vld [vmem:[%s7 + $0x388] sm:$0xff]
      %v4713 = vld [vmem:[%s7 + $0x390] sm:$0xff]
      %v4714 = vld [vmem:[%s7 + $0x398] sm:$0xff]
      %v4715 = vld [vmem:[%s7 + $0x3a0] sm:$0xff]
      %v4716 = vld [vmem:[%s7 + $0x3a8] sm:$0xff]
      %v4717 = vld [vmem:[%s7 + $0x3b0] sm:$0xff]
      %v4718 = vld [vmem:[%s7 + $0x3b8] sm:$0xff]
      %v4719 = vld [vmem:[%s7 + $0x3c0] sm:$0xff]
      %v4720 = vld [vmem:[%s7 + $0x3c8] sm:$0xff]
      %v4721 = vld [vmem:[%s7 + $0x3d0] sm:$0xff]
      %v4722 = vld [vmem:[%s7 + $0x3d8] sm:$0xff]
      %v4723 = vld [vmem:[%s7 + $0x3e0] sm:$0xff]
      %v4724 = vld [vmem:[%s7 + $0x3e8] sm:$0xff]
      %v4725 = vld [vmem:[%s7 + $0x3f0] sm:$0xff]
      %v4726 = vld [vmem:[%s7 + $0x3f8] sm:$0xff]
      %v4727 = vld [vmem:[%s8] sm:$0xf]
      %v4729 = vlaneseq
      %v4730 = vshrl.u32 %v4729, 7
      %v4731 = vsub.s32 0, %v4730
      %v4732 = vrot.slane %v4727, %v4731
      %v4733 = vlaneseq
      %v4734 = vshrl.u32 %v4733, 7
      %v4735 = vsub.s32 1, %v4734
      %v4736 = vrot.slane %v4727, %v4735
      %v4737 = vlaneseq
      %v4738 = vshrl.u32 %v4737, 7
      %v4739 = vsub.s32 2, %v4738
      %v4740 = vrot.slane %v4727, %v4739
      %v4741 = vlaneseq
      %v4742 = vshrl.u32 %v4741, 7
      %v4743 = vsub.s32 3, %v4742
      %v4744 = vrot.slane %v4727, %v4743
      %v4877 = vunpack.c.l.b16 %v4599
      %v4878 = vunpack.c.h.b16 %v4599
      %v4879 = vunpack.c.l.b16 %v4600
      %v4880 = vunpack.c.h.b16 %v4600
      %v4881 = vunpack.c.l.b16 %v4601
      %v4882 = vunpack.c.h.b16 %v4601
      %v4883 = vunpack.c.l.b16 %v4602
      %v4884 = vunpack.c.h.b16 %v4602
      %v4885 = vunpack.c.l.b16 %v4603
      %v4886 = vunpack.c.h.b16 %v4603
      %v4887 = vunpack.c.l.b16 %v4604
      %v4888 = vunpack.c.h.b16 %v4604
      %v4889 = vunpack.c.l.b16 %v4605
      %v4890 = vunpack.c.h.b16 %v4605
      %v4891 = vunpack.c.l.b16 %v4606
      %v4892 = vunpack.c.h.b16 %v4606
      %v4893 = vunpack.c.l.b16 %v4607
      %v4894 = vunpack.c.h.b16 %v4607
      %v4895 = vunpack.c.l.b16 %v4608
      %v4896 = vunpack.c.h.b16 %v4608
      %v4897 = vunpack.c.l.b16 %v4609
      %v4898 = vunpack.c.h.b16 %v4609
      %v4899 = vunpack.c.l.b16 %v4610
      %v4900 = vunpack.c.h.b16 %v4610
      %v4901 = vunpack.c.l.b16 %v4611
      %v4902 = vunpack.c.h.b16 %v4611
      %v4903 = vunpack.c.l.b16 %v4612
      %v4904 = vunpack.c.h.b16 %v4612
      %v4905 = vunpack.c.l.b16 %v4613
      %v4906 = vunpack.c.h.b16 %v4613
      %v4907 = vunpack.c.l.b16 %v4614
      %v4908 = vunpack.c.h.b16 %v4614
      %v4909 = vunpack.c.l.b16 %v4615
      %v4910 = vunpack.c.h.b16 %v4615
      %v4911 = vunpack.c.l.b16 %v4616
      %v4912 = vunpack.c.h.b16 %v4616
      %v4913 = vunpack.c.l.b16 %v4617
      %v4914 = vunpack.c.h.b16 %v4617
      %v4915 = vunpack.c.l.b16 %v4618
      %v4916 = vunpack.c.h.b16 %v4618
      %v4917 = vunpack.c.l.b16 %v4619
      %v4918 = vunpack.c.h.b16 %v4619
      %v4919 = vunpack.c.l.b16 %v4620
      %v4920 = vunpack.c.h.b16 %v4620
      %v4921 = vunpack.c.l.b16 %v4621
      %v4922 = vunpack.c.h.b16 %v4621
      %v4923 = vunpack.c.l.b16 %v4622
      %v4924 = vunpack.c.h.b16 %v4622
      %v4925 = vunpack.c.l.b16 %v4623
      %v4926 = vunpack.c.h.b16 %v4623
      %v4927 = vunpack.c.l.b16 %v4624
      %v4928 = vunpack.c.h.b16 %v4624
      %v4929 = vunpack.c.l.b16 %v4625
      %v4930 = vunpack.c.h.b16 %v4625
      %v4931 = vunpack.c.l.b16 %v4626
      %v4932 = vunpack.c.h.b16 %v4626
      %v4933 = vunpack.c.l.b16 %v4627
      %v4934 = vunpack.c.h.b16 %v4627
      %v4935 = vunpack.c.l.b16 %v4628
      %v4936 = vunpack.c.h.b16 %v4628
      %v4937 = vunpack.c.l.b16 %v4629
      %v4938 = vunpack.c.h.b16 %v4629
      %v4939 = vunpack.c.l.b16 %v4630
      %v4940 = vunpack.c.h.b16 %v4630
      %v4941 = vunpack.c.l.b16 %v4631
      %v4942 = vunpack.c.h.b16 %v4631
      %v4943 = vunpack.c.l.b16 %v4632
      %v4944 = vunpack.c.h.b16 %v4632
      %v4945 = vunpack.c.l.b16 %v4633
      %v4946 = vunpack.c.h.b16 %v4633
      %v4947 = vunpack.c.l.b16 %v4634
      %v4948 = vunpack.c.h.b16 %v4634
      %v4949 = vunpack.c.l.b16 %v4635
      %v4950 = vunpack.c.h.b16 %v4635
      %v4951 = vunpack.c.l.b16 %v4636
      %v4952 = vunpack.c.h.b16 %v4636
      %v4953 = vunpack.c.l.b16 %v4637
      %v4954 = vunpack.c.h.b16 %v4637
      %v4955 = vunpack.c.l.b16 %v4638
      %v4956 = vunpack.c.h.b16 %v4638
      %v4957 = vunpack.c.l.b16 %v4639
      %v4958 = vunpack.c.h.b16 %v4639
      %v4959 = vunpack.c.l.b16 %v4640
      %v4960 = vunpack.c.h.b16 %v4640
      %v4961 = vunpack.c.l.b16 %v4641
      %v4962 = vunpack.c.h.b16 %v4641
      %v4963 = vunpack.c.l.b16 %v4642
      %v4964 = vunpack.c.h.b16 %v4642
      %v4965 = vunpack.c.l.b16 %v4643
      %v4966 = vunpack.c.h.b16 %v4643
      %v4967 = vunpack.c.l.b16 %v4644
      %v4968 = vunpack.c.h.b16 %v4644
      %v4969 = vunpack.c.l.b16 %v4645
      %v4970 = vunpack.c.h.b16 %v4645
      %v4971 = vunpack.c.l.b16 %v4646
      %v4972 = vunpack.c.h.b16 %v4646
      %v4973 = vunpack.c.l.b16 %v4647
      %v4974 = vunpack.c.h.b16 %v4647
      %v4975 = vunpack.c.l.b16 %v4648
      %v4976 = vunpack.c.h.b16 %v4648
      %v4977 = vunpack.c.l.b16 %v4649
      %v4978 = vunpack.c.h.b16 %v4649
      %v4979 = vunpack.c.l.b16 %v4650
      %v4980 = vunpack.c.h.b16 %v4650
      %v4981 = vunpack.c.l.b16 %v4651
      %v4982 = vunpack.c.h.b16 %v4651
      %v4983 = vunpack.c.l.b16 %v4652
      %v4984 = vunpack.c.h.b16 %v4652
      %v4985 = vunpack.c.l.b16 %v4653
      %v4986 = vunpack.c.h.b16 %v4653
      %v4987 = vunpack.c.l.b16 %v4654
      %v4988 = vunpack.c.h.b16 %v4654
      %v4989 = vunpack.c.l.b16 %v4655
      %v4990 = vunpack.c.h.b16 %v4655
      %v4991 = vunpack.c.l.b16 %v4656
      %v4992 = vunpack.c.h.b16 %v4656
      %v4993 = vunpack.c.l.b16 %v4657
      %v4994 = vunpack.c.h.b16 %v4657
      %v4995 = vunpack.c.l.b16 %v4658
      %v4996 = vunpack.c.h.b16 %v4658
      %v4997 = vunpack.c.l.b16 %v4659
      %v4998 = vunpack.c.h.b16 %v4659
      %v4999 = vunpack.c.l.b16 %v4660
      %v5000 = vunpack.c.h.b16 %v4660
      %v5001 = vunpack.c.l.b16 %v4661
      %v5002 = vunpack.c.h.b16 %v4661
      %v5003 = vunpack.c.l.b16 %v4662
      %v5004 = vunpack.c.h.b16 %v4662
      %v5005 = vunpack.c.l.b16 %v4663
      %v5006 = vunpack.c.h.b16 %v4663
      %v5007 = vunpack.c.l.b16 %v4664
      %v5008 = vunpack.c.h.b16 %v4664
      %v5009 = vunpack.c.l.b16 %v4665
      %v5010 = vunpack.c.h.b16 %v4665
      %v5011 = vunpack.c.l.b16 %v4666
      %v5012 = vunpack.c.h.b16 %v4666
      %v5013 = vunpack.c.l.b16 %v4667
      %v5014 = vunpack.c.h.b16 %v4667
      %v5015 = vunpack.c.l.b16 %v4668
      %v5016 = vunpack.c.h.b16 %v4668
      %v5017 = vunpack.c.l.b16 %v4669
      %v5018 = vunpack.c.h.b16 %v4669
      %v5019 = vunpack.c.l.b16 %v4670
      %v5020 = vunpack.c.h.b16 %v4670
      %v5021 = vunpack.c.l.b16 %v4671
      %v5022 = vunpack.c.h.b16 %v4671
      %v5023 = vunpack.c.l.b16 %v4672
      %v5024 = vunpack.c.h.b16 %v4672
      %v5025 = vunpack.c.l.b16 %v4673
      %v5026 = vunpack.c.h.b16 %v4673
      %v5027 = vunpack.c.l.b16 %v4674
      %v5028 = vunpack.c.h.b16 %v4674
      %v5029 = vunpack.c.l.b16 %v4675
      %v5030 = vunpack.c.h.b16 %v4675
      %v5031 = vunpack.c.l.b16 %v4676
      %v5032 = vunpack.c.h.b16 %v4676
      %v5033 = vunpack.c.l.b16 %v4677
      %v5034 = vunpack.c.h.b16 %v4677
      %v5035 = vunpack.c.l.b16 %v4678
      %v5036 = vunpack.c.h.b16 %v4678
      %v5037 = vunpack.c.l.b16 %v4679
      %v5038 = vunpack.c.h.b16 %v4679
      %v5039 = vunpack.c.l.b16 %v4680
      %v5040 = vunpack.c.h.b16 %v4680
      %v5041 = vunpack.c.l.b16 %v4681
      %v5042 = vunpack.c.h.b16 %v4681
      %v5043 = vunpack.c.l.b16 %v4682
      %v5044 = vunpack.c.h.b16 %v4682
      %v5045 = vunpack.c.l.b16 %v4683
      %v5046 = vunpack.c.h.b16 %v4683
      %v5047 = vunpack.c.l.b16 %v4684
      %v5048 = vunpack.c.h.b16 %v4684
      %v5049 = vunpack.c.l.b16 %v4685
      %v5050 = vunpack.c.h.b16 %v4685
      %v5051 = vunpack.c.l.b16 %v4686
      %v5052 = vunpack.c.h.b16 %v4686
      %v5053 = vunpack.c.l.b16 %v4687
      %v5054 = vunpack.c.h.b16 %v4687
      %v5055 = vunpack.c.l.b16 %v4688
      %v5056 = vunpack.c.h.b16 %v4688
      %v5057 = vunpack.c.l.b16 %v4689
      %v5058 = vunpack.c.h.b16 %v4689
      %v5059 = vunpack.c.l.b16 %v4690
      %v5060 = vunpack.c.h.b16 %v4690
      %v5061 = vunpack.c.l.b16 %v4691
      %v5062 = vunpack.c.h.b16 %v4691
      %v5063 = vunpack.c.l.b16 %v4692
      %v5064 = vunpack.c.h.b16 %v4692
      %v5065 = vunpack.c.l.b16 %v4693
      %v5066 = vunpack.c.h.b16 %v4693
      %v5067 = vunpack.c.l.b16 %v4694
      %v5068 = vunpack.c.h.b16 %v4694
      %v5069 = vunpack.c.l.b16 %v4695
      %v5070 = vunpack.c.h.b16 %v4695
      %v5071 = vunpack.c.l.b16 %v4696
      %v5072 = vunpack.c.h.b16 %v4696
      %v5073 = vunpack.c.l.b16 %v4697
      %v5074 = vunpack.c.h.b16 %v4697
      %v5075 = vunpack.c.l.b16 %v4698
      %v5076 = vunpack.c.h.b16 %v4698
      %v5077 = vunpack.c.l.b16 %v4699
      %v5078 = vunpack.c.h.b16 %v4699
      %v5079 = vunpack.c.l.b16 %v4700
      %v5080 = vunpack.c.h.b16 %v4700
      %v5081 = vunpack.c.l.b16 %v4701
      %v5082 = vunpack.c.h.b16 %v4701
      %v5083 = vunpack.c.l.b16 %v4702
      %v5084 = vunpack.c.h.b16 %v4702
      %v5085 = vunpack.c.l.b16 %v4703
      %v5086 = vunpack.c.h.b16 %v4703
      %v5087 = vunpack.c.l.b16 %v4704
      %v5088 = vunpack.c.h.b16 %v4704
      %v5089 = vunpack.c.l.b16 %v4705
      %v5090 = vunpack.c.h.b16 %v4705
      %v5091 = vunpack.c.l.b16 %v4706
      %v5092 = vunpack.c.h.b16 %v4706
      %v5093 = vunpack.c.l.b16 %v4707
      %v5094 = vunpack.c.h.b16 %v4707
      %v5095 = vunpack.c.l.b16 %v4708
      %v5096 = vunpack.c.h.b16 %v4708
      %v5097 = vunpack.c.l.b16 %v4709
      %v5098 = vunpack.c.h.b16 %v4709
      %v5099 = vunpack.c.l.b16 %v4710
      %v5100 = vunpack.c.h.b16 %v4710
      %v5101 = vunpack.c.l.b16 %v4711
      %v5102 = vunpack.c.h.b16 %v4711
      %v5103 = vunpack.c.l.b16 %v4712
      %v5104 = vunpack.c.h.b16 %v4712
      %v5105 = vunpack.c.l.b16 %v4713
      %v5106 = vunpack.c.h.b16 %v4713
      %v5107 = vunpack.c.l.b16 %v4714
      %v5108 = vunpack.c.h.b16 %v4714
      %v5109 = vunpack.c.l.b16 %v4715
      %v5110 = vunpack.c.h.b16 %v4715
      %v5111 = vunpack.c.l.b16 %v4716
      %v5112 = vunpack.c.h.b16 %v4716
      %v5113 = vunpack.c.l.b16 %v4717
      %v5114 = vunpack.c.h.b16 %v4717
      %v5115 = vunpack.c.l.b16 %v4718
      %v5116 = vunpack.c.h.b16 %v4718
      %v5117 = vunpack.c.l.b16 %v4719
      %v5118 = vunpack.c.h.b16 %v4719
      %v5119 = vunpack.c.l.b16 %v4720
      %v5120 = vunpack.c.h.b16 %v4720
      %v5121 = vunpack.c.l.b16 %v4721
      %v5122 = vunpack.c.h.b16 %v4721
      %v5123 = vunpack.c.l.b16 %v4722
      %v5124 = vunpack.c.h.b16 %v4722
      %v5125 = vunpack.c.l.b16 %v4723
      %v5126 = vunpack.c.h.b16 %v4723
      %v5127 = vunpack.c.l.b16 %v4724
      %v5128 = vunpack.c.h.b16 %v4724
      %v5129 = vunpack.c.l.b16 %v4725
      %v5130 = vunpack.c.h.b16 %v4725
      %v5131 = vunpack.c.l.b16 %v4726
      %v5132 = vunpack.c.h.b16 %v4726
      %v5133 = vpack.c.b16 %v4881, %v4877
      %v5134 = vpack.c.b16 %v4882, %v4878
      %v5135 = vpack.c.b16 %v4883, %v4879
      %v5136 = vpack.c.b16 %v4884, %v4880
      %v5137 = vpack.c.b16 %v4889, %v4885
      %v5138 = vpack.c.b16 %v4890, %v4886
      %v5139 = vpack.c.b16 %v4891, %v4887
      %v5140 = vpack.c.b16 %v4892, %v4888
      %v5141 = vpack.c.b16 %v4897, %v4893
      %v5142 = vpack.c.b16 %v4898, %v4894
      %v5143 = vpack.c.b16 %v4899, %v4895
      %v5144 = vpack.c.b16 %v4900, %v4896
      %v5145 = vpack.c.b16 %v4905, %v4901
      %v5146 = vpack.c.b16 %v4906, %v4902
      %v5147 = vpack.c.b16 %v4907, %v4903
      %v5148 = vpack.c.b16 %v4908, %v4904
      %v5149 = vpack.c.b16 %v4913, %v4909
      %v5150 = vpack.c.b16 %v4914, %v4910
      %v5151 = vpack.c.b16 %v4915, %v4911
      %v5152 = vpack.c.b16 %v4916, %v4912
      %v5153 = vpack.c.b16 %v4921, %v4917
      %v5154 = vpack.c.b16 %v4922, %v4918
      %v5155 = vpack.c.b16 %v4923, %v4919
      %v5156 = vpack.c.b16 %v4924, %v4920
      %v5157 = vpack.c.b16 %v4929, %v4925
      %v5158 = vpack.c.b16 %v4930, %v4926
      %v5159 = vpack.c.b16 %v4931, %v4927
      %v5160 = vpack.c.b16 %v4932, %v4928
      %v5161 = vpack.c.b16 %v4937, %v4933
      %v5162 = vpack.c.b16 %v4938, %v4934
      %v5163 = vpack.c.b16 %v4939, %v4935
      %v5164 = vpack.c.b16 %v4940, %v4936
      %v5165 = vpack.c.b16 %v4945, %v4941
      %v5166 = vpack.c.b16 %v4946, %v4942
      %v5167 = vpack.c.b16 %v4947, %v4943
      %v5168 = vpack.c.b16 %v4948, %v4944
      %v5169 = vpack.c.b16 %v4953, %v4949
      %v5170 = vpack.c.b16 %v4954, %v4950
      %v5171 = vpack.c.b16 %v4955, %v4951
      %v5172 = vpack.c.b16 %v4956, %v4952
      %v5173 = vpack.c.b16 %v4961, %v4957
      %v5174 = vpack.c.b16 %v4962, %v4958
      %v5175 = vpack.c.b16 %v4963, %v4959
      %v5176 = vpack.c.b16 %v4964, %v4960
      %v5177 = vpack.c.b16 %v4969, %v4965
      %v5178 = vpack.c.b16 %v4970, %v4966
      %v5179 = vpack.c.b16 %v4971, %v4967
      %v5180 = vpack.c.b16 %v4972, %v4968
      %v5181 = vpack.c.b16 %v4977, %v4973
      %v5182 = vpack.c.b16 %v4978, %v4974
      %v5183 = vpack.c.b16 %v4979, %v4975
      %v5184 = vpack.c.b16 %v4980, %v4976
      %v5185 = vpack.c.b16 %v4985, %v4981
      %v5186 = vpack.c.b16 %v4986, %v4982
      %v5187 = vpack.c.b16 %v4987, %v4983
      %v5188 = vpack.c.b16 %v4988, %v4984
      %v5189 = vpack.c.b16 %v4993, %v4989
      %v5190 = vpack.c.b16 %v4994, %v4990
      %v5191 = vpack.c.b16 %v4995, %v4991
      %v5192 = vpack.c.b16 %v4996, %v4992
      %v5193 = vpack.c.b16 %v5001, %v4997
      %v5194 = vpack.c.b16 %v5002, %v4998
      %v5195 = vpack.c.b16 %v5003, %v4999
      %v5196 = vpack.c.b16 %v5004, %v5000
      %v5197 = vpack.c.b16 %v5009, %v5005
      %v5198 = vpack.c.b16 %v5010, %v5006
      %v5199 = vpack.c.b16 %v5011, %v5007
      %v5200 = vpack.c.b16 %v5012, %v5008
      %v5201 = vpack.c.b16 %v5017, %v5013
      %v5202 = vpack.c.b16 %v5018, %v5014
      %v5203 = vpack.c.b16 %v5019, %v5015
      %v5204 = vpack.c.b16 %v5020, %v5016
      %v5205 = vpack.c.b16 %v5025, %v5021
      %v5206 = vpack.c.b16 %v5026, %v5022
      %v5207 = vpack.c.b16 %v5027, %v5023
      %v5208 = vpack.c.b16 %v5028, %v5024
      %v5209 = vpack.c.b16 %v5033, %v5029
      %v5210 = vpack.c.b16 %v5034, %v5030
      %v5211 = vpack.c.b16 %v5035, %v5031
      %v5212 = vpack.c.b16 %v5036, %v5032
      %v5213 = vpack.c.b16 %v5041, %v5037
      %v5214 = vpack.c.b16 %v5042, %v5038
      %v5215 = vpack.c.b16 %v5043, %v5039
      %v5216 = vpack.c.b16 %v5044, %v5040
      %v5217 = vpack.c.b16 %v5049, %v5045
      %v5218 = vpack.c.b16 %v5050, %v5046
      %v5219 = vpack.c.b16 %v5051, %v5047
      %v5220 = vpack.c.b16 %v5052, %v5048
      %v5221 = vpack.c.b16 %v5057, %v5053
      %v5222 = vpack.c.b16 %v5058, %v5054
      %v5223 = vpack.c.b16 %v5059, %v5055
      %v5224 = vpack.c.b16 %v5060, %v5056
      %v5225 = vpack.c.b16 %v5065, %v5061
      %v5226 = vpack.c.b16 %v5066, %v5062
      %v5227 = vpack.c.b16 %v5067, %v5063
      %v5228 = vpack.c.b16 %v5068, %v5064
      %v5229 = vpack.c.b16 %v5073, %v5069
      %v5230 = vpack.c.b16 %v5074, %v5070
      %v5231 = vpack.c.b16 %v5075, %v5071
      %v5232 = vpack.c.b16 %v5076, %v5072
      %v5233 = vpack.c.b16 %v5081, %v5077
      %v5234 = vpack.c.b16 %v5082, %v5078
      %v5235 = vpack.c.b16 %v5083, %v5079
      %v5236 = vpack.c.b16 %v5084, %v5080
      %v5237 = vpack.c.b16 %v5089, %v5085
      %v5238 = vpack.c.b16 %v5090, %v5086
      %v5239 = vpack.c.b16 %v5091, %v5087
      %v5240 = vpack.c.b16 %v5092, %v5088
      %v5241 = vpack.c.b16 %v5097, %v5093
      %v5242 = vpack.c.b16 %v5098, %v5094
      %v5243 = vpack.c.b16 %v5099, %v5095
      %v5244 = vpack.c.b16 %v5100, %v5096
      %v5245 = vpack.c.b16 %v5105, %v5101
      %v5246 = vpack.c.b16 %v5106, %v5102
      %v5247 = vpack.c.b16 %v5107, %v5103
      %v5248 = vpack.c.b16 %v5108, %v5104
      %v5249 = vpack.c.b16 %v5113, %v5109
      %v5250 = vpack.c.b16 %v5114, %v5110
      %v5251 = vpack.c.b16 %v5115, %v5111
      %v5252 = vpack.c.b16 %v5116, %v5112
      %v5253 = vpack.c.b16 %v5121, %v5117
      %v5254 = vpack.c.b16 %v5122, %v5118
      %v5255 = vpack.c.b16 %v5123, %v5119
      %v5256 = vpack.c.b16 %v5124, %v5120
      %v5257 = vpack.c.b16 %v5129, %v5125
      %v5258 = vpack.c.b16 %v5130, %v5126
      %v5259 = vpack.c.b16 %v5131, %v5127
      %v5260 = vpack.c.b16 %v5132, %v5128
      %5389 = vmatprep.subr.bf16.mxu0 %v5134
      %5390 = vmatpush1.bf16.msra.mxu0 %v5133
      %5391 = vmatprep.subr.bf16.mxu0 %v5138
      %5392 = vmatpush1.bf16.msra.mxu0 %v5137
      %5393 = vmatprep.subr.bf16.mxu0 %v5142
      %5394 = vmatpush1.bf16.msra.mxu0 %v5141
      %5395 = vmatprep.subr.bf16.mxu0 %v5146
      %5396 = vmatpush1.bf16.msra.mxu0 %v5145
      %5397 = vmatprep.subr.bf16.mxu0 %v5150
      %5398 = vmatpush1.bf16.msra.mxu0 %v5149
      %5399 = vmatprep.subr.bf16.mxu0 %v5154
      %5400 = vmatpush1.bf16.msra.mxu0 %v5153
      %5401 = vmatprep.subr.bf16.mxu0 %v5158
      %5402 = vmatpush1.bf16.msra.mxu0 %v5157
      %5403 = vmatprep.subr.bf16.mxu0 %v5162
      %5404 = vmatpush1.bf16.msra.mxu0 %v5161
      %5405 = vmatprep.subr.bf16.mxu0 %v5166
      %5406 = vmatpush1.bf16.msra.mxu0 %v5165
      %5407 = vmatprep.subr.bf16.mxu0 %v5170
      %5408 = vmatpush1.bf16.msra.mxu0 %v5169
      %5409 = vmatprep.subr.bf16.mxu0 %v5174
      %5410 = vmatpush1.bf16.msra.mxu0 %v5173
      %5411 = vmatprep.subr.bf16.mxu0 %v5178
      %5412 = vmatpush1.bf16.msra.mxu0 %v5177
      %5413 = vmatprep.subr.bf16.mxu0 %v5182
      %5414 = vmatpush1.bf16.msra.mxu0 %v5181
      %5415 = vmatprep.subr.bf16.mxu0 %v5186
      %5416 = vmatpush1.bf16.msra.mxu0 %v5185
      %5417 = vmatprep.subr.bf16.mxu0 %v5190
      %5418 = vmatpush1.bf16.msra.mxu0 %v5189
      %5419 = vmatprep.subr.bf16.mxu0 %v5194
      %5420 = vmatpush1.bf16.msra.mxu0 %v5193
      %5421 = vmatprep.mubr.bf16.mxu0 %v4592
      %5422 = vmatmul.mubr.bf16.gmra.mrb[0].mxu0 %v4591
      %v5423 = vpop.f32.mrb[0].mxu0
      %v5424 = vadd.f32 %v4732, %v5423
      %v5425 = vpop.f32.mrb[0].mxu0
      %v5426 = vadd.f32 %v4736, %v5425
      %v5427 = vpop.f32.mrb[0].mxu0
      %v5428 = vadd.f32 %v4732, %v5427
      %v5429 = vpop.f32.mrb[0].mxu0
      %v5430 = vadd.f32 %v4736, %v5429
      %5431 = vmatprep.mubr.bf16.mxu0 %v4596
      %5432 = vmatmul.mubr.bf16.gmra.mrb[0].mxu0 %v4595
      %v5433 = vpop.f32.mrb[0].mxu0
      %v5434 = vadd.f32 %v4732, %v5433
      %v5435 = vpop.f32.mrb[0].mxu0
      %v5436 = vadd.f32 %v4736, %v5435
      %v5437 = vpop.f32.mrb[0].mxu0
      %v5438 = vadd.f32 %v4732, %v5437
      %v5439 = vpop.f32.mrb[0].mxu0
      %v5440 = vadd.f32 %v4736, %v5439
      %5441 = vdwg.mxu0
      %5442 = vmatprep.subr.bf16.mxu0 %v5198
      %5443 = vmatpush1.bf16.msra.mxu0 %v5197
      %5444 = vmatprep.subr.bf16.mxu0 %v5202
      %5445 = vmatpush1.bf16.msra.mxu0 %v5201
      %5446 = vmatprep.subr.bf16.mxu0 %v5206
      %5447 = vmatpush1.bf16.msra.mxu0 %v5205
      %5448 = vmatprep.subr.bf16.mxu0 %v5210
      %5449 = vmatpush1.bf16.msra.mxu0 %v5209
      %5450 = vmatprep.subr.bf16.mxu0 %v5214
      %5451 = vmatpush1.bf16.msra.mxu0 %v5213
      %5452 = vmatprep.subr.bf16.mxu0 %v5218
      %5453 = vmatpush1.bf16.msra.mxu0 %v5217
      %5454 = vmatprep.subr.bf16.mxu0 %v5222
      %5455 = vmatpush1.bf16.msra.mxu0 %v5221
      %5456 = vmatprep.subr.bf16.mxu0 %v5226
      %5457 = vmatpush1.bf16.msra.mxu0 %v5225
      %5458 = vmatprep.subr.bf16.mxu0 %v5230
      %5459 = vmatpush1.bf16.msra.mxu0 %v5229
      %5460 = vmatprep.subr.bf16.mxu0 %v5234
      %5461 = vmatpush1.bf16.msra.mxu0 %v5233
      %5462 = vmatprep.subr.bf16.mxu0 %v5238
      %5463 = vmatpush1.bf16.msra.mxu0 %v5237
      %5464 = vmatprep.subr.bf16.mxu0 %v5242
      %5465 = vmatpush1.bf16.msra.mxu0 %v5241
      %5466 = vmatprep.subr.bf16.mxu0 %v5246
      %5467 = vmatpush1.bf16.msra.mxu0 %v5245
      %5468 = vmatprep.subr.bf16.mxu0 %v5250
      %5469 = vmatpush1.bf16.msra.mxu0 %v5249
      %5470 = vmatprep.subr.bf16.mxu0 %v5254
      %5471 = vmatpush1.bf16.msra.mxu0 %v5253
      %5472 = vmatprep.subr.bf16.mxu0 %v5258
      %5473 = vmatpush1.bf16.msra.mxu0 %v5257
      %5474 = vmatprep.mubr.bf16.mxu0 %v4594
      %5475 = vmatmul.mubr.bf16.gmra.mrb[0].mxu0 %v4593
      %v5476 = vpop.f32.mrb[0].mxu0
      %v5477 = vadd.f32 %v5424, %v5476
      %v5478 = vpop.f32.mrb[0].mxu0
      %v5479 = vadd.f32 %v5426, %v5478
      %v5480 = vpop.f32.mrb[0].mxu0
      %v5481 = vadd.f32 %v5428, %v5480
      %v5482 = vpop.f32.mrb[0].mxu0
      %v5483 = vadd.f32 %v5430, %v5482
      %5484 = vmatprep.mubr.bf16.mxu0 %v4598
      %5485 = vmatmul.mubr.bf16.gmra.mrb[0].mxu0 %v4597
      %v5486 = vpop.f32.mrb[0].mxu0
      %v5487 = vadd.f32 %v5434, %v5486
      %v5488 = vpop.f32.mrb[0].mxu0
      %v5489 = vadd.f32 %v5436, %v5488
      %v5490 = vpop.f32.mrb[0].mxu0
      %v5491 = vadd.f32 %v5438, %v5490
      %v5492 = vpop.f32.mrb[0].mxu0
      %v5493 = vadd.f32 %v5440, %v5492
      %5494 = vdwg.mxu0
      %5495 = vmatprep.subr.bf16.mxu0 %v5136
      %5496 = vmatpush1.bf16.msra.mxu0 %v5135
      %5497 = vmatprep.subr.bf16.mxu0 %v5140
      %5498 = vmatpush1.bf16.msra.mxu0 %v5139
      %5499 = vmatprep.subr.bf16.mxu0 %v5144
      %5500 = vmatpush1.bf16.msra.mxu0 %v5143
      %5501 = vmatprep.subr.bf16.mxu0 %v5148
      %5502 = vmatpush1.bf16.msra.mxu0 %v5147
      %5503 = vmatprep.subr.bf16.mxu0 %v5152
      %5504 = vmatpush1.bf16.msra.mxu0 %v5151
      %5505 = vmatprep.subr.bf16.mxu0 %v5156
      %5506 = vmatpush1.bf16.msra.mxu0 %v5155
      %5507 = vmatprep.subr.bf16.mxu0 %v5160
      %5508 = vmatpush1.bf16.msra.mxu0 %v5159
      %5509 = vmatprep.subr.bf16.mxu0 %v5164
      %5510 = vmatpush1.bf16.msra.mxu0 %v5163
      %5511 = vmatprep.subr.bf16.mxu0 %v5168
      %5512 = vmatpush1.bf16.msra.mxu0 %v5167
      %5513 = vmatprep.subr.bf16.mxu0 %v5172
      %5514 = vmatpush1.bf16.msra.mxu0 %v5171
      %5515 = vmatprep.subr.bf16.mxu0 %v5176
      %5516 = vmatpush1.bf16.msra.mxu0 %v5175
      %5517 = vmatprep.subr.bf16.mxu0 %v5180
      %5518 = vmatpush1.bf16.msra.mxu0 %v5179
      %5519 = vmatprep.subr.bf16.mxu0 %v5184
      %5520 = vmatpush1.bf16.msra.mxu0 %v5183
      %5521 = vmatprep.subr.bf16.mxu0 %v5188
      %5522 = vmatpush1.bf16.msra.mxu0 %v5187
      %5523 = vmatprep.subr.bf16.mxu0 %v5192
      %5524 = vmatpush1.bf16.msra.mxu0 %v5191
      %5525 = vmatprep.subr.bf16.mxu0 %v5196
      %5526 = vmatpush1.bf16.msra.mxu0 %v5195
      %5527 = vmatprep.mubr.bf16.mxu0 %v4592
      %5528 = vmatmul.mubr.bf16.gmra.mrb[0].mxu0 %v4591
      %v5529 = vpop.f32.mrb[0].mxu0
      %v5530 = vadd.f32 %v4740, %v5529
      %v5531 = vpop.f32.mrb[0].mxu0
      %v5532 = vadd.f32 %v4744, %v5531
      %v5533 = vpop.f32.mrb[0].mxu0
      %v5534 = vadd.f32 %v4740, %v5533
      %v5535 = vpop.f32.mrb[0].mxu0
      %v5536 = vadd.f32 %v4744, %v5535
      %5537 = vmatprep.mubr.bf16.mxu0 %v4596
      %5538 = vmatmul.mubr.bf16.gmra.mrb[0].mxu0 %v4595
      %v5539 = vpop.f32.mrb[0].mxu0
      %v5540 = vadd.f32 %v4740, %v5539
      %v5541 = vpop.f32.mrb[0].mxu0
      %v5542 = vadd.f32 %v4744, %v5541
      %v5543 = vpop.f32.mrb[0].mxu0
      %v5544 = vadd.f32 %v4740, %v5543
      %v5545 = vpop.f32.mrb[0].mxu0
      %v5546 = vadd.f32 %v4744, %v5545
      %5547 = vdwg.mxu0
      %5548 = vmatprep.subr.bf16.mxu0 %v5200
      %5549 = vmatpush1.bf16.msra.mxu0 %v5199
      %5550 = vmatprep.subr.bf16.mxu0 %v5204
      %5551 = vmatpush1.bf16.msra.mxu0 %v5203
      %5552 = vmatprep.subr.bf16.mxu0 %v5208
      %5553 = vmatpush1.bf16.msra.mxu0 %v5207
      %5554 = vmatprep.subr.bf16.mxu0 %v5212
      %5555 = vmatpush1.bf16.msra.mxu0 %v5211
      %5556 = vmatprep.subr.bf16.mxu0 %v5216
      %5557 = vmatpush1.bf16.msra.mxu0 %v5215
      %5558 = vmatprep.subr.bf16.mxu0 %v5220
      %5559 = vmatpush1.bf16.msra.mxu0 %v5219
      %5560 = vmatprep.subr.bf16.mxu0 %v5224
      %5561 = vmatpush1.bf16.msra.mxu0 %v5223
      %5562 = vmatprep.subr.bf16.mxu0 %v5228
      %5563 = vmatpush1.bf16.msra.mxu0 %v5227
      %5564 = vmatprep.subr.bf16.mxu0 %v5232
      %5565 = vmatpush1.bf16.msra.mxu0 %v5231
      %5566 = vmatprep.subr.bf16.mxu0 %v5236
      %5567 = vmatpush1.bf16.msra.mxu0 %v5235
      %5568 = vmatprep.subr.bf16.mxu0 %v5240
      %5569 = vmatpush1.bf16.msra.mxu0 %v5239
      %5570 = vmatprep.subr.bf16.mxu0 %v5244
      %5571 = vmatpush1.bf16.msra.mxu0 %v5243
      %5572 = vmatprep.subr.bf16.mxu0 %v5248
      %5573 = vmatpush1.bf16.msra.mxu0 %v5247
      %5574 = vmatprep.subr.bf16.mxu0 %v5252
      %5575 = vmatpush1.bf16.msra.mxu0 %v5251
      %5576 = vmatprep.subr.bf16.mxu0 %v5256
      %5577 = vmatpush1.bf16.msra.mxu0 %v5255
      %5578 = vmatprep.subr.bf16.mxu0 %v5260
      %5579 = vmatpush1.bf16.msra.mxu0 %v5259
      %5580 = vmatprep.mubr.bf16.mxu0 %v4594
      %5581 = vmatmul.mubr.bf16.gmra.mrb[0].mxu0 %v4593
      %v5582 = vpop.f32.mrb[0].mxu0
      %v5583 = vadd.f32 %v5530, %v5582
      %v5584 = vpop.f32.mrb[0].mxu0
      %v5585 = vadd.f32 %v5532, %v5584
      %v5586 = vpop.f32.mrb[0].mxu0
      %v5587 = vadd.f32 %v5534, %v5586
      %v5588 = vpop.f32.mrb[0].mxu0
      %v5589 = vadd.f32 %v5536, %v5588
      %5590 = vmatprep.mubr.bf16.mxu0 %v4598
      %5591 = vmatmul.mubr.bf16.gmra.mrb[0].mxu0 %v4597
      %v5592 = vpop.f32.mrb[0].mxu0
      %v5593 = vadd.f32 %v5540, %v5592
      %v5594 = vpop.f32.mrb[0].mxu0
      %v5595 = vadd.f32 %v5542, %v5594
      %v5596 = vpop.f32.mrb[0].mxu0
      %v5597 = vadd.f32 %v5544, %v5596
      %v5598 = vpop.f32.mrb[0].mxu0
      %v5599 = vadd.f32 %v5546, %v5598
      %5600 = vdwg.mxu0
      %5601 = vst [vmem:[%s332] sm:$0xff] %v5477
      %5602 = vst [vmem:[%s332 + $0x8] sm:$0xff] %v5479
      %5603 = vst [vmem:[%s332 + $0x10] sm:$0xff] %v5583
      %5604 = vst [vmem:[%s332 + $0x18] sm:$0xff] %v5585
      %5605 = vst [vmem:[%s332 + $0x20] sm:$0xff] %v5481
      %5606 = vst [vmem:[%s332 + $0x28] sm:$0xff] %v5483
      %5607 = vst [vmem:[%s332 + $0x30] sm:$0xff] %v5587
      %5608 = vst [vmem:[%s332 + $0x38] sm:$0xff] %v5589
      %5609 = vst [vmem:[%s332 + $0x40] sm:$0xff] %v5487
      %5610 = vst [vmem:[%s332 + $0x48] sm:$0xff] %v5489
      %5611 = vst [vmem:[%s332 + $0x50] sm:$0xff] %v5593
      %5612 = vst [vmem:[%s332 + $0x58] sm:$0xff] %v5595
      %5613 = vst [vmem:[%s332 + $0x60] sm:$0xff] %v5491
      %5614 = vst [vmem:[%s332 + $0x68] sm:$0xff] %v5493
      %5615 = vst [vmem:[%s332 + $0x70] sm:$0xff] %v5597
      %5616 = vst [vmem:[%s332 + $0x78] sm:$0xff] %v5599
      %p5617 = scmp.lt.s32.totalorder %s20, 1
      %s5618 = scalar_select %p5617, %s20, 1
      %s5619 = smul.addr %s5618, 16
      %s5620 = smul.addr %s5619, 8
      %s5621 = scalar_lea.vmem %s9, %s5620
      // Predicated region
      $region57: #{proposal_network_forward.1} parent=55 // pred_check
        %p5622 = pneg %p232
      $region58: #{proposal_network_forward.1} parent=55 // pred_check_branch
        %5624 = sbr.rel (%p5622) target = $region60
      $region59: #{proposal_network_forward.1} parent=55 // pred_region
        _
      $region60: #{proposal_network_forward.1} parent=55 // pred_fallthru
        _
    $region56: #{proposal_network_forward.1} parent=5 // pred_fallthru
      _
    %p5625 = scmp.le.s32.totalorder 2, %s15
    // Predicated region
    $region61: #{proposal_network_forward.1} parent=5 // pred_check
      %p5626 = pneg %p5625
    $region62: #{proposal_network_forward.1} parent=5 // pred_check_branch
      %5628 = sbr.rel (%p5626) target = $region64
    $region63: #{proposal_network_forward.1} parent=5 // pred_region
      %s5629 = ssub.s32 %s15, 2
      // Predicated region
      $region65: #{proposal_network_forward.1} parent=63 // pred_check
        %p5630 = pneg %p238
      $region66: #{proposal_network_forward.1} parent=63 // pred_check_branch
        %5632 = sbr.rel (%p5630) target = $region68
      $region67: #{proposal_network_forward.1} parent=63 // pred_region
        %p5633 = scmp.lt.s32.totalorder %s21, 1
        %s5634 = scalar_select %p5633, %s21, 1
        %s5635 = smul.addr %s5634, 16
        %s5636 = smul.addr %s5635, 8
        %s5637 = scalar_lea.vmem %s9, %s5636
      $region68: #{proposal_network_forward.1} parent=63 // pred_fallthru
        _
    $region64: #{proposal_network_forward.1} parent=5 // pred_fallthru
      _
  $region6: #{proposal_network_forward.1} parent=0 // loop_footer
    %s19 = sadd.s32 1, %s15
  $region7: #{proposal_network_forward.1} parent=0 // loop_footer_branch
    %14 = sbr.rel target = $region3
  $region8: #{proposal_network_forward.1} parent=0 // loop_exit
    _

</llo_original>
